<compile_context>
chip_gen: v7x
topology: tpu7x:2x2x1
jax: 0.10.0
libtpu: 0.0.40
codegen_flags: <defaults>
</compile_context>

<pallas_src>
import math

import jax
import jax.numpy as jnp
import numpy as np
from jax.experimental import pallas as pl
from jax.experimental.pallas import tpu as pltpu

# ----------------------------- model config ---------------------------------
B, T, D = 2, 8, 32            # batch, time, model size
NUM_HEADS = 4                 # attention heads (D % NUM_HEADS == 0)
DK = D // NUM_HEADS
FFN = 64                      # feed-forward hidden units
CG_HALF = 32                  # cgmlp linear units / 2 (gate split)
LN_EPS = 1e-12                # ESPnet LayerNorm eps
LANE = 128                    # TPU lane width; parameter slabs padded to this

# 2-D matmul / depthwise-conv weights -> packed into one (rows, 128) "W slab";
# every entry starts at a sublane(8)-aligned row offset.
W_PARAM_SHAPES = {
    "mac_w1": (D, FFN), "mac_w2": (FFN, D),
    "cg_w1_r": (D, CG_HALF), "cg_w1_g": (D, CG_HALF),
    "csgu_cw": (3, CG_HALF),
    "cg_w2": (CG_HALF, D),
    "fus_cw1": (3, D), "fus_cw2": (3, D),
    "merge_w1": (D, D), "merge_w2": (D, D),
    "ff_w1": (D, FFN), "ff_w2": (FFN, D),
}
# (1, C) vectors (biases / LN gammas & betas / conv biases) -> one row each of
# a (rows, 128) "V slab".
V_PARAM_SHAPES = {
    "mac_b1": (1, FFN), "mac_b2": (1, D),
    "ln_mac_g": (1, D), "ln_mac_b": (1, D),
    "ln_mha_g": (1, D), "ln_mha_b": (1, D),
    "bo": (1, D),
    "ln_mlp_g": (1, D), "ln_mlp_b": (1, D),
    "cg_b1_r": (1, CG_HALF), "cg_b1_g": (1, CG_HALF),
    "csgu_g": (1, CG_HALF), "csgu_b": (1, CG_HALF), "csgu_cb": (1, CG_HALF),
    "cg_b2": (1, D),
    "fus_cb1": (1, D), "fus_cb2": (1, D),
    "merge_b": (1, D),
    "ff_b1": (1, FFN), "ff_b2": (1, D),
    "ln_ff_g": (1, D), "ln_ff_b": (1, D),
    "ln_final_g": (1, D), "ln_final_b": (1, D),
}
# Attention projection weights, pre-stacked per head on the host:
#   w_qkv12[j] = W_{q|k|v}[:, h*DK:(h+1)*DK]  with j = which*NUM_HEADS + h
#   wo_h[h]    = W_o[h*DK:(h+1)*DK, :]
HEAD_PARAM_SHAPES = {
    "w_qkv12": (3 * NUM_HEADS, D, DK),
    "b_qkv12": (3 * NUM_HEADS, 1, DK),
    "wo_h": (NUM_HEADS, DK, D),
}
_GAMMAS = {"ln_mac_g", "ln_mha_g", "ln_mlp_g", "ln_ff_g", "ln_final_g", "csgu_g"}


def _build_w_layout():
    layout, off = {}, 0
    for name, (r, c) in W_PARAM_SHAPES.items():
        layout[name] = (off, r, c)
        off += ((r + 7) // 8) * 8          # keep every entry sublane-aligned
    return layout, off                      # off already a multiple of 8


def _build_v_layout():
    layout = {name: (i, c)
              for i, (name, (_, c)) in enumerate(V_PARAM_SHAPES.items())}
    rows = ((len(V_PARAM_SHAPES) + 7) // 8) * 8
    return layout, rows


W_LAYOUT, W_ROWS = _build_w_layout()
V_LAYOUT, V_ROWS = _build_v_layout()


# ----------------------------- shared math -----------------------------------
def _layer_norm(x, g, b):
    mu = jnp.mean(x, axis=-1, keepdims=True)
    var = jnp.mean(jnp.square(x - mu), axis=-1, keepdims=True)
    return (x - mu) * jax.lax.rsqrt(var + LN_EPS) * g + b


def _linear(x, w, b):
    return jnp.dot(x, w, preferred_element_type=jnp.float32) + b


def _depthwise_conv1d_k3(x, w, b, roll_fn):
    """Depthwise 'same' conv over time. x:(T,C), w:(3,C), b:(1,C)."""
    t = x.shape[0]
    row = jax.lax.broadcasted_iota(jnp.int32, x.shape, 0)
    x_prev = jnp.where(row > 0, roll_fn(x, 1, 0), 0.0)          # x[t-1], 0 at t=0
    x_next = jnp.where(row < t - 1, roll_fn(x, t - 1, 0), 0.0)  # x[t+1], 0 at t=T-1
    return x_prev * w[0:1, :] + x * w[1:2, :] + x_next * w[2:3, :] + b


def forward_one(x, m, getp, roll_fn):
    """One batch element of the E-Branchformer layer. x:(T,D), m:(1,T)."""
    t, d = x.shape
    scale = 1.0 / math.sqrt(DK)

    # --- macaron feed-forward (ff_scale = 0.5) ---
    h = _layer_norm(x, getp("ln_mac_g"), getp("ln_mac_b"))
    h = _linear(jnp.maximum(_linear(h, getp("mac_w1"), getp("mac_b1")), 0.0),
                getp("mac_w2"), getp("mac_b2"))
    x = x + 0.5 * h

    # --- branch 1: multi-head self-attention (heads batched on leading axis) ---
    x1 = _layer_norm(x, getp("ln_mha_g"), getp("ln_mha_b"))
    w_qkv = getp("w_qkv12")                         # (3H, D, dk)
    b_qkv = getp("b_qkv12")                         # (3H, 1, dk)
    x1_b = jnp.broadcast_to(x1[None], (3 * NUM_HEADS, t, d))
    qkv = jnp.einsum("btd,bde->bte", x1_b, w_qkv,
                     preferred_element_type=jnp.float32) + b_qkv   # (3H, T, dk)
    q = qkv[:NUM_HEADS]                             # (H, T, dk)
    k = qkv[NUM_HEADS:2 * NUM_HEADS]
    v = qkv[2 * NUM_HEADS:]
    neg = jnp.where(m > 0, 0.0, -1e30)[None]        # (1, 1, T) additive key bias
    sc = jnp.einsum("hqe,hke->hqk", q, k,
                    preferred_element_type=jnp.float32) * scale + neg
    sc_max = jnp.max(sc, axis=-1, keepdims=True)
    e = jnp.exp(sc - sc_max)
    att = e * (1.0 / jnp.sum(e, axis=-1, keepdims=True))
    att = jnp.where((m > 0)[None], att, 0.0)
    ctx = jnp.einsum("hqk,hke->hqe", att, v,
                     preferred_element_type=jnp.float32)            # (H, T, dk)
    proj = jnp.einsum("hqe,hed->hqd", ctx, getp("wo_h"),
                      preferred_element_type=jnp.float32)           # (H, T, D)
    x1 = jnp.sum(proj, axis=0) + getp("bo")

    # --- branch 2: convolutional gating MLP (gate weights pre-split host-side) ---
    x2 = _layer_norm(x, getp("ln_mlp_g"), getp("ln_mlp_b"))
    # TODO(synk): exact-erf GELU (PyTorch default) approximated with tanh form.
    x_r = jax.nn.gelu(_linear(x2, getp("cg_w1_r"), getp("cg_b1_r")),
                      approximate=True)
    x_g = jax.nn.gelu(_linear(x2, getp("cg_w1_g"), getp("cg_b1_g")),
                      approximate=True)
    x_g = _layer_norm(x_g, getp("csgu_g"), getp("csgu_b"))
    x_g = _depthwise_conv1d_k3(x_g, getp("csgu_cw"), getp("csgu_cb"), roll_fn)
    x2 = _linear(x_r * x_g, getp("cg_w2"), getp("cg_b2"))

    # --- merge (depthwise fusion conv + projection; weights split host-side,
    #     mathematically identical to concat([x1,x2]) -> dwconv -> merge_proj) ---
    y1 = x1 + _depthwise_conv1d_k3(x1, getp("fus_cw1"), getp("fus_cb1"), roll_fn)
    y2 = x2 + _depthwise_conv1d_k3(x2, getp("fus_cw2"), getp("fus_cb2"), roll_fn)
    merged = (jnp.dot(y1, getp("merge_w1"), preferred_element_type=jnp.float32)
              + jnp.dot(y2, getp("merge_w2"), preferred_element_type=jnp.float32)
              + getp("merge_b"))
    x = x + merged

    # --- final feed-forward (ff_scale = 0.5) ---
    h = _layer_norm(x, getp("ln_ff_g"), getp("ln_ff_b"))
    h = _linear(jnp.maximum(_linear(h, getp("ff_w1"), getp("ff_b1")), 0.0),
                getp("ff_w2"), getp("ff_b2"))
    x = x + 0.5 * h

    # --- final layer norm ---
    return _layer_norm(x, getp("ln_final_g"), getp("ln_final_b"))


# ----------------------------- Pallas kernel ---------------------------------
def _ebranchformer_kernel(x_ref, m_ref, ws_ref, vs_ref,
                          wqkv_ref, bqkv_ref, woh_ref, out_ref):
    def getp(name):
        if name == "w_qkv12":
            return wqkv_ref[...]
        if name == "b_qkv12":
            return bqkv_ref[...]
        if name == "wo_h":
            return woh_ref[...]
        if name in W_LAYOUT:
            off, r, c = W_LAYOUT[name]
            return ws_ref[pl.ds(off, r), pl.ds(0, c)]
        off, c = V_LAYOUT[name]
        return vs_ref[pl.ds(off, 1), pl.ds(0, c)]

    out_ref[0] = forward_one(x_ref[0], m_ref[0], getp, pltpu.roll)


def pack_params(params):
    """Pack small parameters into two lane-aligned f32 slabs (host side)."""
    ws = np.zeros((W_ROWS, LANE), np.float32)
    for name, (off, r, c) in W_LAYOUT.items():
        ws[off:off + r, :c] = np.asarray(params[name], np.float32)
    vs = np.zeros((V_ROWS, LANE), np.float32)
    for name, (off, c) in V_LAYOUT.items():
        vs[off, :c] = np.asarray(params[name], np.float32).reshape(c)
    return jnp.asarray(ws), jnp.asarray(vs)


def ebranchformer_layer(x, mask, params):
    b, t, d = x.shape
    wslab, vslab = pack_params(params)
    w_qkv12, b_qkv12, wo_h = params["w_qkv12"], params["b_qkv12"], params["wo_h"]

    in_specs = [
        pl.BlockSpec((1, t, d), lambda i: (i, 0, 0)),          # x
        pl.BlockSpec((1, 1, t), lambda i: (i, 0, 0)),          # mask
        pl.BlockSpec(wslab.shape, lambda i: (0, 0)),           # weight slab
        pl.BlockSpec(vslab.shape, lambda i: (0, 0)),           # vector slab
        pl.BlockSpec(w_qkv12.shape, lambda i: (0, 0, 0)),      # per-head QKV weights
        pl.BlockSpec(b_qkv12.shape, lambda i: (0, 0, 0)),      # per-head QKV biases
        pl.BlockSpec(wo_h.shape, lambda i: (0, 0, 0)),         # per-head out-proj
    ]
    return pl.pallas_call(
        _ebranchformer_kernel,
        out_shape=jax.ShapeDtypeStruct((b, t, d), x.dtype),
        grid=(b,),
        in_specs=in_specs,
        out_specs=pl.BlockSpec((1, t, d), lambda i: (i, 0, 0)),
        compiler_params=pltpu.CompilerParams(
            dimension_semantics=("parallel",)),      # batch -> 2 TCs on v7x
    )(x, mask, wslab, vslab, w_qkv12, b_qkv12, wo_h)


# ----------------------------- parameter init --------------------------------
def init_params(key):
    shapes = {}
    shapes.update(W_PARAM_SHAPES)
    shapes.update(V_PARAM_SHAPES)
    shapes.update(HEAD_PARAM_SHAPES)
    params = {}
    keys = jax.random.split(key, len(shapes))
    for (name, shape), k in zip(shapes.items(), keys):
        if name in _GAMMAS:
            params[name] = (jnp.ones(shape, jnp.float32)
                            + 0.01 * jax.random.normal(k, shape, jnp.float32))
        else:
            params[name] = 0.1 * jax.random.normal(k, shape, jnp.float32)
    return params


# ----------------------------------- main -------------------------------------
if __name__ == "__main__":
    assert D % NUM_HEADS == 0
    key = jax.random.PRNGKey(0)
    kx, kp = jax.random.split(key)

    params = init_params(kp)
    x = jax.random.normal(kx, (B, T, D), jnp.float32)

    lengths = jnp.array([T, T - 2], jnp.int32)                    # (#batch,)
    mask = (jnp.arange(T)[None, None, :] < lengths[:, None, None]
            ).astype(jnp.float32)                                 # (#batch, 1, time)

    out = ebranchformer_layer(x, mask, params)
    out = jax.block_until_ready(out)

    # pure-JAX reference (same math, no Pallas) for correctness
    ref = jax.vmap(
        lambda xb, mb: forward_one(xb, mb, params.__getitem__, jnp.roll)
    )(x, mask)
    np.testing.assert_allclose(np.asarray(out), np.asarray(ref),
                               rtol=1e-3, atol=1e-3)

    print("KERNEL_OK")
</pallas_src>

<mosaic_0001>
module attributes {stable_mosaic.version = 11 : i64} {
  func.func @_ebranchformer_kernel(%arg0: i32, %arg1: memref<1x8x32xf32, #tpu.memory_space<vmem>>, %arg2: memref<1x1x8xf32, #tpu.memory_space<vmem>>, %arg3: memref<376x128xf32, #tpu.memory_space<vmem>>, %arg4: memref<24x128xf32, #tpu.memory_space<vmem>>, %arg5: memref<12x32x8xf32, #tpu.memory_space<vmem>>, %arg6: memref<12x1x8xf32, #tpu.memory_space<vmem>>, %arg7: memref<4x8x32xf32, #tpu.memory_space<vmem>>, %arg8: memref<1x8x32xf32, #tpu.memory_space<vmem>>) attributes {dimension_semantics = [#tpu.dimension_semantics<parallel>], iteration_bounds = array<i64: 2>, scalar_prefetch = 0 : i64, scratch_operands = 0 : i64, tpu.core_type = #tpu.core_type<tc>, window_params = [{transform_indices = @transform_0, window_bounds = array<i64: 1, 8, 32>}, {transform_indices = @transform_1, window_bounds = array<i64: 1, 1, 8>}, {pipeline_mode = #tpu.pipeline_mode<synchronous>, transform_indices = @transform_2, window_bounds = array<i64: 376, 128>}, {pipeline_mode = #tpu.pipeline_mode<synchronous>, transform_indices = @transform_3, window_bounds = array<i64: 24, 128>}, {pipeline_mode = #tpu.pipeline_mode<synchronous>, transform_indices = @transform_4, window_bounds = array<i64: 12, 32, 8>}, {pipeline_mode = #tpu.pipeline_mode<synchronous>, transform_indices = @transform_5, window_bounds = array<i64: 12, 1, 8>}, {pipeline_mode = #tpu.pipeline_mode<synchronous>, transform_indices = @transform_6, window_bounds = array<i64: 4, 8, 32>}, {transform_indices = @transform_7, window_bounds = array<i64: 1, 8, 32>}]} {
    %c0 = arith.constant 0 : index
    %c0_0 = arith.constant 0 : index
    %c0_1 = arith.constant 0 : index
    %0 = vector.load %arg1[%c0, %c0_0, %c0_1] : memref<1x8x32xf32, #tpu.memory_space<vmem>>, vector<1x8x32xf32>
    %1 = vector.shape_cast %0 : vector<1x8x32xf32> to vector<8x32xf32>
    %c0_2 = arith.constant 0 : index
    %c0_3 = arith.constant 0 : index
    %c0_4 = arith.constant 0 : index
    %2 = vector.load %arg2[%c0_2, %c0_3, %c0_4] : memref<1x1x8xf32, #tpu.memory_space<vmem>>, vector<1x1x8xf32>
    %3 = vector.shape_cast %2 : vector<1x1x8xf32> to vector<1x8xf32>
    %c2 = arith.constant 2 : index
    %c0_5 = arith.constant 0 : index
    %4 = vector.load %arg4[%c2, %c0_5] : memref<24x128xf32, #tpu.memory_space<vmem>>, vector<1x32xf32>
    %c3 = arith.constant 3 : index
    %c0_6 = arith.constant 0 : index
    %5 = vector.load %arg4[%c3, %c0_6] : memref<24x128xf32, #tpu.memory_space<vmem>>, vector<1x32xf32>
    %cst = arith.constant dense<0.000000e+00> : vector<8xf32>
    %6 = vector.multi_reduction <add>, %1, %cst [1] : vector<8x32xf32> to vector<8xf32>
    %7 = vector.shape_cast %6 : vector<8xf32> to vector<8x1xf32>
    %cst_7 = arith.constant 3.200000e+01 : f32
    %8 = vector.broadcast %cst_7 : f32 to vector<8x1xf32>
    %9 = arith.divf %7, %8 : vector<8x1xf32>
    %10 = vector.broadcast %9 : vector<8x1xf32> to vector<8x32xf32>
    %11 = arith.subf %1, %10 : vector<8x32xf32>
    %12 = arith.mulf %11, %11 : vector<8x32xf32>
    %cst_8 = arith.constant dense<0.000000e+00> : vector<8xf32>
    %13 = vector.multi_reduction <add>, %12, %cst_8 [1] : vector<8x32xf32> to vector<8xf32>
    %14 = vector.shape_cast %13 : vector<8xf32> to vector<8x1xf32>
    %cst_9 = arith.constant 3.200000e+01 : f32
    %15 = vector.broadcast %cst_9 : f32 to vector<8x1xf32>
    %16 = arith.divf %14, %15 : vector<8x1xf32>
    %17 = vector.broadcast %9 : vector<8x1xf32> to vector<8x32xf32>
    %18 = arith.subf %1, %17 : vector<8x32xf32>
    %cst_10 = arith.constant 9.99999996E-13 : f32
    %19 = vector.broadcast %cst_10 : f32 to vector<8x1xf32>
    %20 = arith.addf %16, %19 : vector<8x1xf32>
    %21 = math.rsqrt %20 : vector<8x1xf32>
    %22 = vector.broadcast %21 : vector<8x1xf32> to vector<8x32xf32>
    %23 = arith.mulf %18, %22 : vector<8x32xf32>
    %24 = vector.broadcast %4 : vector<1x32xf32> to vector<8x32xf32>
    %25 = arith.mulf %23, %24 : vector<8x32xf32>
    %26 = vector.broadcast %5 : vector<1x32xf32> to vector<8x32xf32>
    %27 = arith.addf %25, %26 : vector<8x32xf32>
    %c0_11 = arith.constant 0 : index
    %c0_12 = arith.constant 0 : index
    %28 = vector.load %arg3[%c0_11, %c0_12] : memref<376x128xf32, #tpu.memory_space<vmem>>, vector<32x64xf32>
    %c0_13 = arith.constant 0 : index
    %c0_14 = arith.constant 0 : index
    %29 = vector.load %arg4[%c0_13, %c0_14] : memref<24x128xf32, #tpu.memory_space<vmem>>, vector<1x64xf32>
    %cst_15 = arith.constant dense<0.000000e+00> : vector<8x64xf32>
    %30 = tpu.matmul %27, %28, %cst_15 {dimension_numbers = #tpu.dot_dimension_numbers<[1], [0], [0], [1], [0, 0, 1, 1], [], []>} : vector<8x32xf32>, vector<32x64xf32>, vector<8x64xf32> -> vector<8x64xf32>
    %31 = vector.broadcast %29 : vector<1x64xf32> to vector<8x64xf32>
    %32 = arith.addf %30, %31 : vector<8x64xf32>
    %cst_16 = arith.constant 0.000000e+00 : f32
    %33 = vector.broadcast %cst_16 : f32 to vector<8x64xf32>
    %34 = arith.maximumf %32, %33 : vector<8x64xf32>
    %c32 = arith.constant 32 : index
    %c0_17 = arith.constant 0 : index
    %35 = vector.load %arg3[%c32, %c0_17] : memref<376x128xf32, #tpu.memory_space<vmem>>, vector<64x32xf32>
    %c1 = arith.constant 1 : index
    %c0_18 = arith.constant 0 : index
    %36 = vector.load %arg4[%c1, %c0_18] : memref<24x128xf32, #tpu.memory_space<vmem>>, vector<1x32xf32>
    %cst_19 = arith.constant dense<0.000000e+00> : vector<8x32xf32>
    %37 = tpu.matmul %34, %35, %cst_19 {dimension_numbers = #tpu.dot_dimension_numbers<[1], [0], [0], [1], [0, 0, 1, 1], [], []>} : vector<8x64xf32>, vector<64x32xf32>, vector<8x32xf32> -> vector<8x32xf32>
    %38 = vector.broadcast %36 : vector<1x32xf32> to vector<8x32xf32>
    %39 = arith.addf %37, %38 : vector<8x32xf32>
    %cst_20 = arith.constant 5.000000e-01 : f32
    %40 = vector.broadcast %cst_20 : f32 to vector<8x32xf32>
    %41 = arith.mulf %40, %39 : vector<8x32xf32>
    %42 = arith.addf %1, %41 : vector<8x32xf32>
    %c4 = arith.constant 4 : index
    %c0_21 = arith.constant 0 : index
    %43 = vector.load %arg4[%c4, %c0_21] : memref<24x128xf32, #tpu.memory_space<vmem>>, vector<1x32xf32>
    %c5 = arith.constant 5 : index
    %c0_22 = arith.constant 0 : index
    %44 = vector.load %arg4[%c5, %c0_22] : memref<24x128xf32, #tpu.memory_space<vmem>>, vector<1x32xf32>
    %cst_23 = arith.constant dense<0.000000e+00> : vector<8xf32>
    %45 = vector.multi_reduction <add>, %42, %cst_23 [1] : vector<8x32xf32> to vector<8xf32>
    %46 = vector.shape_cast %45 : vector<8xf32> to vector<8x1xf32>
    %cst_24 = arith.constant 3.200000e+01 : f32
    %47 = vector.broadcast %cst_24 : f32 to vector<8x1xf32>
    %48 = arith.divf %46, %47 : vector<8x1xf32>
    %49 = vector.broadcast %48 : vector<8x1xf32> to vector<8x32xf32>
    %50 = arith.subf %42, %49 : vector<8x32xf32>
    %51 = arith.mulf %50, %50 : vector<8x32xf32>
    %cst_25 = arith.constant dense<0.000000e+00> : vector<8xf32>
    %52 = vector.multi_reduction <add>, %51, %cst_25 [1] : vector<8x32xf32> to vector<8xf32>
    %53 = vector.shape_cast %52 : vector<8xf32> to vector<8x1xf32>
    %cst_26 = arith.constant 3.200000e+01 : f32
    %54 = vector.broadcast %cst_26 : f32 to vector<8x1xf32>
    %55 = arith.divf %53, %54 : vector<8x1xf32>
    %56 = vector.broadcast %48 : vector<8x1xf32> to vector<8x32xf32>
    %57 = arith.subf %42, %56 : vector<8x32xf32>
    %cst_27 = arith.constant 9.99999996E-13 : f32
    %58 = vector.broadcast %cst_27 : f32 to vector<8x1xf32>
    %59 = arith.addf %55, %58 : vector<8x1xf32>
    %60 = math.rsqrt %59 : vector<8x1xf32>
    %61 = vector.broadcast %60 : vector<8x1xf32> to vector<8x32xf32>
    %62 = arith.mulf %57, %61 : vector<8x32xf32>
    %63 = vector.broadcast %43 : vector<1x32xf32> to vector<8x32xf32>
    %64 = arith.mulf %62, %63 : vector<8x32xf32>
    %65 = vector.broadcast %44 : vector<1x32xf32> to vector<8x32xf32>
    %66 = arith.addf %64, %65 : vector<8x32xf32>
    %c0_28 = arith.constant 0 : index
    %c0_29 = arith.constant 0 : index
    %c0_30 = arith.constant 0 : index
    %67 = vector.load %arg5[%c0_28, %c0_29, %c0_30] : memref<12x32x8xf32, #tpu.memory_space<vmem>>, vector<12x32x8xf32>
    %c0_31 = arith.constant 0 : index
    %c0_32 = arith.constant 0 : index
    %c0_33 = arith.constant 0 : index
    %68 = vector.load %arg6[%c0_31, %c0_32, %c0_33] : memref<12x1x8xf32, #tpu.memory_space<vmem>>, vector<12x1x8xf32>
    %69 = vector.shape_cast %66 : vector<8x32xf32> to vector<1x8x32xf32>
    %70 = vector.shape_cast %69 : vector<1x8x32xf32> to vector<1x8x32xf32>
    %71 = vector.broadcast %70 : vector<1x8x32xf32> to vector<12x8x32xf32>
    "tpu.trace_start"() <{level = 10 : i32, message = "btd,bde->bte"}> : () -> ()
    %cst_34 = arith.constant dense<0.000000e+00> : vector<12x8x8xf32>
    %72 = tpu.matmul %71, %67, %cst_34 {dimension_numbers = #tpu.dot_dimension_numbers<[2], [1], [1], [2], [0, 0, 0, 1, 1, 2], [0], [0]>} : vector<12x8x32xf32>, vector<12x32x8xf32>, vector<12x8x8xf32> -> vector<12x8x8xf32>
    "tpu.trace_stop"() : () -> ()
    %73 = vector.broadcast %68 : vector<12x1x8xf32> to vector<12x8x8xf32>
    %74 = arith.addf %72, %73 : vector<12x8x8xf32>
    %75 = vector.extract_strided_slice %74 {offsets = [0, 0, 0], sizes = [4, 8, 8], strides = [1, 1, 1]} : vector<12x8x8xf32> to vector<4x8x8xf32>
    %76 = vector.extract_strided_slice %74 {offsets = [4, 0, 0], sizes = [4, 8, 8], strides = [1, 1, 1]} : vector<12x8x8xf32> to vector<4x8x8xf32>
    %77 = vector.extract_strided_slice %74 {offsets = [8, 0, 0], sizes = [4, 8, 8], strides = [1, 1, 1]} : vector<12x8x8xf32> to vector<4x8x8xf32>
    %cst_35 = arith.constant 0.000000e+00 : f32
    %78 = vector.broadcast %cst_35 : f32 to vector<1x8xf32>
    %79 = arith.cmpf ogt, %3, %78 : vector<1x8xf32>
    %cst_36 = arith.constant 0.000000e+00 : f32
    %cst_37 = arith.constant -1.000000e+30 : f32
    %80 = vector.broadcast %cst_36 : f32 to vector<1x8xf32>
    %81 = vector.broadcast %cst_37 : f32 to vector<1x8xf32>
    %82 = arith.select %79, %80, %81 : vector<1x8xi1>, vector<1x8xf32>
    %83 = vector.shape_cast %82 : vector<1x8xf32> to vector<1x1x8xf32>
    "tpu.trace_start"() <{level = 10 : i32, message = "hqe,hke->hqk"}> : () -> ()
    %cst_38 = arith.constant dense<0.000000e+00> : vector<4x8x8xf32>
    %84 = tpu.matmul %75, %76, %cst_38 {dimension_numbers = #tpu.dot_dimension_numbers<[2], [2], [1], [1], [0, 0, 0, 1, 1, 1], [0], [0]>} : vector<4x8x8xf32>, vector<4x8x8xf32>, vector<4x8x8xf32> -> vector<4x8x8xf32>
    "tpu.trace_stop"() : () -> ()
    %cst_39 = arith.constant 0.353553385 : f32
    %85 = vector.broadcast %cst_39 : f32 to vector<4x8x8xf32>
    %86 = arith.mulf %84, %85 : vector<4x8x8xf32>
    %87 = vector.broadcast %83 : vector<1x1x8xf32> to vector<4x8x8xf32>
    %88 = arith.addf %86, %87 : vector<4x8x8xf32>
    %cst_40 = arith.constant dense<0xFF800000> : vector<4x8xf32>
    %89 = vector.multi_reduction <maximumf>, %88, %cst_40 [2] : vector<4x8x8xf32> to vector<4x8xf32>
    %90 = vector.shape_cast %89 : vector<4x8xf32> to vector<4x8x1xf32>
    %91 = vector.broadcast %90 : vector<4x8x1xf32> to vector<4x8x8xf32>
    %92 = arith.subf %88, %91 : vector<4x8x8xf32>
    %93 = math.exp %92 : vector<4x8x8xf32>
    %cst_41 = arith.constant dense<0.000000e+00> : vector<4x8xf32>
    %94 = vector.multi_reduction <add>, %93, %cst_41 [2] : vector<4x8x8xf32> to vector<4x8xf32>
    %95 = vector.shape_cast %94 : vector<4x8xf32> to vector<4x8x1xf32>
    %cst_42 = arith.constant 1.000000e+00 : f32
    %96 = vector.broadcast %cst_42 : f32 to vector<4x8x1xf32>
    %97 = arith.divf %96, %95 : vector<4x8x1xf32>
    %98 = vector.broadcast %97 : vector<4x8x1xf32> to vector<4x8x8xf32>
    %99 = arith.mulf %93, %98 : vector<4x8x8xf32>
    %cst_43 = arith.constant 0.000000e+00 : f32
    %100 = vector.broadcast %cst_43 : f32 to vector<1x8xf32>
    %101 = arith.cmpf ogt, %3, %100 : vector<1x8xf32>
    %102 = vector.shape_cast %101 : vector<1x8xi1> to vector<1x1x8xi1>
    %cst_44 = arith.constant 0.000000e+00 : f32
    %103 = vector.shape_cast %102 : vector<1x1x8xi1> to vector<1x1x8xi1>
    %104 = vector.broadcast %103 : vector<1x1x8xi1> to vector<4x8x8xi1>
    %105 = vector.broadcast %cst_44 : f32 to vector<4x8x8xf32>
    %106 = arith.select %104, %99, %105 : vector<4x8x8xi1>, vector<4x8x8xf32>
    "tpu.trace_start"() <{level = 10 : i32, message = "hqk,hke->hqe"}> : () -> ()
    %cst_45 = arith.constant dense<0.000000e+00> : vector<4x8x8xf32>
    %107 = tpu.matmul %106, %77, %cst_45 {dimension_numbers = #tpu.dot_dimension_numbers<[2], [1], [1], [2], [0, 0, 0, 1, 1, 2], [0], [0]>} : vector<4x8x8xf32>, vector<4x8x8xf32>, vector<4x8x8xf32> -> vector<4x8x8xf32>
    "tpu.trace_stop"() : () -> ()
    %c0_46 = arith.constant 0 : index
    %c0_47 = arith.constant 0 : index
    %c0_48 = arith.constant 0 : index
    %108 = vector.load %arg7[%c0_46, %c0_47, %c0_48] : memref<4x8x32xf32, #tpu.memory_space<vmem>>, vector<4x8x32xf32>
    "tpu.trace_start"() <{level = 10 : i32, message = "hqe,hed->hqd"}> : () -> ()
    %cst_49 = arith.constant dense<0.000000e+00> : vector<4x8x32xf32>
    %109 = tpu.matmul %107, %108, %cst_49 {dimension_numbers = #tpu.dot_dimension_numbers<[2], [1], [1], [2], [0, 0, 0, 1, 1, 2], [0], [0]>} : vector<4x8x8xf32>, vector<4x8x32xf32>, vector<4x8x32xf32> -> vector<4x8x32xf32>
    "tpu.trace_stop"() : () -> ()
    %cst_50 = arith.constant dense<0.000000e+00> : vector<8x32xf32>
    %110 = vector.multi_reduction <add>, %109, %cst_50 [0] : vector<4x8x32xf32> to vector<8x32xf32>
    %c6 = arith.constant 6 : index
    %c0_51 = arith.constant 0 : index
    %111 = vector.load %arg4[%c6, %c0_51] : memref<24x128xf32, #tpu.memory_space<vmem>>, vector<1x32xf32>
    %112 = vector.broadcast %111 : vector<1x32xf32> to vector<8x32xf32>
    %113 = arith.addf %110, %112 : vector<8x32xf32>
    %c7 = arith.constant 7 : index
    %c0_52 = arith.constant 0 : index
    %114 = vector.load %arg4[%c7, %c0_52] : memref<24x128xf32, #tpu.memory_space<vmem>>, vector<1x32xf32>
    %c8 = arith.constant 8 : index
    %c0_53 = arith.constant 0 : index
    %115 = vector.load %arg4[%c8, %c0_53] : memref<24x128xf32, #tpu.memory_space<vmem>>, vector<1x32xf32>
    %cst_54 = arith.constant dense<0.000000e+00> : vector<8xf32>
    %116 = vector.multi_reduction <add>, %42, %cst_54 [1] : vector<8x32xf32> to vector<8xf32>
    %117 = vector.shape_cast %116 : vector<8xf32> to vector<8x1xf32>
    %cst_55 = arith.constant 3.200000e+01 : f32
    %118 = vector.broadcast %cst_55 : f32 to vector<8x1xf32>
    %119 = arith.divf %117, %118 : vector<8x1xf32>
    %120 = vector.broadcast %119 : vector<8x1xf32> to vector<8x32xf32>
    %121 = arith.subf %42, %120 : vector<8x32xf32>
    %122 = arith.mulf %121, %121 : vector<8x32xf32>
    %cst_56 = arith.constant dense<0.000000e+00> : vector<8xf32>
    %123 = vector.multi_reduction <add>, %122, %cst_56 [1] : vector<8x32xf32> to vector<8xf32>
    %124 = vector.shape_cast %123 : vector<8xf32> to vector<8x1xf32>
    %cst_57 = arith.constant 3.200000e+01 : f32
    %125 = vector.broadcast %cst_57 : f32 to vector<8x1xf32>
    %126 = arith.divf %124, %125 : vector<8x1xf32>
    %127 = vector.broadcast %119 : vector<8x1xf32> to vector<8x32xf32>
    %128 = arith.subf %42, %127 : vector<8x32xf32>
    %cst_58 = arith.constant 9.99999996E-13 : f32
    %129 = vector.broadcast %cst_58 : f32 to vector<8x1xf32>
    %130 = arith.addf %126, %129 : vector<8x1xf32>
    %131 = math.rsqrt %130 : vector<8x1xf32>
    %132 = vector.broadcast %131 : vector<8x1xf32> to vector<8x32xf32>
    %133 = arith.mulf %128, %132 : vector<8x32xf32>
    %134 = vector.broadcast %114 : vector<1x32xf32> to vector<8x32xf32>
    %135 = arith.mulf %133, %134 : vector<8x32xf32>
    %136 = vector.broadcast %115 : vector<1x32xf32> to vector<8x32xf32>
    %137 = arith.addf %135, %136 : vector<8x32xf32>
    %c96 = arith.constant 96 : index
    %c0_59 = arith.constant 0 : index
    %138 = vector.load %arg3[%c96, %c0_59] : memref<376x128xf32, #tpu.memory_space<vmem>>, vector<32x32xf32>
    %c9 = arith.constant 9 : index
    %c0_60 = arith.constant 0 : index
    %139 = vector.load %arg4[%c9, %c0_60] : memref<24x128xf32, #tpu.memory_space<vmem>>, vector<1x32xf32>
    %cst_61 = arith.constant dense<0.000000e+00> : vector<8x32xf32>
    %140 = tpu.matmul %137, %138, %cst_61 {dimension_numbers = #tpu.dot_dimension_numbers<[1], [0], [0], [1], [0, 0, 1, 1], [], []>} : vector<8x32xf32>, vector<32x32xf32>, vector<8x32xf32> -> vector<8x32xf32>
    %141 = vector.broadcast %139 : vector<1x32xf32> to vector<8x32xf32>
    %142 = arith.addf %140, %141 : vector<8x32xf32>
    %143 = arith.mulf %142, %142 : vector<8x32xf32>
    %144 = arith.mulf %142, %143 : vector<8x32xf32>
    %cst_62 = arith.constant 4.471500e-02 : f32
    %145 = vector.broadcast %cst_62 : f32 to vector<8x32xf32>
    %146 = arith.mulf %145, %144 : vector<8x32xf32>
    %147 = arith.addf %142, %146 : vector<8x32xf32>
    %cst_63 = arith.constant 0.797884583 : f32
    %148 = vector.broadcast %cst_63 : f32 to vector<8x32xf32>
    %149 = arith.mulf %148, %147 : vector<8x32xf32>
    %150 = math.tanh %149 : vector<8x32xf32>
    %cst_64 = arith.constant 1.000000e+00 : f32
    %151 = vector.broadcast %cst_64 : f32 to vector<8x32xf32>
    %152 = arith.addf %151, %150 : vector<8x32xf32>
    %cst_65 = arith.constant 5.000000e-01 : f32
    %153 = vector.broadcast %cst_65 : f32 to vector<8x32xf32>
    %154 = arith.mulf %153, %152 : vector<8x32xf32>
    %155 = arith.mulf %142, %154 : vector<8x32xf32>
    %c128 = arith.constant 128 : index
    %c0_66 = arith.constant 0 : index
    %156 = vector.load %arg3[%c128, %c0_66] : memref<376x128xf32, #tpu.memory_space<vmem>>, vector<32x32xf32>
    %c10 = arith.constant 10 : index
    %c0_67 = arith.constant 0 : index
    %157 = vector.load %arg4[%c10, %c0_67] : memref<24x128xf32, #tpu.memory_space<vmem>>, vector<1x32xf32>
    %cst_68 = arith.constant dense<0.000000e+00> : vector<8x32xf32>
    %158 = tpu.matmul %137, %156, %cst_68 {dimension_numbers = #tpu.dot_dimension_numbers<[1], [0], [0], [1], [0, 0, 1, 1], [], []>} : vector<8x32xf32>, vector<32x32xf32>, vector<8x32xf32> -> vector<8x32xf32>
    %159 = vector.broadcast %157 : vector<1x32xf32> to vector<8x32xf32>
    %160 = arith.addf %158, %159 : vector<8x32xf32>
    %161 = arith.mulf %160, %160 : vector<8x32xf32>
    %162 = arith.mulf %160, %161 : vector<8x32xf32>
    %cst_69 = arith.constant 4.471500e-02 : f32
    %163 = vector.broadcast %cst_69 : f32 to vector<8x32xf32>
    %164 = arith.mulf %163, %162 : vector<8x32xf32>
    %165 = arith.addf %160, %164 : vector<8x32xf32>
    %cst_70 = arith.constant 0.797884583 : f32
    %166 = vector.broadcast %cst_70 : f32 to vector<8x32xf32>
    %167 = arith.mulf %166, %165 : vector<8x32xf32>
    %168 = math.tanh %167 : vector<8x32xf32>
    %cst_71 = arith.constant 1.000000e+00 : f32
    %169 = vector.broadcast %cst_71 : f32 to vector<8x32xf32>
    %170 = arith.addf %169, %168 : vector<8x32xf32>
    %cst_72 = arith.constant 5.000000e-01 : f32
    %171 = vector.broadcast %cst_72 : f32 to vector<8x32xf32>
    %172 = arith.mulf %171, %170 : vector<8x32xf32>
    %173 = arith.mulf %160, %172 : vector<8x32xf32>
    %c11 = arith.constant 11 : index
    %c0_73 = arith.constant 0 : index
    %174 = vector.load %arg4[%c11, %c0_73] : memref<24x128xf32, #tpu.memory_space<vmem>>, vector<1x32xf32>
    %c12 = arith.constant 12 : index
    %c0_74 = arith.constant 0 : index
    %175 = vector.load %arg4[%c12, %c0_74] : memref<24x128xf32, #tpu.memory_space<vmem>>, vector<1x32xf32>
    %cst_75 = arith.constant dense<0.000000e+00> : vector<8xf32>
    %176 = vector.multi_reduction <add>, %173, %cst_75 [1] : vector<8x32xf32> to vector<8xf32>
    %177 = vector.shape_cast %176 : vector<8xf32> to vector<8x1xf32>
    %cst_76 = arith.constant 3.200000e+01 : f32
    %178 = vector.broadcast %cst_76 : f32 to vector<8x1xf32>
    %179 = arith.divf %177, %178 : vector<8x1xf32>
    %180 = vector.broadcast %179 : vector<8x1xf32> to vector<8x32xf32>
    %181 = arith.subf %173, %180 : vector<8x32xf32>
    %182 = arith.mulf %181, %181 : vector<8x32xf32>
    %cst_77 = arith.constant dense<0.000000e+00> : vector<8xf32>
    %183 = vector.multi_reduction <add>, %182, %cst_77 [1] : vector<8x32xf32> to vector<8xf32>
    %184 = vector.shape_cast %183 : vector<8xf32> to vector<8x1xf32>
    %cst_78 = arith.constant 3.200000e+01 : f32
    %185 = vector.broadcast %cst_78 : f32 to vector<8x1xf32>
    %186 = arith.divf %184, %185 : vector<8x1xf32>
    %187 = vector.broadcast %179 : vector<8x1xf32> to vector<8x32xf32>
    %188 = arith.subf %173, %187 : vector<8x32xf32>
    %cst_79 = arith.constant 9.99999996E-13 : f32
    %189 = vector.broadcast %cst_79 : f32 to vector<8x1xf32>
    %190 = arith.addf %186, %189 : vector<8x1xf32>
    %191 = math.rsqrt %190 : vector<8x1xf32>
    %192 = vector.broadcast %191 : vector<8x1xf32> to vector<8x32xf32>
    %193 = arith.mulf %188, %192 : vector<8x32xf32>
    %194 = vector.broadcast %174 : vector<1x32xf32> to vector<8x32xf32>
    %195 = arith.mulf %193, %194 : vector<8x32xf32>
    %196 = vector.broadcast %175 : vector<1x32xf32> to vector<8x32xf32>
    %197 = arith.addf %195, %196 : vector<8x32xf32>
    %c160 = arith.constant 160 : index
    %c0_80 = arith.constant 0 : index
    %198 = vector.load %arg3[%c160, %c0_80] : memref<376x128xf32, #tpu.memory_space<vmem>>, vector<3x32xf32>
    %c13 = arith.constant 13 : index
    %c0_81 = arith.constant 0 : index
    %199 = vector.load %arg4[%c13, %c0_81] : memref<24x128xf32, #tpu.memory_space<vmem>>, vector<1x32xf32>
    %200 = tpu.iota {dimensions = array<i32: 0>} : vector<8x32xi32>
    %c0_i32 = arith.constant 0 : i32
    %201 = vector.broadcast %c0_i32 : i32 to vector<8x32xi32>
    %202 = arith.cmpi sgt, %200, %201 : vector<8x32xi32>
    %c1_i32 = arith.constant 1 : i32
    %203 = tpu.dynamic_rotate %197 by %c1_i32 dim 0 : vector<8x32xf32>, i32 -> vector<8x32xf32>
    %cst_82 = arith.constant 0.000000e+00 : f32
    %204 = vector.broadcast %cst_82 : f32 to vector<8x32xf32>
    %205 = arith.select %202, %203, %204 : vector<8x32xi1>, vector<8x32xf32>
    %c7_i32 = arith.constant 7 : i32
    %206 = vector.broadcast %c7_i32 : i32 to vector<8x32xi32>
    %207 = arith.cmpi slt, %200, %206 : vector<8x32xi32>
    %c7_i32_83 = arith.constant 7 : i32
    %208 = tpu.dynamic_rotate %197 by %c7_i32_83 dim 0 : vector<8x32xf32>, i32 -> vector<8x32xf32>
    %cst_84 = arith.constant 0.000000e+00 : f32
    %209 = vector.broadcast %cst_84 : f32 to vector<8x32xf32>
    %210 = arith.select %207, %208, %209 : vector<8x32xi1>, vector<8x32xf32>
    %211 = vector.extract_strided_slice %198 {offsets = [0, 0], sizes = [1, 32], strides = [1, 1]} : vector<3x32xf32> to vector<1x32xf32>
    %212 = vector.broadcast %211 : vector<1x32xf32> to vector<8x32xf32>
    %213 = arith.mulf %205, %212 : vector<8x32xf32>
    %214 = vector.extract_strided_slice %198 {offsets = [1, 0], sizes = [1, 32], strides = [1, 1]} : vector<3x32xf32> to vector<1x32xf32>
    %215 = vector.broadcast %214 : vector<1x32xf32> to vector<8x32xf32>
    %216 = arith.mulf %197, %215 : vector<8x32xf32>
    %217 = arith.addf %213, %216 : vector<8x32xf32>
    %218 = vector.extract_strided_slice %198 {offsets = [2, 0], sizes = [1, 32], strides = [1, 1]} : vector<3x32xf32> to vector<1x32xf32>
    %219 = vector.broadcast %218 : vector<1x32xf32> to vector<8x32xf32>
    %220 = arith.mulf %210, %219 : vector<8x32xf32>
    %221 = arith.addf %217, %220 : vector<8x32xf32>
    %222 = vector.broadcast %199 : vector<1x32xf32> to vector<8x32xf32>
    %223 = arith.addf %221, %222 : vector<8x32xf32>
    %224 = arith.mulf %155, %223 : vector<8x32xf32>
    %c168 = arith.constant 168 : index
    %c0_85 = arith.constant 0 : index
    %225 = vector.load %arg3[%c168, %c0_85] : memref<376x128xf32, #tpu.memory_space<vmem>>, vector<32x32xf32>
    %c14 = arith.constant 14 : index
    %c0_86 = arith.constant 0 : index
    %226 = vector.load %arg4[%c14, %c0_86] : memref<24x128xf32, #tpu.memory_space<vmem>>, vector<1x32xf32>
    %cst_87 = arith.constant dense<0.000000e+00> : vector<8x32xf32>
    %227 = tpu.matmul %224, %225, %cst_87 {dimension_numbers = #tpu.dot_dimension_numbers<[1], [0], [0], [1], [0, 0, 1, 1], [], []>} : vector<8x32xf32>, vector<32x32xf32>, vector<8x32xf32> -> vector<8x32xf32>
    %228 = vector.broadcast %226 : vector<1x32xf32> to vector<8x32xf32>
    %229 = arith.addf %227, %228 : vector<8x32xf32>
    %c200 = arith.constant 200 : index
    %c0_88 = arith.constant 0 : index
    %230 = vector.load %arg3[%c200, %c0_88] : memref<376x128xf32, #tpu.memory_space<vmem>>, vector<3x32xf32>
    %c15 = arith.constant 15 : index
    %c0_89 = arith.constant 0 : index
    %231 = vector.load %arg4[%c15, %c0_89] : memref<24x128xf32, #tpu.memory_space<vmem>>, vector<1x32xf32>
    %232 = tpu.iota {dimensions = array<i32: 0>} : vector<8x32xi32>
    %c0_i32_90 = arith.constant 0 : i32
    %233 = vector.broadcast %c0_i32_90 : i32 to vector<8x32xi32>
    %234 = arith.cmpi sgt, %232, %233 : vector<8x32xi32>
    %c1_i32_91 = arith.constant 1 : i32
    %235 = tpu.dynamic_rotate %113 by %c1_i32_91 dim 0 : vector<8x32xf32>, i32 -> vector<8x32xf32>
    %cst_92 = arith.constant 0.000000e+00 : f32
    %236 = vector.broadcast %cst_92 : f32 to vector<8x32xf32>
    %237 = arith.select %234, %235, %236 : vector<8x32xi1>, vector<8x32xf32>
    %c7_i32_93 = arith.constant 7 : i32
    %238 = vector.broadcast %c7_i32_93 : i32 to vector<8x32xi32>
    %239 = arith.cmpi slt, %232, %238 : vector<8x32xi32>
    %c7_i32_94 = arith.constant 7 : i32
    %240 = tpu.dynamic_rotate %113 by %c7_i32_94 dim 0 : vector<8x32xf32>, i32 -> vector<8x32xf32>
    %cst_95 = arith.constant 0.000000e+00 : f32
    %241 = vector.broadcast %cst_95 : f32 to vector<8x32xf32>
    %242 = arith.select %239, %240, %241 : vector<8x32xi1>, vector<8x32xf32>
    %243 = vector.extract_strided_slice %230 {offsets = [0, 0], sizes = [1, 32], strides = [1, 1]} : vector<3x32xf32> to vector<1x32xf32>
    %244 = vector.broadcast %243 : vector<1x32xf32> to vector<8x32xf32>
    %245 = arith.mulf %237, %244 : vector<8x32xf32>
    %246 = vector.extract_strided_slice %230 {offsets = [1, 0], sizes = [1, 32], strides = [1, 1]} : vector<3x32xf32> to vector<1x32xf32>
    %247 = vector.broadcast %246 : vector<1x32xf32> to vector<8x32xf32>
    %248 = arith.mulf %113, %247 : vector<8x32xf32>
    %249 = arith.addf %245, %248 : vector<8x32xf32>
    %250 = vector.extract_strided_slice %230 {offsets = [2, 0], sizes = [1, 32], strides = [1, 1]} : vector<3x32xf32> to vector<1x32xf32>
    %251 = vector.broadcast %250 : vector<1x32xf32> to vector<8x32xf32>
    %252 = arith.mulf %242, %251 : vector<8x32xf32>
    %253 = arith.addf %249, %252 : vector<8x32xf32>
    %254 = vector.broadcast %231 : vector<1x32xf32> to vector<8x32xf32>
    %255 = arith.addf %253, %254 : vector<8x32xf32>
    %256 = arith.addf %113, %255 : vector<8x32xf32>
    %c208 = arith.constant 208 : index
    %c0_96 = arith.constant 0 : index
    %257 = vector.load %arg3[%c208, %c0_96] : memref<376x128xf32, #tpu.memory_space<vmem>>, vector<3x32xf32>
    %c16 = arith.constant 16 : index
    %c0_97 = arith.constant 0 : index
    %258 = vector.load %arg4[%c16, %c0_97] : memref<24x128xf32, #tpu.memory_space<vmem>>, vector<1x32xf32>
    %259 = tpu.iota {dimensions = array<i32: 0>} : vector<8x32xi32>
    %c0_i32_98 = arith.constant 0 : i32
    %260 = vector.broadcast %c0_i32_98 : i32 to vector<8x32xi32>
    %261 = arith.cmpi sgt, %259, %260 : vector<8x32xi32>
    %c1_i32_99 = arith.constant 1 : i32
    %262 = tpu.dynamic_rotate %229 by %c1_i32_99 dim 0 : vector<8x32xf32>, i32 -> vector<8x32xf32>
    %cst_100 = arith.constant 0.000000e+00 : f32
    %263 = vector.broadcast %cst_100 : f32 to vector<8x32xf32>
    %264 = arith.select %261, %262, %263 : vector<8x32xi1>, vector<8x32xf32>
    %c7_i32_101 = arith.constant 7 : i32
    %265 = vector.broadcast %c7_i32_101 : i32 to vector<8x32xi32>
    %266 = arith.cmpi slt, %259, %265 : vector<8x32xi32>
    %c7_i32_102 = arith.constant 7 : i32
    %267 = tpu.dynamic_rotate %229 by %c7_i32_102 dim 0 : vector<8x32xf32>, i32 -> vector<8x32xf32>
    %cst_103 = arith.constant 0.000000e+00 : f32
    %268 = vector.broadcast %cst_103 : f32 to vector<8x32xf32>
    %269 = arith.select %266, %267, %268 : vector<8x32xi1>, vector<8x32xf32>
    %270 = vector.extract_strided_slice %257 {offsets = [0, 0], sizes = [1, 32], strides = [1, 1]} : vector<3x32xf32> to vector<1x32xf32>
    %271 = vector.broadcast %270 : vector<1x32xf32> to vector<8x32xf32>
    %272 = arith.mulf %264, %271 : vector<8x32xf32>
    %273 = vector.extract_strided_slice %257 {offsets = [1, 0], sizes = [1, 32], strides = [1, 1]} : vector<3x32xf32> to vector<1x32xf32>
    %274 = vector.broadcast %273 : vector<1x32xf32> to vector<8x32xf32>
    %275 = arith.mulf %229, %274 : vector<8x32xf32>
    %276 = arith.addf %272, %275 : vector<8x32xf32>
    %277 = vector.extract_strided_slice %257 {offsets = [2, 0], sizes = [1, 32], strides = [1, 1]} : vector<3x32xf32> to vector<1x32xf32>
    %278 = vector.broadcast %277 : vector<1x32xf32> to vector<8x32xf32>
    %279 = arith.mulf %269, %278 : vector<8x32xf32>
    %280 = arith.addf %276, %279 : vector<8x32xf32>
    %281 = vector.broadcast %258 : vector<1x32xf32> to vector<8x32xf32>
    %282 = arith.addf %280, %281 : vector<8x32xf32>
    %283 = arith.addf %229, %282 : vector<8x32xf32>
    %c216 = arith.constant 216 : index
    %c0_104 = arith.constant 0 : index
    %284 = vector.load %arg3[%c216, %c0_104] : memref<376x128xf32, #tpu.memory_space<vmem>>, vector<32x32xf32>
    %cst_105 = arith.constant dense<0.000000e+00> : vector<8x32xf32>
    %285 = tpu.matmul %256, %284, %cst_105 {dimension_numbers = #tpu.dot_dimension_numbers<[1], [0], [0], [1], [0, 0, 1, 1], [], []>} : vector<8x32xf32>, vector<32x32xf32>, vector<8x32xf32> -> vector<8x32xf32>
    %c248 = arith.constant 248 : index
    %c0_106 = arith.constant 0 : index
    %286 = vector.load %arg3[%c248, %c0_106] : memref<376x128xf32, #tpu.memory_space<vmem>>, vector<32x32xf32>
    %cst_107 = arith.constant dense<0.000000e+00> : vector<8x32xf32>
    %287 = tpu.matmul %283, %286, %cst_107 {dimension_numbers = #tpu.dot_dimension_numbers<[1], [0], [0], [1], [0, 0, 1, 1], [], []>} : vector<8x32xf32>, vector<32x32xf32>, vector<8x32xf32> -> vector<8x32xf32>
    %288 = arith.addf %285, %287 : vector<8x32xf32>
    %c17 = arith.constant 17 : index
    %c0_108 = arith.constant 0 : index
    %289 = vector.load %arg4[%c17, %c0_108] : memref<24x128xf32, #tpu.memory_space<vmem>>, vector<1x32xf32>
    %290 = vector.broadcast %289 : vector<1x32xf32> to vector<8x32xf32>
    %291 = arith.addf %288, %290 : vector<8x32xf32>
    %292 = arith.addf %42, %291 : vector<8x32xf32>
    %c20 = arith.constant 20 : index
    %c0_109 = arith.constant 0 : index
    %293 = vector.load %arg4[%c20, %c0_109] : memref<24x128xf32, #tpu.memory_space<vmem>>, vector<1x32xf32>
    %c21 = arith.constant 21 : index
    %c0_110 = arith.constant 0 : index
    %294 = vector.load %arg4[%c21, %c0_110] : memref<24x128xf32, #tpu.memory_space<vmem>>, vector<1x32xf32>
    %cst_111 = arith.constant dense<0.000000e+00> : vector<8xf32>
    %295 = vector.multi_reduction <add>, %292, %cst_111 [1] : vector<8x32xf32> to vector<8xf32>
    %296 = vector.shape_cast %295 : vector<8xf32> to vector<8x1xf32>
    %cst_112 = arith.constant 3.200000e+01 : f32
    %297 = vector.broadcast %cst_112 : f32 to vector<8x1xf32>
    %298 = arith.divf %296, %297 : vector<8x1xf32>
    %299 = vector.broadcast %298 : vector<8x1xf32> to vector<8x32xf32>
    %300 = arith.subf %292, %299 : vector<8x32xf32>
    %301 = arith.mulf %300, %300 : vector<8x32xf32>
    %cst_113 = arith.constant dense<0.000000e+00> : vector<8xf32>
    %302 = vector.multi_reduction <add>, %301, %cst_113 [1] : vector<8x32xf32> to vector<8xf32>
    %303 = vector.shape_cast %302 : vector<8xf32> to vector<8x1xf32>
    %cst_114 = arith.constant 3.200000e+01 : f32
    %304 = vector.broadcast %cst_114 : f32 to vector<8x1xf32>
    %305 = arith.divf %303, %304 : vector<8x1xf32>
    %306 = vector.broadcast %298 : vector<8x1xf32> to vector<8x32xf32>
    %307 = arith.subf %292, %306 : vector<8x32xf32>
    %cst_115 = arith.constant 9.99999996E-13 : f32
    %308 = vector.broadcast %cst_115 : f32 to vector<8x1xf32>
    %309 = arith.addf %305, %308 : vector<8x1xf32>
    %310 = math.rsqrt %309 : vector<8x1xf32>
    %311 = vector.broadcast %310 : vector<8x1xf32> to vector<8x32xf32>
    %312 = arith.mulf %307, %311 : vector<8x32xf32>
    %313 = vector.broadcast %293 : vector<1x32xf32> to vector<8x32xf32>
    %314 = arith.mulf %312, %313 : vector<8x32xf32>
    %315 = vector.broadcast %294 : vector<1x32xf32> to vector<8x32xf32>
    %316 = arith.addf %314, %315 : vector<8x32xf32>
    %c280 = arith.constant 280 : index
    %c0_116 = arith.constant 0 : index
    %317 = vector.load %arg3[%c280, %c0_116] : memref<376x128xf32, #tpu.memory_space<vmem>>, vector<32x64xf32>
    %c18 = arith.constant 18 : index
    %c0_117 = arith.constant 0 : index
    %318 = vector.load %arg4[%c18, %c0_117] : memref<24x128xf32, #tpu.memory_space<vmem>>, vector<1x64xf32>
    %cst_118 = arith.constant dense<0.000000e+00> : vector<8x64xf32>
    %319 = tpu.matmul %316, %317, %cst_118 {dimension_numbers = #tpu.dot_dimension_numbers<[1], [0], [0], [1], [0, 0, 1, 1], [], []>} : vector<8x32xf32>, vector<32x64xf32>, vector<8x64xf32> -> vector<8x64xf32>
    %320 = vector.broadcast %318 : vector<1x64xf32> to vector<8x64xf32>
    %321 = arith.addf %319, %320 : vector<8x64xf32>
    %cst_119 = arith.constant 0.000000e+00 : f32
    %322 = vector.broadcast %cst_119 : f32 to vector<8x64xf32>
    %323 = arith.maximumf %321, %322 : vector<8x64xf32>
    %c312 = arith.constant 312 : index
    %c0_120 = arith.constant 0 : index
    %324 = vector.load %arg3[%c312, %c0_120] : memref<376x128xf32, #tpu.memory_space<vmem>>, vector<64x32xf32>
    %c19 = arith.constant 19 : index
    %c0_121 = arith.constant 0 : index
    %325 = vector.load %arg4[%c19, %c0_121] : memref<24x128xf32, #tpu.memory_space<vmem>>, vector<1x32xf32>
    %cst_122 = arith.constant dense<0.000000e+00> : vector<8x32xf32>
    %326 = tpu.matmul %323, %324, %cst_122 {dimension_numbers = #tpu.dot_dimension_numbers<[1], [0], [0], [1], [0, 0, 1, 1], [], []>} : vector<8x64xf32>, vector<64x32xf32>, vector<8x32xf32> -> vector<8x32xf32>
    %327 = vector.broadcast %325 : vector<1x32xf32> to vector<8x32xf32>
    %328 = arith.addf %326, %327 : vector<8x32xf32>
    %cst_123 = arith.constant 5.000000e-01 : f32
    %329 = vector.broadcast %cst_123 : f32 to vector<8x32xf32>
    %330 = arith.mulf %329, %328 : vector<8x32xf32>
    %331 = arith.addf %292, %330 : vector<8x32xf32>
    %c22 = arith.constant 22 : index
    %c0_124 = arith.constant 0 : index
    %332 = vector.load %arg4[%c22, %c0_124] : memref<24x128xf32, #tpu.memory_space<vmem>>, vector<1x32xf32>
    %c23 = arith.constant 23 : index
    %c0_125 = arith.constant 0 : index
    %333 = vector.load %arg4[%c23, %c0_125] : memref<24x128xf32, #tpu.memory_space<vmem>>, vector<1x32xf32>
    %cst_126 = arith.constant dense<0.000000e+00> : vector<8xf32>
    %334 = vector.multi_reduction <add>, %331, %cst_126 [1] : vector<8x32xf32> to vector<8xf32>
    %335 = vector.shape_cast %334 : vector<8xf32> to vector<8x1xf32>
    %cst_127 = arith.constant 3.200000e+01 : f32
    %336 = vector.broadcast %cst_127 : f32 to vector<8x1xf32>
    %337 = arith.divf %335, %336 : vector<8x1xf32>
    %338 = vector.broadcast %337 : vector<8x1xf32> to vector<8x32xf32>
    %339 = arith.subf %331, %338 : vector<8x32xf32>
    %340 = arith.mulf %339, %339 : vector<8x32xf32>
    %cst_128 = arith.constant dense<0.000000e+00> : vector<8xf32>
    %341 = vector.multi_reduction <add>, %340, %cst_128 [1] : vector<8x32xf32> to vector<8xf32>
    %342 = vector.shape_cast %341 : vector<8xf32> to vector<8x1xf32>
    %cst_129 = arith.constant 3.200000e+01 : f32
    %343 = vector.broadcast %cst_129 : f32 to vector<8x1xf32>
    %344 = arith.divf %342, %343 : vector<8x1xf32>
    %345 = vector.broadcast %337 : vector<8x1xf32> to vector<8x32xf32>
    %346 = arith.subf %331, %345 : vector<8x32xf32>
    %cst_130 = arith.constant 9.99999996E-13 : f32
    %347 = vector.broadcast %cst_130 : f32 to vector<8x1xf32>
    %348 = arith.addf %344, %347 : vector<8x1xf32>
    %349 = math.rsqrt %348 : vector<8x1xf32>
    %350 = vector.broadcast %349 : vector<8x1xf32> to vector<8x32xf32>
    %351 = arith.mulf %346, %350 : vector<8x32xf32>
    %352 = vector.broadcast %332 : vector<1x32xf32> to vector<8x32xf32>
    %353 = arith.mulf %351, %352 : vector<8x32xf32>
    %354 = vector.broadcast %333 : vector<1x32xf32> to vector<8x32xf32>
    %355 = arith.addf %353, %354 : vector<8x32xf32>
    %c0_131 = arith.constant 0 : index
    %c0_132 = arith.constant 0 : index
    %c0_133 = arith.constant 0 : index
    %356 = vector.load %arg8[%c0_131, %c0_132, %c0_133] : memref<1x8x32xf32, #tpu.memory_space<vmem>>, vector<1x8x32xf32>
    %357 = vector.shape_cast %356 : vector<1x8x32xf32> to vector<8x32xf32>
    %358 = vector.shape_cast %355 : vector<8x32xf32> to vector<1x8x32xf32>
    tpu.vector_store %arg8[%c0_131, %c0_132, %c0_133], %358 {strides = array<i32>} : memref<1x8x32xf32, #tpu.memory_space<vmem>>, vector<1x8x32xf32>,
    return
  }
  func.func @transform_0(%arg0: i32) -> (i32, i32, i32) {
    %c0_i32 = arith.constant 0 : i32
    %c0_i32_0 = arith.constant 0 : i32
    %c0_i32_1 = arith.constant 0 : i32
    return %arg0, %c0_i32, %c0_i32_0 : i32, i32, i32
  }
  func.func @transform_1(%arg0: i32) -> (i32, i32, i32) {
    %c0_i32 = arith.constant 0 : i32
    %c0_i32_0 = arith.constant 0 : i32
    %c0_i32_1 = arith.constant 0 : i32
    return %arg0, %c0_i32, %c0_i32_0 : i32, i32, i32
  }
  func.func @transform_2(%arg0: i32) -> (i32, i32) {
    %c0_i32 = arith.constant 0 : i32
    %c0_i32_0 = arith.constant 0 : i32
    %c0_i32_1 = arith.constant 0 : i32
    return %c0_i32, %c0_i32_0 : i32, i32
  }
  func.func @transform_3(%arg0: i32) -> (i32, i32) {
    %c0_i32 = arith.constant 0 : i32
    %c0_i32_0 = arith.constant 0 : i32
    %c0_i32_1 = arith.constant 0 : i32
    return %c0_i32, %c0_i32_0 : i32, i32
  }
  func.func @transform_4(%arg0: i32) -> (i32, i32, i32) {
    %c0_i32 = arith.constant 0 : i32
    %c0_i32_0 = arith.constant 0 : i32
    %c0_i32_1 = arith.constant 0 : i32
    %c0_i32_2 = arith.constant 0 : i32
    return %c0_i32, %c0_i32_0, %c0_i32_1 : i32, i32, i32
  }
  func.func @transform_5(%arg0: i32) -> (i32, i32, i32) {
    %c0_i32 = arith.constant 0 : i32
    %c0_i32_0 = arith.constant 0 : i32
    %c0_i32_1 = arith.constant 0 : i32
    %c0_i32_2 = arith.constant 0 : i32
    return %c0_i32, %c0_i32_0, %c0_i32_1 : i32, i32, i32
  }
  func.func @transform_6(%arg0: i32) -> (i32, i32, i32) {
    %c0_i32 = arith.constant 0 : i32
    %c0_i32_0 = arith.constant 0 : i32
    %c0_i32_1 = arith.constant 0 : i32
    %c0_i32_2 = arith.constant 0 : i32
    return %c0_i32, %c0_i32_0, %c0_i32_1 : i32, i32, i32
  }
  func.func @transform_7(%arg0: i32) -> (i32, i32, i32) {
    %c0_i32 = arith.constant 0 : i32
    %c0_i32_0 = arith.constant 0 : i32
    %c0_i32_1 = arith.constant 0 : i32
    return %arg0, %c0_i32, %c0_i32_0 : i32, i32, i32
  }
}

</mosaic_0001>

<llo_original>
// kernel: tpu_custom_call.1
$region0: #{tpu_custom_call.1}
  #allocation0 [shape = 'u32[]', space=smem, size = 0x4, offset = 0x4, fixed_abs, tag = 'smem constant byte address 0x4 - core index']
  #allocation1 [shape = 'u32[144,128]{1,0:T(1,128)}', space=vmem, size = 0x12000, scoped, tag = 'internal scratch']
  %s0 = inlined_call_operand.vmem [shape: f32[2,8,32], index: 0, kind: input, shape index: {}]
  %s1 = inlined_call_operand.vmem [shape: f32[2,1,8], index: 1, kind: input, shape index: {}]
  %s2 = inlined_call_operand.vmem [shape: f32[376,128], index: 2, kind: input, shape index: {}]
  %s3 = inlined_call_operand.vmem [shape: f32[24,128], index: 3, kind: input, shape index: {}]
  %s4 = inlined_call_operand.vmem [shape: f32[12,32,8], index: 4, kind: input, shape index: {}]
  %s5 = inlined_call_operand.vmem [shape: f32[12,1,8], index: 5, kind: input, shape index: {}]
  %s6 = inlined_call_operand.vmem [shape: f32[4,8,32], index: 6, kind: input, shape index: {}]
  %s7 = inlined_call_operand.hbm [shape: f32[2,8,32], index: 7, kind: output, shape index: {}]
  %s8 = sld [smem:[#allocation0]]
  $region61: #{tpu_custom_call.1} parent=0
    _
  %s10 = ssub.s32 1, %s8
  %s11 = scalar_select 0, %s10, %s8
  $region1: #{tpu_custom_call.1} parent=0
    #allocation2 [shape = 'u8[8192]{0}', space=vmem, size = 0x2000, scoped, tag = 'output window, operand 0']
    #allocation3 [shape = 's32[2]{0}', space=sflag, size = 0x8, scoped, tag = 'scoped memory for tpu_custom_call.1']
    %12 = vsyncpa [#allocation3], 0
    %s13 = scalar_lea.sflag [#allocation3], 1
    %14 = vsyncpa %s13, 0
    loop: start=0, step=1, limit=4
    $region2: #{tpu_custom_call.1} parent=1 // loop_pre_header
      _
    $region3: #{tpu_custom_call.1} parent=1 // loop_header
      %s16 = sphi 0, %s20
      %p17 = scmp.ge.s32.totalorder %s16, 4
      %s26 = sphi 0, %s28
      %s29 = sphi 0, %s26
      %s30 = sphi 0, %s29
      %s46 = sphi 0, %s30
      %s52 = sphi 0, %s54
      %s55 = sphi 0, %s52
      %s56 = sphi 0, %s55
      %s72 = sphi 0, %s56
      %s76 = sphi 0, %s76
      %s78 = sphi 0, %s76
      %s79 = sphi 0, %s78
      %s93 = sphi 0, %s79
      %s97 = sphi 0, %s97
      %s99 = sphi 0, %s97
      %s100 = sphi 0, %s99
      %s114 = sphi 0, %s100
      %s118 = sphi 0, %s118
      %s120 = sphi 0, %s118
      %s121 = sphi 0, %s120
      %s135 = sphi 0, %s121
      %s139 = sphi 0, %s139
      %s141 = sphi 0, %s139
      %s142 = sphi 0, %s141
      %s156 = sphi 0, %s142
      %s160 = sphi 0, %s160
      %s162 = sphi 0, %s160
      %s163 = sphi 0, %s162
      %s177 = sphi 0, %s163
      %s183 = sphi 0, %s185
      %s186 = sphi 0, %s183
      %s187 = sphi 0, %s186
      %s203 = sphi 0, %s187
    $region4: #{tpu_custom_call.1} parent=1 // loop_header_branch
      %19 = sbr.rel (%p17) target = $region8
    $region5: #{tpu_custom_call.1} parent=1 // loop_body
      %s21 = ssub.s32 %s16, 1
      %s22 = ssub.s32 %s16, 2
      %s23 = sadd.s32 %s16, 1
      %s24 = ssub.s32 %s16, %s23
      %p25 = scmp.eq.s32.totalorder %s24, 0
      %s27 = sadd.s32 %s26, 1
      %s28 = scalar_select %p25, %s26, %s27
      %p31 = pneg %p25
      %p32 = scmp.eq.s32.totalorder %s16, 1
      %p33 = por %p31, %p32
      %p34 = scmp.ne.s32.totalorder %s26, %s29
      %p35 = scmp.eq.s32.totalorder %s16, 0
      %p36 = por %p34, %p35
      %p37 = scmp.ne.s32.totalorder %s26, %s29
      %p38 = scmp.eq.s32.totalorder %s21, 1
      %p39 = por %p37, %p38
      %p40 = scmp.ne.s32.totalorder %s29, %s30
      %p41 = scmp.eq.s32.totalorder %s21, 0
      %p42 = por %p40, %p41
      %p43 = scmp.ne.s32.totalorder %s29, %s30
      %p44 = scmp.eq.s32.totalorder %s22, 1
      %p45 = por %p43, %p44
      %p47 = scmp.ne.s32.totalorder %s30, %s46
      %p48 = scmp.eq.s32.totalorder %s22, 0
      %p49 = por %p47, %p48
      %s50 = ssub.s32 %s16, %s23
      %p51 = scmp.eq.s32.totalorder %s50, 0
      %s53 = sadd.s32 %s52, 1
      %s54 = scalar_select %p51, %s52, %s53
      %p57 = pneg %p51
      %p58 = scmp.eq.s32.totalorder %s16, 1
      %p59 = por %p57, %p58
      %p60 = scmp.ne.s32.totalorder %s52, %s55
      %p61 = scmp.eq.s32.totalorder %s16, 0
      %p62 = por %p60, %p61
      %p63 = scmp.ne.s32.totalorder %s52, %s55
      %p64 = scmp.eq.s32.totalorder %s21, 1
      %p65 = por %p63, %p64
      %p66 = scmp.ne.s32.totalorder %s55, %s56
      %p67 = scmp.eq.s32.totalorder %s21, 0
      %p68 = por %p66, %p67
      %p69 = scmp.ne.s32.totalorder %s55, %s56
      %p70 = scmp.eq.s32.totalorder %s22, 1
      %p71 = por %p69, %p70
      %p73 = scmp.ne.s32.totalorder %s56, %s72
      %p74 = scmp.eq.s32.totalorder %s22, 0
      %p75 = por %p73, %p74
      %s77 = sadd.s32 %s76, 1
      %p80 = scmp.eq.s32.totalorder %s16, 1
      %p81 = scmp.ne.s32.totalorder %s76, %s78
      %p82 = scmp.eq.s32.totalorder %s16, 0
      %p83 = por %p81, %p82
      %p84 = scmp.ne.s32.totalorder %s76, %s78
      %p85 = scmp.eq.s32.totalorder %s21, 1
      %p86 = por %p84, %p85
      %p87 = scmp.ne.s32.totalorder %s78, %s79
      %p88 = scmp.eq.s32.totalorder %s21, 0
      %p89 = por %p87, %p88
      %p90 = scmp.ne.s32.totalorder %s78, %s79
      %p91 = scmp.eq.s32.totalorder %s22, 1
      %p92 = por %p90, %p91
      %p94 = scmp.ne.s32.totalorder %s79, %s93
      %p95 = scmp.eq.s32.totalorder %s22, 0
      %p96 = por %p94, %p95
      %s98 = sadd.s32 %s97, 1
      %p101 = scmp.eq.s32.totalorder %s16, 1
      %p102 = scmp.ne.s32.totalorder %s97, %s99
      %p103 = scmp.eq.s32.totalorder %s16, 0
      %p104 = por %p102, %p103
      %p105 = scmp.ne.s32.totalorder %s97, %s99
      %p106 = scmp.eq.s32.totalorder %s21, 1
      %p107 = por %p105, %p106
      %p108 = scmp.ne.s32.totalorder %s99, %s100
      %p109 = scmp.eq.s32.totalorder %s21, 0
      %p110 = por %p108, %p109
      %p111 = scmp.ne.s32.totalorder %s99, %s100
      %p112 = scmp.eq.s32.totalorder %s22, 1
      %p113 = por %p111, %p112
      %p115 = scmp.ne.s32.totalorder %s100, %s114
      %p116 = scmp.eq.s32.totalorder %s22, 0
      %p117 = por %p115, %p116
      %s119 = sadd.s32 %s118, 1
      %p122 = scmp.eq.s32.totalorder %s16, 1
      %p123 = scmp.ne.s32.totalorder %s118, %s120
      %p124 = scmp.eq.s32.totalorder %s16, 0
      %p125 = por %p123, %p124
      %p126 = scmp.ne.s32.totalorder %s118, %s120
      %p127 = scmp.eq.s32.totalorder %s21, 1
      %p128 = por %p126, %p127
      %p129 = scmp.ne.s32.totalorder %s120, %s121
      %p130 = scmp.eq.s32.totalorder %s21, 0
      %p131 = por %p129, %p130
      %p132 = scmp.ne.s32.totalorder %s120, %s121
      %p133 = scmp.eq.s32.totalorder %s22, 1
      %p134 = por %p132, %p133
      %p136 = scmp.ne.s32.totalorder %s121, %s135
      %p137 = scmp.eq.s32.totalorder %s22, 0
      %p138 = por %p136, %p137
      %s140 = sadd.s32 %s139, 1
      %p143 = scmp.eq.s32.totalorder %s16, 1
      %p144 = scmp.ne.s32.totalorder %s139, %s141
      %p145 = scmp.eq.s32.totalorder %s16, 0
      %p146 = por %p144, %p145
      %p147 = scmp.ne.s32.totalorder %s139, %s141
      %p148 = scmp.eq.s32.totalorder %s21, 1
      %p149 = por %p147, %p148
      %p150 = scmp.ne.s32.totalorder %s141, %s142
      %p151 = scmp.eq.s32.totalorder %s21, 0
      %p152 = por %p150, %p151
      %p153 = scmp.ne.s32.totalorder %s141, %s142
      %p154 = scmp.eq.s32.totalorder %s22, 1
      %p155 = por %p153, %p154
      %p157 = scmp.ne.s32.totalorder %s142, %s156
      %p158 = scmp.eq.s32.totalorder %s22, 0
      %p159 = por %p157, %p158
      %s161 = sadd.s32 %s160, 1
      %p164 = scmp.eq.s32.totalorder %s16, 1
      %p165 = scmp.ne.s32.totalorder %s160, %s162
      %p166 = scmp.eq.s32.totalorder %s16, 0
      %p167 = por %p165, %p166
      %p168 = scmp.ne.s32.totalorder %s160, %s162
      %p169 = scmp.eq.s32.totalorder %s21, 1
      %p170 = por %p168, %p169
      %p171 = scmp.ne.s32.totalorder %s162, %s163
      %p172 = scmp.eq.s32.totalorder %s21, 0
      %p173 = por %p171, %p172
      %p174 = scmp.ne.s32.totalorder %s162, %s163
      %p175 = scmp.eq.s32.totalorder %s22, 1
      %p176 = por %p174, %p175
      %p178 = scmp.ne.s32.totalorder %s163, %s177
      %p179 = scmp.eq.s32.totalorder %s22, 0
      %p180 = por %p178, %p179
      %s181 = ssub.s32 %s16, %s23
      %p182 = scmp.eq.s32.totalorder %s181, 0
      %s184 = sadd.s32 %s183, 1
      %s185 = scalar_select %p182, %s183, %s184
      %p188 = pneg %p182
      %p189 = scmp.eq.s32.totalorder %s16, 1
      %p190 = por %p188, %p189
      %p191 = scmp.ne.s32.totalorder %s183, %s186
      %p192 = scmp.eq.s32.totalorder %s16, 0
      %p193 = por %p191, %p192
      %p194 = scmp.ne.s32.totalorder %s183, %s186
      %p195 = scmp.eq.s32.totalorder %s21, 1
      %p196 = por %p194, %p195
      %p197 = scmp.ne.s32.totalorder %s186, %s187
      %p198 = scmp.eq.s32.totalorder %s21, 0
      %p199 = por %p197, %p198
      %p200 = scmp.ne.s32.totalorder %s186, %s187
      %p201 = scmp.eq.s32.totalorder %s22, 1
      %p202 = por %p200, %p201
      %p204 = scmp.ne.s32.totalorder %s187, %s203
      %p205 = scmp.eq.s32.totalorder %s22, 0
      %p206 = por %p204, %p205
      %p207 = scmp.le.s32.totalorder 1, %s16
      %p208 = scmp.lt.s32.totalorder %s16, 3
      %p209 = pnand %p207, %p208
      %p210 = pneg %p209
      // Predicated region
      $region9: #{tpu_custom_call.1} parent=5 // pred_check
        _
      $region10: #{tpu_custom_call.1} parent=5 // pred_check_branch
        %212 = sbr.rel (%p209) target = $region12
      $region11: #{tpu_custom_call.1} parent=5 // pred_region
        %s213 = ssub.s32 %s16, 1
        // Predicated region
        $region13: #{tpu_custom_call.1} parent=11 // pred_check
          %p214 = pneg %p89
        $region14: #{tpu_custom_call.1} parent=11 // pred_check_branch
          %216 = sbr.rel (%p214) target = $region16
        $region15: #{tpu_custom_call.1} parent=11 // pred_region
          _
        $region16: #{tpu_custom_call.1} parent=11 // pred_fallthru
          _
        // Predicated region
        $region17: #{tpu_custom_call.1} parent=11 // pred_check
          %p217 = pneg %p110
        $region18: #{tpu_custom_call.1} parent=11 // pred_check_branch
          %219 = sbr.rel (%p217) target = $region20
        $region19: #{tpu_custom_call.1} parent=11 // pred_region
          _
        $region20: #{tpu_custom_call.1} parent=11 // pred_fallthru
          _
        // Predicated region
        $region21: #{tpu_custom_call.1} parent=11 // pred_check
          %p220 = pneg %p131
        $region22: #{tpu_custom_call.1} parent=11 // pred_check_branch
          %222 = sbr.rel (%p220) target = $region24
        $region23: #{tpu_custom_call.1} parent=11 // pred_region
          _
        $region24: #{tpu_custom_call.1} parent=11 // pred_fallthru
          _
        // Predicated region
        $region25: #{tpu_custom_call.1} parent=11 // pred_check
          %p223 = pneg %p152
        $region26: #{tpu_custom_call.1} parent=11 // pred_check_branch
          %225 = sbr.rel (%p223) target = $region28
        $region27: #{tpu_custom_call.1} parent=11 // pred_region
          _
        $region28: #{tpu_custom_call.1} parent=11 // pred_fallthru
          _
        // Predicated region
        $region29: #{tpu_custom_call.1} parent=11 // pred_check
          %p226 = pneg %p173
        $region30: #{tpu_custom_call.1} parent=11 // pred_check_branch
          %228 = sbr.rel (%p226) target = $region32
        $region31: #{tpu_custom_call.1} parent=11 // pred_region
          _
        $region32: #{tpu_custom_call.1} parent=11 // pred_fallthru
          _
      $region12: #{tpu_custom_call.1} parent=5 // pred_fallthru
        _
      %p229 = scmp.lt.s32.totalorder %s16, 2
      // Predicated region
      $region33: #{tpu_custom_call.1} parent=5 // pred_check
        %p230 = pneg %p229
      $region34: #{tpu_custom_call.1} parent=5 // pred_check_branch
        %232 = sbr.rel (%p230) target = $region36
      $region35: #{tpu_custom_call.1} parent=5 // pred_region
        // Predicated region
        $region37: #{tpu_custom_call.1} parent=35 // pred_check
          %p233 = pneg %p36
        $region38: #{tpu_custom_call.1} parent=35 // pred_check_branch
          %235 = sbr.rel (%p233) target = $region40
        $region39: #{tpu_custom_call.1} parent=35 // pred_region
          %p236 = scmp.lt.s32.totalorder %s16, 1
          %s237 = scalar_select %p236, %s16, 1
          %s238 = smul.addr %s237, 8
          %s239 = scalar_lea.vmem %s0, %s238
        $region40: #{tpu_custom_call.1} parent=35 // pred_fallthru
          _
        // Predicated region
        $region41: #{tpu_custom_call.1} parent=35 // pred_check
          %p240 = pneg %p62
        $region42: #{tpu_custom_call.1} parent=35 // pred_check_branch
          %242 = sbr.rel (%p240) target = $region44
        $region43: #{tpu_custom_call.1} parent=35 // pred_region
          %p243 = scmp.lt.s32.totalorder %s16, 1
          %s244 = scalar_select %p243, %s16, 1
          %s245 = scalar_lea.vmem %s1, %s244
        $region44: #{tpu_custom_call.1} parent=35 // pred_fallthru
          _
      $region36: #{tpu_custom_call.1} parent=5 // pred_fallthru
        _
      %p246 = scmp.le.s32.totalorder 1, %s16
      %p247 = scmp.lt.s32.totalorder %s16, 3
      %p248 = pnand %p246, %p247
      %p249 = pneg %p248
      // Predicated region
      $region45: #{tpu_custom_call.1} parent=5 // pred_check
        _
      $region46: #{tpu_custom_call.1} parent=5 // pred_check_branch
        %251 = sbr.rel (%p248) target = $region48
      $region47: #{tpu_custom_call.1} parent=5 // pred_region
        %s252 = ssub.s32 %s16, 1
        %p253 = scmp.lt.s32.totalorder %s21, 1
        %s254 = scalar_select %p253, %s21, 1
        %s255 = smul.addr %s254, 8
        %s256 = scalar_lea.vmem %s0, %s255
        %p257 = pneg %p42
        %p258 = pneg %p39
        %p259 = scmp.lt.s32.totalorder %s21, 1
        %s260 = scalar_select %p259, %s21, 1
        %s261 = scalar_lea.vmem %s1, %s260
        %p262 = pneg %p68
        %p263 = pneg %p65
        %p264 = pneg %p89
        %p265 = pneg %p86
        %p266 = pneg %p110
        %p267 = pneg %p107
        %p268 = pneg %p131
        %p269 = pneg %p128
        %p270 = pneg %p152
        %p271 = pneg %p149
        %p272 = pneg %p173
        %p273 = pneg %p170
        %p274 = pneg %p199
        %p275 = pneg %p196
        %s276 = sand.u32 %s186, 1
        %s277 = scalar_lea.sflag [#allocation3], %s276
        %s278 = sand.u32 %s186, 1
        %s279 = smul.addr %s278, 8
        %s280 = scalar_lea.vmem [#allocation2], %s279
        %p281 = scmp.lt.s32.totalorder %s21, 1
        %s282 = scalar_select %p281, %s21, 1
        %s283 = smul.addr %s282, 8
        %s284 = scalar_lea.vmem %s0, %s283
        %p285 = scmp.lt.s32.totalorder %s21, 1
        %s286 = scalar_select %p285, %s21, 1
        %s287 = scalar_lea.vmem %s1, %s286
        %v288 = vld [vmem:[%s284] sm:$0xff]
        %v289 = vld [vmem:[%s287] sm:$0x1]
        %v290 = vld [vmem:[%s3 + $0x2] sm:$0x1]
        %v291 = vld [vmem:[%s3 + $0x3] sm:$0x1]
        %vm292 = vcmask 261120
        %v293 = vsel %vm292, %v288, 0.0
        %294 = vadd.xlane.f32.xlu0 %v293
        %v295 = vpop.xlane.xlu0 %294
        %v296 = vrcp.pop 32.0
        %v297 = vmul.f32 %v295, %v296
        %v298 = vsub.f32 %v288, %v297
        %v299 = vmul.f32 %v298, %v298
        %v300 = vsel %vm292, %v299, 0.0
        %301 = vadd.xlane.f32.xlu0 %v300
        %v302 = vpop.xlane.xlu0 %301
        %v303 = vmul.f32 %v302, %v296
        %v304 = vadd.f32 %v303, 1e-12
        %v305 = vrsqrt.pop %v304
        %v306 = vmul.f32 %v298, %v305
        %v307 = vlaneseq
        %v308 = vshrl.u32 %v307, 7
        %v309 = vsub.s32 0, %v308
        %v310 = vrot.slane %v290, %v309
        %v311 = vmul.f32 %v306, %v310
        %v312 = vlaneseq
        %v313 = vshrl.u32 %v312, 7
        %v314 = vsub.s32 0, %v313
        %v315 = vrot.slane %v291, %v314
        %v316 = vadd.f32 %v311, %v315
        %v317 = vld [vmem:[%s2] sm:$0xff]
        %v318 = vld [vmem:[%s2 + $0x8] sm:$0xff]
        %v319 = vld [vmem:[%s2 + $0x10] sm:$0xff]
        %v320 = vld [vmem:[%s2 + $0x18] sm:$0xff]
        %v321 = vld [vmem:[%s3] sm:$0x1]
        %v322 = vlaneseq
        %v323 = vshrl.u32 %v322, 7
        %v324 = vsub.s32 0, %v323
        %v325 = vrot.slane %v321, %v324
        %v327 = vsel %vm292, %v316, 0
        %329 = vmatprep.subr.mxu0 0.0
        %330 = vmatpush1.msra.mxu0 %v317
        %331 = vmatprep.subr.mxu0 0.0
        %332 = vmatpush1.msra.mxu0 %v318
        %333 = vmatprep.subr.mxu0 0.0
        %334 = vmatpush1.msra.mxu0 %v319
        %335 = vmatprep.subr.mxu0 0.0
        %336 = vmatpush1.msra.mxu0 %v320
        %337 = vmatprep.subr.mxu0 0.0
        %338 = vmatpush1.msra.mxu0 0.0
        %339 = vmatprep.subr.mxu0 0.0
        %340 = vmatpush1.msra.mxu0 0.0
        %341 = vmatprep.subr.mxu0 0.0
        %342 = vmatpush1.msra.mxu0 0.0
        %343 = vmatprep.subr.mxu0 0.0
        %344 = vmatpush1.msra.mxu0 0.0
        %345 = vmatprep.subr.mxu0 0.0
        %346 = vmatpush1.msra.mxu0 0.0
        %347 = vmatprep.subr.mxu0 0.0
        %348 = vmatpush1.msra.mxu0 0.0
        %349 = vmatprep.subr.mxu0 0.0
        %350 = vmatpush1.msra.mxu0 0.0
        %351 = vmatprep.subr.mxu0 0.0
        %352 = vmatpush1.msra.mxu0 0.0
        %353 = vmatprep.subr.mxu0 0.0
        %354 = vmatpush1.msra.mxu0 0.0
        %355 = vmatprep.subr.mxu0 0.0
        %356 = vmatpush1.msra.mxu0 0.0
        %357 = vmatprep.subr.mxu0 0.0
        %358 = vmatpush1.msra.mxu0 0.0
        %359 = vmatprep.subr.mxu0 0.0
        %360 = vmatpush1.msra.mxu0 0.0
        %361 = vmatprep.subr.mxu0 0.0
        %362 = vmatpush1.msra.mxu0 0.0
        %363 = vmatprep.subr.mxu0 0.0
        %364 = vmatpush1.msra.mxu0 0.0
        %365 = vmatprep.subr.mxu0 0.0
        %366 = vmatpush1.msra.mxu0 0.0
        %367 = vmatprep.subr.mxu0 0.0
        %368 = vmatpush1.msra.mxu0 0.0
        %369 = vmatprep.subr.mxu0 0.0
        %370 = vmatpush1.msra.mxu0 0.0
        %371 = vmatprep.subr.mxu0 0.0
        %372 = vmatpush1.msra.mxu0 0.0
        %373 = vmatprep.subr.mxu0 0.0
        %374 = vmatpush1.msra.mxu0 0.0
        %375 = vmatprep.subr.mxu0 0.0
        %376 = vmatpush1.msra.mxu0 0.0
        %377 = vmatprep.subr.mxu0 0.0
        %378 = vmatpush1.msra.mxu0 0.0
        %379 = vmatprep.subr.mxu0 0.0
        %380 = vmatpush1.msra.mxu0 0.0
        %381 = vmatprep.subr.mxu0 0.0
        %382 = vmatpush1.msra.mxu0 0.0
        %383 = vmatprep.subr.mxu0 0.0
        %384 = vmatpush1.msra.mxu0 0.0
        %385 = vmatprep.subr.mxu0 0.0
        %386 = vmatpush1.msra.mxu0 0.0
        %387 = vmatprep.subr.mxu0 0.0
        %388 = vmatpush1.msra.mxu0 0.0
        %389 = vmatprep.subr.mxu0 0.0
        %390 = vmatpush1.msra.mxu0 0.0
        %391 = vmatprep.subr.mxu0 0.0
        %392 = vmatpush1.msra.mxu0 0.0
        %393 = vmatprep.mubr.f32.mxu0 0.0
        %394 = vmatmul.mubr.f32.gmra.mrb[0].mxu0 %v327
        %v395 = vpop.f32.mrb[0].mxu0
        %v396 = vadd.f32 %v325, %v395
        %v397 = vpop.f32.mrb[0].mxu0
        %398 = vdwg.mxu0
        %v399 = vmax.f32 %v396, 0.0
        %v400 = vld [vmem:[%s2 + $0x20] sm:$0xff]
        %v401 = vld [vmem:[%s2 + $0x28] sm:$0xff]
        %v402 = vld [vmem:[%s2 + $0x30] sm:$0xff]
        %v403 = vld [vmem:[%s2 + $0x38] sm:$0xff]
        %v404 = vld [vmem:[%s2 + $0x40] sm:$0xff]
        %v405 = vld [vmem:[%s2 + $0x48] sm:$0xff]
        %v406 = vld [vmem:[%s2 + $0x50] sm:$0xff]
        %v407 = vld [vmem:[%s2 + $0x58] sm:$0xff]
        %v408 = vld [vmem:[%s3 + $0x1] sm:$0x1]
        %v409 = vlaneseq
        %v410 = vshrl.u32 %v409, 7
        %v411 = vsub.s32 0, %v410
        %v412 = vrot.slane %v408, %v411
        %vm413 = vcmask 523264
        %v415 = vsel %vm413, %v399, 0
        %417 = vmatprep.subr.mxu0 0.0
        %418 = vmatpush1.msra.mxu0 %v400
        %419 = vmatprep.subr.mxu0 0.0
        %420 = vmatpush1.msra.mxu0 %v401
        %421 = vmatprep.subr.mxu0 0.0
        %422 = vmatpush1.msra.mxu0 %v402
        %423 = vmatprep.subr.mxu0 0.0
        %424 = vmatpush1.msra.mxu0 %v403
        %425 = vmatprep.subr.mxu0 0.0
        %426 = vmatpush1.msra.mxu0 %v404
        %427 = vmatprep.subr.mxu0 0.0
        %428 = vmatpush1.msra.mxu0 %v405
        %429 = vmatprep.subr.mxu0 0.0
        %430 = vmatpush1.msra.mxu0 %v406
        %431 = vmatprep.subr.mxu0 0.0
        %432 = vmatpush1.msra.mxu0 %v407
        %433 = vmatprep.subr.mxu0 0.0
        %434 = vmatpush1.msra.mxu0 0.0
        %435 = vmatprep.subr.mxu0 0.0
        %436 = vmatpush1.msra.mxu0 0.0
        %437 = vmatprep.subr.mxu0 0.0
        %438 = vmatpush1.msra.mxu0 0.0
        %439 = vmatprep.subr.mxu0 0.0
        %440 = vmatpush1.msra.mxu0 0.0
        %441 = vmatprep.subr.mxu0 0.0
        %442 = vmatpush1.msra.mxu0 0.0
        %443 = vmatprep.subr.mxu0 0.0
        %444 = vmatpush1.msra.mxu0 0.0
        %445 = vmatprep.subr.mxu0 0.0
        %446 = vmatpush1.msra.mxu0 0.0
        %447 = vmatprep.subr.mxu0 0.0
        %448 = vmatpush1.msra.mxu0 0.0
        %449 = vmatprep.subr.mxu0 0.0
        %450 = vmatpush1.msra.mxu0 0.0
        %451 = vmatprep.subr.mxu0 0.0
        %452 = vmatpush1.msra.mxu0 0.0
        %453 = vmatprep.subr.mxu0 0.0
        %454 = vmatpush1.msra.mxu0 0.0
        %455 = vmatprep.subr.mxu0 0.0
        %456 = vmatpush1.msra.mxu0 0.0
        %457 = vmatprep.subr.mxu0 0.0
        %458 = vmatpush1.msra.mxu0 0.0
        %459 = vmatprep.subr.mxu0 0.0
        %460 = vmatpush1.msra.mxu0 0.0
        %461 = vmatprep.subr.mxu0 0.0
        %462 = vmatpush1.msra.mxu0 0.0
        %463 = vmatprep.subr.mxu0 0.0
        %464 = vmatpush1.msra.mxu0 0.0
        %465 = vmatprep.subr.mxu0 0.0
        %466 = vmatpush1.msra.mxu0 0.0
        %467 = vmatprep.subr.mxu0 0.0
        %468 = vmatpush1.msra.mxu0 0.0
        %469 = vmatprep.subr.mxu0 0.0
        %470 = vmatpush1.msra.mxu0 0.0
        %471 = vmatprep.subr.mxu0 0.0
        %472 = vmatpush1.msra.mxu0 0.0
        %473 = vmatprep.subr.mxu0 0.0
        %474 = vmatpush1.msra.mxu0 0.0
        %475 = vmatprep.subr.mxu0 0.0
        %476 = vmatpush1.msra.mxu0 0.0
        %477 = vmatprep.subr.mxu0 0.0
        %478 = vmatpush1.msra.mxu0 0.0
        %479 = vmatprep.subr.mxu0 0.0
        %480 = vmatpush1.msra.mxu0 0.0
        %481 = vmatprep.mubr.f32.mxu0 0.0
        %482 = vmatmul.mubr.f32.gmra.mrb[0].mxu0 %v415
        %v483 = vpop.f32.mrb[0].mxu0
        %v484 = vadd.f32 %v412, %v483
        %v485 = vpop.f32.mrb[0].mxu0
        %486 = vdwg.mxu0
        %v487 = vmul.f32 %v484, 0.5
        %v488 = vadd.f32 %v288, %v487
        %v489 = vld [vmem:[%s3 + $0x4] sm:$0x1]
        %v490 = vld [vmem:[%s3 + $0x5] sm:$0x1]
        %v491 = vsel %vm292, %v488, 0.0
        %492 = vadd.xlane.f32.xlu0 %v491
        %v493 = vpop.xlane.xlu0 %492
        %v494 = vmul.f32 %v493, %v296
        %v495 = vsub.f32 %v488, %v494
        %v496 = vmul.f32 %v495, %v495
        %v497 = vsel %vm292, %v496, 0.0
        %498 = vadd.xlane.f32.xlu0 %v497
        %v499 = vpop.xlane.xlu0 %498
        %v500 = vmul.f32 %v499, %v296
        %v501 = vadd.f32 %v500, 1e-12
        %v502 = vrsqrt.pop %v501
        %v503 = vmul.f32 %v495, %v502
        %v504 = vlaneseq
        %v505 = vshrl.u32 %v504, 7
        %v506 = vsub.s32 0, %v505
        %v507 = vrot.slane %v489, %v506
        %v508 = vmul.f32 %v503, %v507
        %v509 = vlaneseq
        %v510 = vshrl.u32 %v509, 7
        %v511 = vsub.s32 0, %v510
        %v512 = vrot.slane %v490, %v511
        %v513 = vadd.f32 %v508, %v512
        %v514 = vld [vmem:[%s4] sm:$0xff]
        %v515 = vld [vmem:[%s4 + $0x8] sm:$0xff]
        %v516 = vld [vmem:[%s4 + $0x10] sm:$0xff]
        %v517 = vld [vmem:[%s4 + $0x18] sm:$0xff]
        %v518 = vld [vmem:[%s4 + $0x20] sm:$0xff]
        %v519 = vld [vmem:[%s4 + $0x28] sm:$0xff]
        %v520 = vld [vmem:[%s4 + $0x30] sm:$0xff]
        %v521 = vld [vmem:[%s4 + $0x38] sm:$0xff]
        %v522 = vld [vmem:[%s4 + $0x40] sm:$0xff]
        %v523 = vld [vmem:[%s4 + $0x48] sm:$0xff]
        %v524 = vld [vmem:[%s4 + $0x50] sm:$0xff]
        %v525 = vld [vmem:[%s4 + $0x58] sm:$0xff]
        %v526 = vld [vmem:[%s4 + $0x60] sm:$0xff]
        %v527 = vld [vmem:[%s4 + $0x68] sm:$0xff]
        %v528 = vld [vmem:[%s4 + $0x70] sm:$0xff]
        %v529 = vld [vmem:[%s4 + $0x78] sm:$0xff]
        %v530 = vld [vmem:[%s4 + $0x80] sm:$0xff]
        %v531 = vld [vmem:[%s4 + $0x88] sm:$0xff]
        %v532 = vld [vmem:[%s4 + $0x90] sm:$0xff]
        %v533 = vld [vmem:[%s4 + $0x98] sm:$0xff]
        %v534 = vld [vmem:[%s4 + $0xa0] sm:$0xff]
        %v535 = vld [vmem:[%s4 + $0xa8] sm:$0xff]
        %v536 = vld [vmem:[%s4 + $0xb0] sm:$0xff]
        %v537 = vld [vmem:[%s4 + $0xb8] sm:$0xff]
        %v538 = vld [vmem:[%s4 + $0xc0] sm:$0xff]
        %v539 = vld [vmem:[%s4 + $0xc8] sm:$0xff]
        %v540 = vld [vmem:[%s4 + $0xd0] sm:$0xff]
        %v541 = vld [vmem:[%s4 + $0xd8] sm:$0xff]
        %v542 = vld [vmem:[%s4 + $0xe0] sm:$0xff]
        %v543 = vld [vmem:[%s4 + $0xe8] sm:$0xff]
        %v544 = vld [vmem:[%s4 + $0xf0] sm:$0xff]
        %v545 = vld [vmem:[%s4 + $0xf8] sm:$0xff]
        %v546 = vld [vmem:[%s4 + $0x100] sm:$0xff]
        %v547 = vld [vmem:[%s4 + $0x108] sm:$0xff]
        %v548 = vld [vmem:[%s4 + $0x110] sm:$0xff]
        %v549 = vld [vmem:[%s4 + $0x118] sm:$0xff]
        %v550 = vld [vmem:[%s4 + $0x120] sm:$0xff]
        %v551 = vld [vmem:[%s4 + $0x128] sm:$0xff]
        %v552 = vld [vmem:[%s4 + $0x130] sm:$0xff]
        %v553 = vld [vmem:[%s4 + $0x138] sm:$0xff]
        %v554 = vld [vmem:[%s4 + $0x140] sm:$0xff]
        %v555 = vld [vmem:[%s4 + $0x148] sm:$0xff]
        %v556 = vld [vmem:[%s4 + $0x150] sm:$0xff]
        %v557 = vld [vmem:[%s4 + $0x158] sm:$0xff]
        %v558 = vld [vmem:[%s4 + $0x160] sm:$0xff]
        %v559 = vld [vmem:[%s4 + $0x168] sm:$0xff]
        %v560 = vld [vmem:[%s4 + $0x170] sm:$0xff]
        %v561 = vld [vmem:[%s4 + $0x178] sm:$0xff]
        %v562 = vld [vmem:[%s5] sm:$0x1]
        %v563 = vld [vmem:[%s5 + $0x1] sm:$0x1]
        %v564 = vld [vmem:[%s5 + $0x2] sm:$0x1]
        %v565 = vld [vmem:[%s5 + $0x3] sm:$0x1]
        %v566 = vld [vmem:[%s5 + $0x4] sm:$0x1]
        %v567 = vld [vmem:[%s5 + $0x5] sm:$0x1]
        %v568 = vld [vmem:[%s5 + $0x6] sm:$0x1]
        %v569 = vld [vmem:[%s5 + $0x7] sm:$0x1]
        %v570 = vld [vmem:[%s5 + $0x8] sm:$0x1]
        %v571 = vld [vmem:[%s5 + $0x9] sm:$0x1]
        %v572 = vld [vmem:[%s5 + $0xa] sm:$0x1]
        %v573 = vld [vmem:[%s5 + $0xb] sm:$0x1]
        %v586 = vlaneseq
        %v587 = vshrl.u32 %v586, 7
        %v588 = vsub.s32 0, %v587
        %v589 = vrot.slane %v562, %v588
        %v590 = vlaneseq
        %v591 = vshrl.u32 %v590, 7
        %v592 = vsub.s32 0, %v591
        %v593 = vrot.slane %v563, %v592
        %v594 = vlaneseq
        %v595 = vshrl.u32 %v594, 7
        %v596 = vsub.s32 0, %v595
        %v597 = vrot.slane %v564, %v596
        %v598 = vlaneseq
        %v599 = vshrl.u32 %v598, 7
        %v600 = vsub.s32 0, %v599
        %v601 = vrot.slane %v565, %v600
        %v602 = vlaneseq
        %v603 = vshrl.u32 %v602, 7
        %v604 = vsub.s32 0, %v603
        %v605 = vrot.slane %v566, %v604
        %v606 = vlaneseq
        %v607 = vshrl.u32 %v606, 7
        %v608 = vsub.s32 0, %v607
        %v609 = vrot.slane %v567, %v608
        %v610 = vlaneseq
        %v611 = vshrl.u32 %v610, 7
        %v612 = vsub.s32 0, %v611
        %v613 = vrot.slane %v568, %v612
        %v614 = vlaneseq
        %v615 = vshrl.u32 %v614, 7
        %v616 = vsub.s32 0, %v615
        %v617 = vrot.slane %v569, %v616
        %v618 = vlaneseq
        %v619 = vshrl.u32 %v618, 7
        %v620 = vsub.s32 0, %v619
        %v621 = vrot.slane %v570, %v620
        %v622 = vlaneseq
        %v623 = vshrl.u32 %v622, 7
        %v624 = vsub.s32 0, %v623
        %v625 = vrot.slane %v571, %v624
        %v626 = vlaneseq
        %v627 = vshrl.u32 %v626, 7
        %v628 = vsub.s32 0, %v627
        %v629 = vrot.slane %v572, %v628
        %v630 = vlaneseq
        %v631 = vshrl.u32 %v630, 7
        %v632 = vsub.s32 0, %v631
        %v633 = vrot.slane %v573, %v632
        %v647 = vsel %vm292, %v513, 0
        %649 = vmatprep.subr.mxu0 0.0
        %650 = vmatpush1.msra.mxu0 %v514
        %651 = vmatprep.subr.mxu0 0.0
        %652 = vmatpush1.msra.mxu0 %v515
        %653 = vmatprep.subr.mxu0 0.0
        %654 = vmatpush1.msra.mxu0 %v516
        %655 = vmatprep.subr.mxu0 0.0
        %656 = vmatpush1.msra.mxu0 %v517
        %657 = vmatprep.subr.mxu0 0.0
        %658 = vmatpush1.msra.mxu0 0.0
        %659 = vmatprep.subr.mxu0 0.0
        %660 = vmatpush1.msra.mxu0 0.0
        %661 = vmatprep.subr.mxu0 0.0
        %662 = vmatpush1.msra.mxu0 0.0
        %663 = vmatprep.subr.mxu0 0.0
        %664 = vmatpush1.msra.mxu0 0.0
        %665 = vmatprep.subr.mxu0 0.0
        %666 = vmatpush1.msra.mxu0 0.0
        %667 = vmatprep.subr.mxu0 0.0
        %668 = vmatpush1.msra.mxu0 0.0
        %669 = vmatprep.subr.mxu0 0.0
        %670 = vmatpush1.msra.mxu0 0.0
        %671 = vmatprep.subr.mxu0 0.0
        %672 = vmatpush1.msra.mxu0 0.0
        %673 = vmatprep.subr.mxu0 0.0
        %674 = vmatpush1.msra.mxu0 0.0
        %675 = vmatprep.subr.mxu0 0.0
        %676 = vmatpush1.msra.mxu0 0.0
        %677 = vmatprep.subr.mxu0 0.0
        %678 = vmatpush1.msra.mxu0 0.0
        %679 = vmatprep.subr.mxu0 0.0
        %680 = vmatpush1.msra.mxu0 0.0
        %681 = vmatprep.subr.mxu0 0.0
        %682 = vmatpush1.msra.mxu0 0.0
        %683 = vmatprep.subr.mxu0 0.0
        %684 = vmatpush1.msra.mxu0 0.0
        %685 = vmatprep.subr.mxu0 0.0
        %686 = vmatpush1.msra.mxu0 0.0
        %687 = vmatprep.subr.mxu0 0.0
        %688 = vmatpush1.msra.mxu0 0.0
        %689 = vmatprep.subr.mxu0 0.0
        %690 = vmatpush1.msra.mxu0 0.0
        %691 = vmatprep.subr.mxu0 0.0
        %692 = vmatpush1.msra.mxu0 0.0
        %693 = vmatprep.subr.mxu0 0.0
        %694 = vmatpush1.msra.mxu0 0.0
        %695 = vmatprep.subr.mxu0 0.0
        %696 = vmatpush1.msra.mxu0 0.0
        %697 = vmatprep.subr.mxu0 0.0
        %698 = vmatpush1.msra.mxu0 0.0
        %699 = vmatprep.subr.mxu0 0.0
        %700 = vmatpush1.msra.mxu0 0.0
        %701 = vmatprep.subr.mxu0 0.0
        %702 = vmatpush1.msra.mxu0 0.0
        %703 = vmatprep.subr.mxu0 0.0
        %704 = vmatpush1.msra.mxu0 0.0
        %705 = vmatprep.subr.mxu0 0.0
        %706 = vmatpush1.msra.mxu0 0.0
        %707 = vmatprep.subr.mxu0 0.0
        %708 = vmatpush1.msra.mxu0 0.0
        %709 = vmatprep.subr.mxu0 0.0
        %710 = vmatpush1.msra.mxu0 0.0
        %711 = vmatprep.subr.mxu0 0.0
        %712 = vmatpush1.msra.mxu0 0.0
        %713 = vmatprep.mubr.f32.mxu0 0.0
        %714 = vmatmul.mubr.f32.gmra.mrb[0].mxu0 %v647
        %v715 = vpop.f32.mrb[0].mxu0
        %v716 = vadd.f32 %v589, %v715
        %v717 = vpop.f32.mrb[0].mxu0
        %718 = vdwg.mxu0
        %719 = vmatprep.subr.mxu0 0.0
        %720 = vmatpush1.msra.mxu0 %v518
        %721 = vmatprep.subr.mxu0 0.0
        %722 = vmatpush1.msra.mxu0 %v519
        %723 = vmatprep.subr.mxu0 0.0
        %724 = vmatpush1.msra.mxu0 %v520
        %725 = vmatprep.subr.mxu0 0.0
        %726 = vmatpush1.msra.mxu0 %v521
        %727 = vmatprep.subr.mxu0 0.0
        %728 = vmatpush1.msra.mxu0 0.0
        %729 = vmatprep.subr.mxu0 0.0
        %730 = vmatpush1.msra.mxu0 0.0
        %731 = vmatprep.subr.mxu0 0.0
        %732 = vmatpush1.msra.mxu0 0.0
        %733 = vmatprep.subr.mxu0 0.0
        %734 = vmatpush1.msra.mxu0 0.0
        %735 = vmatprep.subr.mxu0 0.0
        %736 = vmatpush1.msra.mxu0 0.0
        %737 = vmatprep.subr.mxu0 0.0
        %738 = vmatpush1.msra.mxu0 0.0
        %739 = vmatprep.subr.mxu0 0.0
        %740 = vmatpush1.msra.mxu0 0.0
        %741 = vmatprep.subr.mxu0 0.0
        %742 = vmatpush1.msra.mxu0 0.0
        %743 = vmatprep.subr.mxu0 0.0
        %744 = vmatpush1.msra.mxu0 0.0
        %745 = vmatprep.subr.mxu0 0.0
        %746 = vmatpush1.msra.mxu0 0.0
        %747 = vmatprep.subr.mxu0 0.0
        %748 = vmatpush1.msra.mxu0 0.0
        %749 = vmatprep.subr.mxu0 0.0
        %750 = vmatpush1.msra.mxu0 0.0
        %751 = vmatprep.subr.mxu0 0.0
        %752 = vmatpush1.msra.mxu0 0.0
        %753 = vmatprep.subr.mxu0 0.0
        %754 = vmatpush1.msra.mxu0 0.0
        %755 = vmatprep.subr.mxu0 0.0
        %756 = vmatpush1.msra.mxu0 0.0
        %757 = vmatprep.subr.mxu0 0.0
        %758 = vmatpush1.msra.mxu0 0.0
        %759 = vmatprep.subr.mxu0 0.0
        %760 = vmatpush1.msra.mxu0 0.0
        %761 = vmatprep.subr.mxu0 0.0
        %762 = vmatpush1.msra.mxu0 0.0
        %763 = vmatprep.subr.mxu0 0.0
        %764 = vmatpush1.msra.mxu0 0.0
        %765 = vmatprep.subr.mxu0 0.0
        %766 = vmatpush1.msra.mxu0 0.0
        %767 = vmatprep.subr.mxu0 0.0
        %768 = vmatpush1.msra.mxu0 0.0
        %769 = vmatprep.subr.mxu0 0.0
        %770 = vmatpush1.msra.mxu0 0.0
        %771 = vmatprep.subr.mxu0 0.0
        %772 = vmatpush1.msra.mxu0 0.0
        %773 = vmatprep.subr.mxu0 0.0
        %774 = vmatpush1.msra.mxu0 0.0
        %775 = vmatprep.subr.mxu0 0.0
        %776 = vmatpush1.msra.mxu0 0.0
        %777 = vmatprep.subr.mxu0 0.0
        %778 = vmatpush1.msra.mxu0 0.0
        %779 = vmatprep.subr.mxu0 0.0
        %780 = vmatpush1.msra.mxu0 0.0
        %781 = vmatprep.subr.mxu0 0.0
        %782 = vmatpush1.msra.mxu0 0.0
        %783 = vmatprep.mubr.f32.mxu0 0.0
        %784 = vmatmul.mubr.f32.gmra.mrb[0].mxu0 %v647
        %v785 = vpop.f32.mrb[0].mxu0
        %v786 = vadd.f32 %v593, %v785
        %v787 = vpop.f32.mrb[0].mxu0
        %788 = vdwg.mxu0
        %789 = vmatprep.subr.mxu0 0.0
        %790 = vmatpush1.msra.mxu0 %v522
        %791 = vmatprep.subr.mxu0 0.0
        %792 = vmatpush1.msra.mxu0 %v523
        %793 = vmatprep.subr.mxu0 0.0
        %794 = vmatpush1.msra.mxu0 %v524
        %795 = vmatprep.subr.mxu0 0.0
        %796 = vmatpush1.msra.mxu0 %v525
        %797 = vmatprep.subr.mxu0 0.0
        %798 = vmatpush1.msra.mxu0 0.0
        %799 = vmatprep.subr.mxu0 0.0
        %800 = vmatpush1.msra.mxu0 0.0
        %801 = vmatprep.subr.mxu0 0.0
        %802 = vmatpush1.msra.mxu0 0.0
        %803 = vmatprep.subr.mxu0 0.0
        %804 = vmatpush1.msra.mxu0 0.0
        %805 = vmatprep.subr.mxu0 0.0
        %806 = vmatpush1.msra.mxu0 0.0
        %807 = vmatprep.subr.mxu0 0.0
        %808 = vmatpush1.msra.mxu0 0.0
        %809 = vmatprep.subr.mxu0 0.0
        %810 = vmatpush1.msra.mxu0 0.0
        %811 = vmatprep.subr.mxu0 0.0
        %812 = vmatpush1.msra.mxu0 0.0
        %813 = vmatprep.subr.mxu0 0.0
        %814 = vmatpush1.msra.mxu0 0.0
        %815 = vmatprep.subr.mxu0 0.0
        %816 = vmatpush1.msra.mxu0 0.0
        %817 = vmatprep.subr.mxu0 0.0
        %818 = vmatpush1.msra.mxu0 0.0
        %819 = vmatprep.subr.mxu0 0.0
        %820 = vmatpush1.msra.mxu0 0.0
        %821 = vmatprep.subr.mxu0 0.0
        %822 = vmatpush1.msra.mxu0 0.0
        %823 = vmatprep.subr.mxu0 0.0
        %824 = vmatpush1.msra.mxu0 0.0
        %825 = vmatprep.subr.mxu0 0.0
        %826 = vmatpush1.msra.mxu0 0.0
        %827 = vmatprep.subr.mxu0 0.0
        %828 = vmatpush1.msra.mxu0 0.0
        %829 = vmatprep.subr.mxu0 0.0
        %830 = vmatpush1.msra.mxu0 0.0
        %831 = vmatprep.subr.mxu0 0.0
        %832 = vmatpush1.msra.mxu0 0.0
        %833 = vmatprep.subr.mxu0 0.0
        %834 = vmatpush1.msra.mxu0 0.0
        %835 = vmatprep.subr.mxu0 0.0
        %836 = vmatpush1.msra.mxu0 0.0
        %837 = vmatprep.subr.mxu0 0.0
        %838 = vmatpush1.msra.mxu0 0.0
        %839 = vmatprep.subr.mxu0 0.0
        %840 = vmatpush1.msra.mxu0 0.0
        %841 = vmatprep.subr.mxu0 0.0
        %842 = vmatpush1.msra.mxu0 0.0
        %843 = vmatprep.subr.mxu0 0.0
        %844 = vmatpush1.msra.mxu0 0.0
        %845 = vmatprep.subr.mxu0 0.0
        %846 = vmatpush1.msra.mxu0 0.0
        %847 = vmatprep.subr.mxu0 0.0
        %848 = vmatpush1.msra.mxu0 0.0
        %849 = vmatprep.subr.mxu0 0.0
        %850 = vmatpush1.msra.mxu0 0.0
        %851 = vmatprep.subr.mxu0 0.0
        %852 = vmatpush1.msra.mxu0 0.0
        %853 = vmatprep.mubr.f32.mxu0 0.0
        %854 = vmatmul.mubr.f32.gmra.mrb[0].mxu0 %v647
        %v855 = vpop.f32.mrb[0].mxu0
        %v856 = vadd.f32 %v597, %v855
        %v857 = vpop.f32.mrb[0].mxu0
        %858 = vdwg.mxu0
        %859 = vmatprep.subr.mxu0 0.0
        %860 = vmatpush1.msra.mxu0 %v526
        %861 = vmatprep.subr.mxu0 0.0
        %862 = vmatpush1.msra.mxu0 %v527
        %863 = vmatprep.subr.mxu0 0.0
        %864 = vmatpush1.msra.mxu0 %v528
        %865 = vmatprep.subr.mxu0 0.0
        %866 = vmatpush1.msra.mxu0 %v529
        %867 = vmatprep.subr.mxu0 0.0
        %868 = vmatpush1.msra.mxu0 0.0
        %869 = vmatprep.subr.mxu0 0.0
        %870 = vmatpush1.msra.mxu0 0.0
        %871 = vmatprep.subr.mxu0 0.0
        %872 = vmatpush1.msra.mxu0 0.0
        %873 = vmatprep.subr.mxu0 0.0
        %874 = vmatpush1.msra.mxu0 0.0
        %875 = vmatprep.subr.mxu0 0.0
        %876 = vmatpush1.msra.mxu0 0.0
        %877 = vmatprep.subr.mxu0 0.0
        %878 = vmatpush1.msra.mxu0 0.0
        %879 = vmatprep.subr.mxu0 0.0
        %880 = vmatpush1.msra.mxu0 0.0
        %881 = vmatprep.subr.mxu0 0.0
        %882 = vmatpush1.msra.mxu0 0.0
        %883 = vmatprep.subr.mxu0 0.0
        %884 = vmatpush1.msra.mxu0 0.0
        %885 = vmatprep.subr.mxu0 0.0
        %886 = vmatpush1.msra.mxu0 0.0
        %887 = vmatprep.subr.mxu0 0.0
        %888 = vmatpush1.msra.mxu0 0.0
        %889 = vmatprep.subr.mxu0 0.0
        %890 = vmatpush1.msra.mxu0 0.0
        %891 = vmatprep.subr.mxu0 0.0
        %892 = vmatpush1.msra.mxu0 0.0
        %893 = vmatprep.subr.mxu0 0.0
        %894 = vmatpush1.msra.mxu0 0.0
        %895 = vmatprep.subr.mxu0 0.0
        %896 = vmatpush1.msra.mxu0 0.0
        %897 = vmatprep.subr.mxu0 0.0
        %898 = vmatpush1.msra.mxu0 0.0
        %899 = vmatprep.subr.mxu0 0.0
        %900 = vmatpush1.msra.mxu0 0.0
        %901 = vmatprep.subr.mxu0 0.0
        %902 = vmatpush1.msra.mxu0 0.0
        %903 = vmatprep.subr.mxu0 0.0
        %904 = vmatpush1.msra.mxu0 0.0
        %905 = vmatprep.subr.mxu0 0.0
        %906 = vmatpush1.msra.mxu0 0.0
        %907 = vmatprep.subr.mxu0 0.0
        %908 = vmatpush1.msra.mxu0 0.0
        %909 = vmatprep.subr.mxu0 0.0
        %910 = vmatpush1.msra.mxu0 0.0
        %911 = vmatprep.subr.mxu0 0.0
        %912 = vmatpush1.msra.mxu0 0.0
        %913 = vmatprep.subr.mxu0 0.0
        %914 = vmatpush1.msra.mxu0 0.0
        %915 = vmatprep.subr.mxu0 0.0
        %916 = vmatpush1.msra.mxu0 0.0
        %917 = vmatprep.subr.mxu0 0.0
        %918 = vmatpush1.msra.mxu0 0.0
        %919 = vmatprep.subr.mxu0 0.0
        %920 = vmatpush1.msra.mxu0 0.0
        %921 = vmatprep.subr.mxu0 0.0
        %922 = vmatpush1.msra.mxu0 0.0
        %923 = vmatprep.mubr.f32.mxu0 0.0
        %924 = vmatmul.mubr.f32.gmra.mrb[0].mxu0 %v647
        %v925 = vpop.f32.mrb[0].mxu0
        %v926 = vadd.f32 %v601, %v925
        %v927 = vpop.f32.mrb[0].mxu0
        %928 = vdwg.mxu0
        %929 = vmatprep.subr.mxu0 0.0
        %930 = vmatpush1.msra.mxu0 %v530
        %931 = vmatprep.subr.mxu0 0.0
        %932 = vmatpush1.msra.mxu0 %v531
        %933 = vmatprep.subr.mxu0 0.0
        %934 = vmatpush1.msra.mxu0 %v532
        %935 = vmatprep.subr.mxu0 0.0
        %936 = vmatpush1.msra.mxu0 %v533
        %937 = vmatprep.subr.mxu0 0.0
        %938 = vmatpush1.msra.mxu0 0.0
        %939 = vmatprep.subr.mxu0 0.0
        %940 = vmatpush1.msra.mxu0 0.0
        %941 = vmatprep.subr.mxu0 0.0
        %942 = vmatpush1.msra.mxu0 0.0
        %943 = vmatprep.subr.mxu0 0.0
        %944 = vmatpush1.msra.mxu0 0.0
        %945 = vmatprep.subr.mxu0 0.0
        %946 = vmatpush1.msra.mxu0 0.0
        %947 = vmatprep.subr.mxu0 0.0
        %948 = vmatpush1.msra.mxu0 0.0
        %949 = vmatprep.subr.mxu0 0.0
        %950 = vmatpush1.msra.mxu0 0.0
        %951 = vmatprep.subr.mxu0 0.0
        %952 = vmatpush1.msra.mxu0 0.0
        %953 = vmatprep.subr.mxu0 0.0
        %954 = vmatpush1.msra.mxu0 0.0
        %955 = vmatprep.subr.mxu0 0.0
        %956 = vmatpush1.msra.mxu0 0.0
        %957 = vmatprep.subr.mxu0 0.0
        %958 = vmatpush1.msra.mxu0 0.0
        %959 = vmatprep.subr.mxu0 0.0
        %960 = vmatpush1.msra.mxu0 0.0
        %961 = vmatprep.subr.mxu0 0.0
        %962 = vmatpush1.msra.mxu0 0.0
        %963 = vmatprep.subr.mxu0 0.0
        %964 = vmatpush1.msra.mxu0 0.0
        %965 = vmatprep.subr.mxu0 0.0
        %966 = vmatpush1.msra.mxu0 0.0
        %967 = vmatprep.subr.mxu0 0.0
        %968 = vmatpush1.msra.mxu0 0.0
        %969 = vmatprep.subr.mxu0 0.0
        %970 = vmatpush1.msra.mxu0 0.0
        %971 = vmatprep.subr.mxu0 0.0
        %972 = vmatpush1.msra.mxu0 0.0
        %973 = vmatprep.subr.mxu0 0.0
        %974 = vmatpush1.msra.mxu0 0.0
        %975 = vmatprep.subr.mxu0 0.0
        %976 = vmatpush1.msra.mxu0 0.0
        %977 = vmatprep.subr.mxu0 0.0
        %978 = vmatpush1.msra.mxu0 0.0
        %979 = vmatprep.subr.mxu0 0.0
        %980 = vmatpush1.msra.mxu0 0.0
        %981 = vmatprep.subr.mxu0 0.0
        %982 = vmatpush1.msra.mxu0 0.0
        %983 = vmatprep.subr.mxu0 0.0
        %984 = vmatpush1.msra.mxu0 0.0
        %985 = vmatprep.subr.mxu0 0.0
        %986 = vmatpush1.msra.mxu0 0.0
        %987 = vmatprep.subr.mxu0 0.0
        %988 = vmatpush1.msra.mxu0 0.0
        %989 = vmatprep.subr.mxu0 0.0
        %990 = vmatpush1.msra.mxu0 0.0
        %991 = vmatprep.subr.mxu0 0.0
        %992 = vmatpush1.msra.mxu0 0.0
        %993 = vmatprep.mubr.f32.mxu0 0.0
        %994 = vmatmul.mubr.f32.gmra.mrb[0].mxu0 %v647
        %v995 = vpop.f32.mrb[0].mxu0
        %v996 = vadd.f32 %v605, %v995
        %v997 = vpop.f32.mrb[0].mxu0
        %998 = vdwg.mxu0
        %999 = vmatprep.subr.mxu0 0.0
        %1000 = vmatpush1.msra.mxu0 %v534
        %1001 = vmatprep.subr.mxu0 0.0
        %1002 = vmatpush1.msra.mxu0 %v535
        %1003 = vmatprep.subr.mxu0 0.0
        %1004 = vmatpush1.msra.mxu0 %v536
        %1005 = vmatprep.subr.mxu0 0.0
        %1006 = vmatpush1.msra.mxu0 %v537
        %1007 = vmatprep.subr.mxu0 0.0
        %1008 = vmatpush1.msra.mxu0 0.0
        %1009 = vmatprep.subr.mxu0 0.0
        %1010 = vmatpush1.msra.mxu0 0.0
        %1011 = vmatprep.subr.mxu0 0.0
        %1012 = vmatpush1.msra.mxu0 0.0
        %1013 = vmatprep.subr.mxu0 0.0
        %1014 = vmatpush1.msra.mxu0 0.0
        %1015 = vmatprep.subr.mxu0 0.0
        %1016 = vmatpush1.msra.mxu0 0.0
        %1017 = vmatprep.subr.mxu0 0.0
        %1018 = vmatpush1.msra.mxu0 0.0
        %1019 = vmatprep.subr.mxu0 0.0
        %1020 = vmatpush1.msra.mxu0 0.0
        %1021 = vmatprep.subr.mxu0 0.0
        %1022 = vmatpush1.msra.mxu0 0.0
        %1023 = vmatprep.subr.mxu0 0.0
        %1024 = vmatpush1.msra.mxu0 0.0
        %1025 = vmatprep.subr.mxu0 0.0
        %1026 = vmatpush1.msra.mxu0 0.0
        %1027 = vmatprep.subr.mxu0 0.0
        %1028 = vmatpush1.msra.mxu0 0.0
        %1029 = vmatprep.subr.mxu0 0.0
        %1030 = vmatpush1.msra.mxu0 0.0
        %1031 = vmatprep.subr.mxu0 0.0
        %1032 = vmatpush1.msra.mxu0 0.0
        %1033 = vmatprep.subr.mxu0 0.0
        %1034 = vmatpush1.msra.mxu0 0.0
        %1035 = vmatprep.subr.mxu0 0.0
        %1036 = vmatpush1.msra.mxu0 0.0
        %1037 = vmatprep.subr.mxu0 0.0
        %1038 = vmatpush1.msra.mxu0 0.0
        %1039 = vmatprep.subr.mxu0 0.0
        %1040 = vmatpush1.msra.mxu0 0.0
        %1041 = vmatprep.subr.mxu0 0.0
        %1042 = vmatpush1.msra.mxu0 0.0
        %1043 = vmatprep.subr.mxu0 0.0
        %1044 = vmatpush1.msra.mxu0 0.0
        %1045 = vmatprep.subr.mxu0 0.0
        %1046 = vmatpush1.msra.mxu0 0.0
        %1047 = vmatprep.subr.mxu0 0.0
        %1048 = vmatpush1.msra.mxu0 0.0
        %1049 = vmatprep.subr.mxu0 0.0
        %1050 = vmatpush1.msra.mxu0 0.0
        %1051 = vmatprep.subr.mxu0 0.0
        %1052 = vmatpush1.msra.mxu0 0.0
        %1053 = vmatprep.subr.mxu0 0.0
        %1054 = vmatpush1.msra.mxu0 0.0
        %1055 = vmatprep.subr.mxu0 0.0
        %1056 = vmatpush1.msra.mxu0 0.0
        %1057 = vmatprep.subr.mxu0 0.0
        %1058 = vmatpush1.msra.mxu0 0.0
        %1059 = vmatprep.subr.mxu0 0.0
        %1060 = vmatpush1.msra.mxu0 0.0
        %1061 = vmatprep.subr.mxu0 0.0
        %1062 = vmatpush1.msra.mxu0 0.0
        %1063 = vmatprep.mubr.f32.mxu0 0.0
        %1064 = vmatmul.mubr.f32.gmra.mrb[0].mxu0 %v647
        %v1065 = vpop.f32.mrb[0].mxu0
        %v1066 = vadd.f32 %v609, %v1065
        %v1067 = vpop.f32.mrb[0].mxu0
        %1068 = vdwg.mxu0
        %1069 = vmatprep.subr.mxu0 0.0
        %1070 = vmatpush1.msra.mxu0 %v538
        %1071 = vmatprep.subr.mxu0 0.0
        %1072 = vmatpush1.msra.mxu0 %v539
        %1073 = vmatprep.subr.mxu0 0.0
        %1074 = vmatpush1.msra.mxu0 %v540
        %1075 = vmatprep.subr.mxu0 0.0
        %1076 = vmatpush1.msra.mxu0 %v541
        %1077 = vmatprep.subr.mxu0 0.0
        %1078 = vmatpush1.msra.mxu0 0.0
        %1079 = vmatprep.subr.mxu0 0.0
        %1080 = vmatpush1.msra.mxu0 0.0
        %1081 = vmatprep.subr.mxu0 0.0
        %1082 = vmatpush1.msra.mxu0 0.0
        %1083 = vmatprep.subr.mxu0 0.0
        %1084 = vmatpush1.msra.mxu0 0.0
        %1085 = vmatprep.subr.mxu0 0.0
        %1086 = vmatpush1.msra.mxu0 0.0
        %1087 = vmatprep.subr.mxu0 0.0
        %1088 = vmatpush1.msra.mxu0 0.0
        %1089 = vmatprep.subr.mxu0 0.0
        %1090 = vmatpush1.msra.mxu0 0.0
        %1091 = vmatprep.subr.mxu0 0.0
        %1092 = vmatpush1.msra.mxu0 0.0
        %1093 = vmatprep.subr.mxu0 0.0
        %1094 = vmatpush1.msra.mxu0 0.0
        %1095 = vmatprep.subr.mxu0 0.0
        %1096 = vmatpush1.msra.mxu0 0.0
        %1097 = vmatprep.subr.mxu0 0.0
        %1098 = vmatpush1.msra.mxu0 0.0
        %1099 = vmatprep.subr.mxu0 0.0
        %1100 = vmatpush1.msra.mxu0 0.0
        %1101 = vmatprep.subr.mxu0 0.0
        %1102 = vmatpush1.msra.mxu0 0.0
        %1103 = vmatprep.subr.mxu0 0.0
        %1104 = vmatpush1.msra.mxu0 0.0
        %1105 = vmatprep.subr.mxu0 0.0
        %1106 = vmatpush1.msra.mxu0 0.0
        %1107 = vmatprep.subr.mxu0 0.0
        %1108 = vmatpush1.msra.mxu0 0.0
        %1109 = vmatprep.subr.mxu0 0.0
        %1110 = vmatpush1.msra.mxu0 0.0
        %1111 = vmatprep.subr.mxu0 0.0
        %1112 = vmatpush1.msra.mxu0 0.0
        %1113 = vmatprep.subr.mxu0 0.0
        %1114 = vmatpush1.msra.mxu0 0.0
        %1115 = vmatprep.subr.mxu0 0.0
        %1116 = vmatpush1.msra.mxu0 0.0
        %1117 = vmatprep.subr.mxu0 0.0
        %1118 = vmatpush1.msra.mxu0 0.0
        %1119 = vmatprep.subr.mxu0 0.0
        %1120 = vmatpush1.msra.mxu0 0.0
        %1121 = vmatprep.subr.mxu0 0.0
        %1122 = vmatpush1.msra.mxu0 0.0
        %1123 = vmatprep.subr.mxu0 0.0
        %1124 = vmatpush1.msra.mxu0 0.0
        %1125 = vmatprep.subr.mxu0 0.0
        %1126 = vmatpush1.msra.mxu0 0.0
        %1127 = vmatprep.subr.mxu0 0.0
        %1128 = vmatpush1.msra.mxu0 0.0
        %1129 = vmatprep.subr.mxu0 0.0
        %1130 = vmatpush1.msra.mxu0 0.0
        %1131 = vmatprep.subr.mxu0 0.0
        %1132 = vmatpush1.msra.mxu0 0.0
        %1133 = vmatprep.mubr.f32.mxu0 0.0
        %1134 = vmatmul.mubr.f32.gmra.mrb[0].mxu0 %v647
        %v1135 = vpop.f32.mrb[0].mxu0
        %v1136 = vadd.f32 %v613, %v1135
        %v1137 = vpop.f32.mrb[0].mxu0
        %1138 = vdwg.mxu0
        %1139 = vmatprep.subr.mxu0 0.0
        %1140 = vmatpush1.msra.mxu0 %v542
        %1141 = vmatprep.subr.mxu0 0.0
        %1142 = vmatpush1.msra.mxu0 %v543
        %1143 = vmatprep.subr.mxu0 0.0
        %1144 = vmatpush1.msra.mxu0 %v544
        %1145 = vmatprep.subr.mxu0 0.0
        %1146 = vmatpush1.msra.mxu0 %v545
        %1147 = vmatprep.subr.mxu0 0.0
        %1148 = vmatpush1.msra.mxu0 0.0
        %1149 = vmatprep.subr.mxu0 0.0
        %1150 = vmatpush1.msra.mxu0 0.0
        %1151 = vmatprep.subr.mxu0 0.0
        %1152 = vmatpush1.msra.mxu0 0.0
        %1153 = vmatprep.subr.mxu0 0.0
        %1154 = vmatpush1.msra.mxu0 0.0
        %1155 = vmatprep.subr.mxu0 0.0
        %1156 = vmatpush1.msra.mxu0 0.0
        %1157 = vmatprep.subr.mxu0 0.0
        %1158 = vmatpush1.msra.mxu0 0.0
        %1159 = vmatprep.subr.mxu0 0.0
        %1160 = vmatpush1.msra.mxu0 0.0
        %1161 = vmatprep.subr.mxu0 0.0
        %1162 = vmatpush1.msra.mxu0 0.0
        %1163 = vmatprep.subr.mxu0 0.0
        %1164 = vmatpush1.msra.mxu0 0.0
        %1165 = vmatprep.subr.mxu0 0.0
        %1166 = vmatpush1.msra.mxu0 0.0
        %1167 = vmatprep.subr.mxu0 0.0
        %1168 = vmatpush1.msra.mxu0 0.0
        %1169 = vmatprep.subr.mxu0 0.0
        %1170 = vmatpush1.msra.mxu0 0.0
        %1171 = vmatprep.subr.mxu0 0.0
        %1172 = vmatpush1.msra.mxu0 0.0
        %1173 = vmatprep.subr.mxu0 0.0
        %1174 = vmatpush1.msra.mxu0 0.0
        %1175 = vmatprep.subr.mxu0 0.0
        %1176 = vmatpush1.msra.mxu0 0.0
        %1177 = vmatprep.subr.mxu0 0.0
        %1178 = vmatpush1.msra.mxu0 0.0
        %1179 = vmatprep.subr.mxu0 0.0
        %1180 = vmatpush1.msra.mxu0 0.0
        %1181 = vmatprep.subr.mxu0 0.0
        %1182 = vmatpush1.msra.mxu0 0.0
        %1183 = vmatprep.subr.mxu0 0.0
        %1184 = vmatpush1.msra.mxu0 0.0
        %1185 = vmatprep.subr.mxu0 0.0
        %1186 = vmatpush1.msra.mxu0 0.0
        %1187 = vmatprep.subr.mxu0 0.0
        %1188 = vmatpush1.msra.mxu0 0.0
        %1189 = vmatprep.subr.mxu0 0.0
        %1190 = vmatpush1.msra.mxu0 0.0
        %1191 = vmatprep.subr.mxu0 0.0
        %1192 = vmatpush1.msra.mxu0 0.0
        %1193 = vmatprep.subr.mxu0 0.0
        %1194 = vmatpush1.msra.mxu0 0.0
        %1195 = vmatprep.subr.mxu0 0.0
        %1196 = vmatpush1.msra.mxu0 0.0
        %1197 = vmatprep.subr.mxu0 0.0
        %1198 = vmatpush1.msra.mxu0 0.0
        %1199 = vmatprep.subr.mxu0 0.0
        %1200 = vmatpush1.msra.mxu0 0.0
        %1201 = vmatprep.subr.mxu0 0.0
        %1202 = vmatpush1.msra.mxu0 0.0
        %1203 = vmatprep.mubr.f32.mxu0 0.0
        %1204 = vmatmul.mubr.f32.gmra.mrb[0].mxu0 %v647
        %v1205 = vpop.f32.mrb[0].mxu0
        %v1206 = vadd.f32 %v617, %v1205
        %v1207 = vpop.f32.mrb[0].mxu0
        %1208 = vdwg.mxu0
        %1209 = vmatprep.subr.mxu0 0.0
        %1210 = vmatpush1.msra.mxu0 %v546
        %1211 = vmatprep.subr.mxu0 0.0
        %1212 = vmatpush1.msra.mxu0 %v547
        %1213 = vmatprep.subr.mxu0 0.0
        %1214 = vmatpush1.msra.mxu0 %v548
        %1215 = vmatprep.subr.mxu0 0.0
        %1216 = vmatpush1.msra.mxu0 %v549
        %1217 = vmatprep.subr.mxu0 0.0
        %1218 = vmatpush1.msra.mxu0 0.0
        %1219 = vmatprep.subr.mxu0 0.0
        %1220 = vmatpush1.msra.mxu0 0.0
        %1221 = vmatprep.subr.mxu0 0.0
        %1222 = vmatpush1.msra.mxu0 0.0
        %1223 = vmatprep.subr.mxu0 0.0
        %1224 = vmatpush1.msra.mxu0 0.0
        %1225 = vmatprep.subr.mxu0 0.0
        %1226 = vmatpush1.msra.mxu0 0.0
        %1227 = vmatprep.subr.mxu0 0.0
        %1228 = vmatpush1.msra.mxu0 0.0
        %1229 = vmatprep.subr.mxu0 0.0
        %1230 = vmatpush1.msra.mxu0 0.0
        %1231 = vmatprep.subr.mxu0 0.0
        %1232 = vmatpush1.msra.mxu0 0.0
        %1233 = vmatprep.subr.mxu0 0.0
        %1234 = vmatpush1.msra.mxu0 0.0
        %1235 = vmatprep.subr.mxu0 0.0
        %1236 = vmatpush1.msra.mxu0 0.0
        %1237 = vmatprep.subr.mxu0 0.0
        %1238 = vmatpush1.msra.mxu0 0.0
        %1239 = vmatprep.subr.mxu0 0.0
        %1240 = vmatpush1.msra.mxu0 0.0
        %1241 = vmatprep.subr.mxu0 0.0
        %1242 = vmatpush1.msra.mxu0 0.0
        %1243 = vmatprep.subr.mxu0 0.0
        %1244 = vmatpush1.msra.mxu0 0.0
        %1245 = vmatprep.subr.mxu0 0.0
        %1246 = vmatpush1.msra.mxu0 0.0
        %1247 = vmatprep.subr.mxu0 0.0
        %1248 = vmatpush1.msra.mxu0 0.0
        %1249 = vmatprep.subr.mxu0 0.0
        %1250 = vmatpush1.msra.mxu0 0.0
        %1251 = vmatprep.subr.mxu0 0.0
        %1252 = vmatpush1.msra.mxu0 0.0
        %1253 = vmatprep.subr.mxu0 0.0
        %1254 = vmatpush1.msra.mxu0 0.0
        %1255 = vmatprep.subr.mxu0 0.0
        %1256 = vmatpush1.msra.mxu0 0.0
        %1257 = vmatprep.subr.mxu0 0.0
        %1258 = vmatpush1.msra.mxu0 0.0
        %1259 = vmatprep.subr.mxu0 0.0
        %1260 = vmatpush1.msra.mxu0 0.0
        %1261 = vmatprep.subr.mxu0 0.0
        %1262 = vmatpush1.msra.mxu0 0.0
        %1263 = vmatprep.subr.mxu0 0.0
        %1264 = vmatpush1.msra.mxu0 0.0
        %1265 = vmatprep.subr.mxu0 0.0
        %1266 = vmatpush1.msra.mxu0 0.0
        %1267 = vmatprep.subr.mxu0 0.0
        %1268 = vmatpush1.msra.mxu0 0.0
        %1269 = vmatprep.subr.mxu0 0.0
        %1270 = vmatpush1.msra.mxu0 0.0
        %1271 = vmatprep.subr.mxu0 0.0
        %1272 = vmatpush1.msra.mxu0 0.0
        %1273 = vmatprep.mubr.f32.mxu0 0.0
        %1274 = vmatmul.mubr.f32.gmra.mrb[0].mxu0 %v647
        %v1275 = vpop.f32.mrb[0].mxu0
        %v1276 = vadd.f32 %v621, %v1275
        %v1277 = vpop.f32.mrb[0].mxu0
        %1278 = vdwg.mxu0
        %1279 = vmatprep.subr.mxu0 0.0
        %1280 = vmatpush1.msra.mxu0 %v550
        %1281 = vmatprep.subr.mxu0 0.0
        %1282 = vmatpush1.msra.mxu0 %v551
        %1283 = vmatprep.subr.mxu0 0.0
        %1284 = vmatpush1.msra.mxu0 %v552
        %1285 = vmatprep.subr.mxu0 0.0
        %1286 = vmatpush1.msra.mxu0 %v553
        %1287 = vmatprep.subr.mxu0 0.0
        %1288 = vmatpush1.msra.mxu0 0.0
        %1289 = vmatprep.subr.mxu0 0.0
        %1290 = vmatpush1.msra.mxu0 0.0
        %1291 = vmatprep.subr.mxu0 0.0
        %1292 = vmatpush1.msra.mxu0 0.0
        %1293 = vmatprep.subr.mxu0 0.0
        %1294 = vmatpush1.msra.mxu0 0.0
        %1295 = vmatprep.subr.mxu0 0.0
        %1296 = vmatpush1.msra.mxu0 0.0
        %1297 = vmatprep.subr.mxu0 0.0
        %1298 = vmatpush1.msra.mxu0 0.0
        %1299 = vmatprep.subr.mxu0 0.0
        %1300 = vmatpush1.msra.mxu0 0.0
        %1301 = vmatprep.subr.mxu0 0.0
        %1302 = vmatpush1.msra.mxu0 0.0
        %1303 = vmatprep.subr.mxu0 0.0
        %1304 = vmatpush1.msra.mxu0 0.0
        %1305 = vmatprep.subr.mxu0 0.0
        %1306 = vmatpush1.msra.mxu0 0.0
        %1307 = vmatprep.subr.mxu0 0.0
        %1308 = vmatpush1.msra.mxu0 0.0
        %1309 = vmatprep.subr.mxu0 0.0
        %1310 = vmatpush1.msra.mxu0 0.0
        %1311 = vmatprep.subr.mxu0 0.0
        %1312 = vmatpush1.msra.mxu0 0.0
        %1313 = vmatprep.subr.mxu0 0.0
        %1314 = vmatpush1.msra.mxu0 0.0
        %1315 = vmatprep.subr.mxu0 0.0
        %1316 = vmatpush1.msra.mxu0 0.0
        %1317 = vmatprep.subr.mxu0 0.0
        %1318 = vmatpush1.msra.mxu0 0.0
        %1319 = vmatprep.subr.mxu0 0.0
        %1320 = vmatpush1.msra.mxu0 0.0
        %1321 = vmatprep.subr.mxu0 0.0
        %1322 = vmatpush1.msra.mxu0 0.0
        %1323 = vmatprep.subr.mxu0 0.0
        %1324 = vmatpush1.msra.mxu0 0.0
        %1325 = vmatprep.subr.mxu0 0.0
        %1326 = vmatpush1.msra.mxu0 0.0
        %1327 = vmatprep.subr.mxu0 0.0
        %1328 = vmatpush1.msra.mxu0 0.0
        %1329 = vmatprep.subr.mxu0 0.0
        %1330 = vmatpush1.msra.mxu0 0.0
        %1331 = vmatprep.subr.mxu0 0.0
        %1332 = vmatpush1.msra.mxu0 0.0
        %1333 = vmatprep.subr.mxu0 0.0
        %1334 = vmatpush1.msra.mxu0 0.0
        %1335 = vmatprep.subr.mxu0 0.0
        %1336 = vmatpush1.msra.mxu0 0.0
        %1337 = vmatprep.subr.mxu0 0.0
        %1338 = vmatpush1.msra.mxu0 0.0
        %1339 = vmatprep.subr.mxu0 0.0
        %1340 = vmatpush1.msra.mxu0 0.0
        %1341 = vmatprep.subr.mxu0 0.0
        %1342 = vmatpush1.msra.mxu0 0.0
        %1343 = vmatprep.mubr.f32.mxu0 0.0
        %1344 = vmatmul.mubr.f32.gmra.mrb[0].mxu0 %v647
        %v1345 = vpop.f32.mrb[0].mxu0
        %v1346 = vadd.f32 %v625, %v1345
        %v1347 = vpop.f32.mrb[0].mxu0
        %1348 = vdwg.mxu0
        %1349 = vmatprep.subr.mxu0 0.0
        %1350 = vmatpush1.msra.mxu0 %v554
        %1351 = vmatprep.subr.mxu0 0.0
        %1352 = vmatpush1.msra.mxu0 %v555
        %1353 = vmatprep.subr.mxu0 0.0
        %1354 = vmatpush1.msra.mxu0 %v556
        %1355 = vmatprep.subr.mxu0 0.0
        %1356 = vmatpush1.msra.mxu0 %v557
        %1357 = vmatprep.subr.mxu0 0.0
        %1358 = vmatpush1.msra.mxu0 0.0
        %1359 = vmatprep.subr.mxu0 0.0
        %1360 = vmatpush1.msra.mxu0 0.0
        %1361 = vmatprep.subr.mxu0 0.0
        %1362 = vmatpush1.msra.mxu0 0.0
        %1363 = vmatprep.subr.mxu0 0.0
        %1364 = vmatpush1.msra.mxu0 0.0
        %1365 = vmatprep.subr.mxu0 0.0
        %1366 = vmatpush1.msra.mxu0 0.0
        %1367 = vmatprep.subr.mxu0 0.0
        %1368 = vmatpush1.msra.mxu0 0.0
        %1369 = vmatprep.subr.mxu0 0.0
        %1370 = vmatpush1.msra.mxu0 0.0
        %1371 = vmatprep.subr.mxu0 0.0
        %1372 = vmatpush1.msra.mxu0 0.0
        %1373 = vmatprep.subr.mxu0 0.0
        %1374 = vmatpush1.msra.mxu0 0.0
        %1375 = vmatprep.subr.mxu0 0.0
        %1376 = vmatpush1.msra.mxu0 0.0
        %1377 = vmatprep.subr.mxu0 0.0
        %1378 = vmatpush1.msra.mxu0 0.0
        %1379 = vmatprep.subr.mxu0 0.0
        %1380 = vmatpush1.msra.mxu0 0.0
        %1381 = vmatprep.subr.mxu0 0.0
        %1382 = vmatpush1.msra.mxu0 0.0
        %1383 = vmatprep.subr.mxu0 0.0
        %1384 = vmatpush1.msra.mxu0 0.0
        %1385 = vmatprep.subr.mxu0 0.0
        %1386 = vmatpush1.msra.mxu0 0.0
        %1387 = vmatprep.subr.mxu0 0.0
        %1388 = vmatpush1.msra.mxu0 0.0
        %1389 = vmatprep.subr.mxu0 0.0
        %1390 = vmatpush1.msra.mxu0 0.0
        %1391 = vmatprep.subr.mxu0 0.0
        %1392 = vmatpush1.msra.mxu0 0.0
        %1393 = vmatprep.subr.mxu0 0.0
        %1394 = vmatpush1.msra.mxu0 0.0
        %1395 = vmatprep.subr.mxu0 0.0
        %1396 = vmatpush1.msra.mxu0 0.0
        %1397 = vmatprep.subr.mxu0 0.0
        %1398 = vmatpush1.msra.mxu0 0.0
        %1399 = vmatprep.subr.mxu0 0.0
        %1400 = vmatpush1.msra.mxu0 0.0
        %1401 = vmatprep.subr.mxu0 0.0
        %1402 = vmatpush1.msra.mxu0 0.0
        %1403 = vmatprep.subr.mxu0 0.0
        %1404 = vmatpush1.msra.mxu0 0.0
        %1405 = vmatprep.subr.mxu0 0.0
        %1406 = vmatpush1.msra.mxu0 0.0
        %1407 = vmatprep.subr.mxu0 0.0
        %1408 = vmatpush1.msra.mxu0 0.0
        %1409 = vmatprep.subr.mxu0 0.0
        %1410 = vmatpush1.msra.mxu0 0.0
        %1411 = vmatprep.subr.mxu0 0.0
        %1412 = vmatpush1.msra.mxu0 0.0
        %1413 = vmatprep.mubr.f32.mxu0 0.0
        %1414 = vmatmul.mubr.f32.gmra.mrb[0].mxu0 %v647
        %v1415 = vpop.f32.mrb[0].mxu0
        %v1416 = vadd.f32 %v629, %v1415
        %v1417 = vpop.f32.mrb[0].mxu0
        %1418 = vdwg.mxu0
        %1419 = vmatprep.subr.mxu0 0.0
        %1420 = vmatpush1.msra.mxu0 %v558
        %1421 = vmatprep.subr.mxu0 0.0
        %1422 = vmatpush1.msra.mxu0 %v559
        %1423 = vmatprep.subr.mxu0 0.0
        %1424 = vmatpush1.msra.mxu0 %v560
        %1425 = vmatprep.subr.mxu0 0.0
        %1426 = vmatpush1.msra.mxu0 %v561
        %1427 = vmatprep.subr.mxu0 0.0
        %1428 = vmatpush1.msra.mxu0 0.0
        %1429 = vmatprep.subr.mxu0 0.0
        %1430 = vmatpush1.msra.mxu0 0.0
        %1431 = vmatprep.subr.mxu0 0.0
        %1432 = vmatpush1.msra.mxu0 0.0
        %1433 = vmatprep.subr.mxu0 0.0
        %1434 = vmatpush1.msra.mxu0 0.0
        %1435 = vmatprep.subr.mxu0 0.0
        %1436 = vmatpush1.msra.mxu0 0.0
        %1437 = vmatprep.subr.mxu0 0.0
        %1438 = vmatpush1.msra.mxu0 0.0
        %1439 = vmatprep.subr.mxu0 0.0
        %1440 = vmatpush1.msra.mxu0 0.0
        %1441 = vmatprep.subr.mxu0 0.0
        %1442 = vmatpush1.msra.mxu0 0.0
        %1443 = vmatprep.subr.mxu0 0.0
        %1444 = vmatpush1.msra.mxu0 0.0
        %1445 = vmatprep.subr.mxu0 0.0
        %1446 = vmatpush1.msra.mxu0 0.0
        %1447 = vmatprep.subr.mxu0 0.0
        %1448 = vmatpush1.msra.mxu0 0.0
        %1449 = vmatprep.subr.mxu0 0.0
        %1450 = vmatpush1.msra.mxu0 0.0
        %1451 = vmatprep.subr.mxu0 0.0
        %1452 = vmatpush1.msra.mxu0 0.0
        %1453 = vmatprep.subr.mxu0 0.0
        %1454 = vmatpush1.msra.mxu0 0.0
        %1455 = vmatprep.subr.mxu0 0.0
        %1456 = vmatpush1.msra.mxu0 0.0
        %1457 = vmatprep.subr.mxu0 0.0
        %1458 = vmatpush1.msra.mxu0 0.0
        %1459 = vmatprep.subr.mxu0 0.0
        %1460 = vmatpush1.msra.mxu0 0.0
        %1461 = vmatprep.subr.mxu0 0.0
        %1462 = vmatpush1.msra.mxu0 0.0
        %1463 = vmatprep.subr.mxu0 0.0
        %1464 = vmatpush1.msra.mxu0 0.0
        %1465 = vmatprep.subr.mxu0 0.0
        %1466 = vmatpush1.msra.mxu0 0.0
        %1467 = vmatprep.subr.mxu0 0.0
        %1468 = vmatpush1.msra.mxu0 0.0
        %1469 = vmatprep.subr.mxu0 0.0
        %1470 = vmatpush1.msra.mxu0 0.0
        %1471 = vmatprep.subr.mxu0 0.0
        %1472 = vmatpush1.msra.mxu0 0.0
        %1473 = vmatprep.subr.mxu0 0.0
        %1474 = vmatpush1.msra.mxu0 0.0
        %1475 = vmatprep.subr.mxu0 0.0
        %1476 = vmatpush1.msra.mxu0 0.0
        %1477 = vmatprep.subr.mxu0 0.0
        %1478 = vmatpush1.msra.mxu0 0.0
        %1479 = vmatprep.subr.mxu0 0.0
        %1480 = vmatpush1.msra.mxu0 0.0
        %1481 = vmatprep.subr.mxu0 0.0
        %1482 = vmatpush1.msra.mxu0 0.0
        %1483 = vmatprep.mubr.f32.mxu0 0.0
        %1484 = vmatmul.mubr.f32.gmra.mrb[0].mxu0 %v647
        %v1485 = vpop.f32.mrb[0].mxu0
        %v1486 = vadd.f32 %v633, %v1485
        %v1487 = vpop.f32.mrb[0].mxu0
        %1488 = vdwg.mxu0
        %vm1489 = vcmp.gt.f32.partialorder %v289, 0.0
        %v1490 = vsel %vm1489, 0.0, -1e+30
        %vm1491 = vcmask 64512
        %v1493 = vsel %vm1491, %v716, 0
        %v1496 = vsel %vm1491, %v996, 0
        %1498 = vmatprep.subr.mxu0 0.0
        %1499 = vmatpush1.xpose.msra.mxu0 %v1496
        %1500 = vmatprep.subr.mxu0 0.0
        %1501 = vmatpush1.xpose.msra.mxu0 0.0
        %1502 = vmatprep.subr.mxu0 0.0
        %1503 = vmatpush1.xpose.msra.mxu0 0.0
        %1504 = vmatprep.subr.mxu0 0.0
        %1505 = vmatpush1.xpose.msra.mxu0 0.0
        %1506 = vmatprep.subr.mxu0 0.0
        %1507 = vmatpush1.xpose.msra.mxu0 0.0
        %1508 = vmatprep.subr.mxu0 0.0
        %1509 = vmatpush1.xpose.msra.mxu0 0.0
        %1510 = vmatprep.subr.mxu0 0.0
        %1511 = vmatpush1.xpose.msra.mxu0 0.0
        %1512 = vmatprep.subr.mxu0 0.0
        %1513 = vmatpush1.xpose.msra.mxu0 0.0
        %1514 = vmatprep.subr.mxu0 0.0
        %1515 = vmatpush1.xpose.msra.mxu0 0.0
        %1516 = vmatprep.subr.mxu0 0.0
        %1517 = vmatpush1.xpose.msra.mxu0 0.0
        %1518 = vmatprep.subr.mxu0 0.0
        %1519 = vmatpush1.xpose.msra.mxu0 0.0
        %1520 = vmatprep.subr.mxu0 0.0
        %1521 = vmatpush1.xpose.msra.mxu0 0.0
        %1522 = vmatprep.subr.mxu0 0.0
        %1523 = vmatpush1.xpose.msra.mxu0 0.0
        %1524 = vmatprep.subr.mxu0 0.0
        %1525 = vmatpush1.xpose.msra.mxu0 0.0
        %1526 = vmatprep.subr.mxu0 0.0
        %1527 = vmatpush1.xpose.msra.mxu0 0.0
        %1528 = vmatprep.subr.mxu0 0.0
        %1529 = vmatpush1.xpose.msra.mxu0 0.0
        %1530 = vmatprep.subr.mxu0 0.0
        %1531 = vmatpush1.xpose.msra.mxu0 0.0
        %1532 = vmatprep.subr.mxu0 0.0
        %1533 = vmatpush1.xpose.msra.mxu0 0.0
        %1534 = vmatprep.subr.mxu0 0.0
        %1535 = vmatpush1.xpose.msra.mxu0 0.0
        %1536 = vmatprep.subr.mxu0 0.0
        %1537 = vmatpush1.xpose.msra.mxu0 0.0
        %1538 = vmatprep.subr.mxu0 0.0
        %1539 = vmatpush1.xpose.msra.mxu0 0.0
        %1540 = vmatprep.subr.mxu0 0.0
        %1541 = vmatpush1.xpose.msra.mxu0 0.0
        %1542 = vmatprep.subr.mxu0 0.0
        %1543 = vmatpush1.xpose.msra.mxu0 0.0
        %1544 = vmatprep.subr.mxu0 0.0
        %1545 = vmatpush1.xpose.msra.mxu0 0.0
        %1546 = vmatprep.subr.mxu0 0.0
        %1547 = vmatpush1.xpose.msra.mxu0 0.0
        %1548 = vmatprep.subr.mxu0 0.0
        %1549 = vmatpush1.xpose.msra.mxu0 0.0
        %1550 = vmatprep.subr.mxu0 0.0
        %1551 = vmatpush1.xpose.msra.mxu0 0.0
        %1552 = vmatprep.subr.mxu0 0.0
        %1553 = vmatpush1.xpose.msra.mxu0 0.0
        %1554 = vmatprep.subr.mxu0 0.0
        %1555 = vmatpush1.xpose.msra.mxu0 0.0
        %1556 = vmatprep.subr.mxu0 0.0
        %1557 = vmatpush1.xpose.msra.mxu0 0.0
        %1558 = vmatprep.subr.mxu0 0.0
        %1559 = vmatpush1.xpose.msra.mxu0 0.0
        %1560 = vmatprep.subr.mxu0 0.0
        %1561 = vmatpush1.xpose.msra.mxu0 0.0
        %1562 = vmatprep.mubr.f32.mxu0 0.0
        %1563 = vmatmul.mubr.f32.gmra.mrb[0].mxu0 %v1493
        %v1564 = vpop.f32.mrb[0].mxu0
        %v1565 = vadd.f32 0.0, %v1564
        %v1566 = vpop.f32.mrb[0].mxu0
        %1567 = vdwg.mxu0
        %v1569 = vsel %vm1491, %v786, 0
        %v1572 = vsel %vm1491, %v1066, 0
        %1574 = vmatprep.subr.mxu0 0.0
        %1575 = vmatpush1.xpose.msra.mxu0 %v1572
        %1576 = vmatprep.subr.mxu0 0.0
        %1577 = vmatpush1.xpose.msra.mxu0 0.0
        %1578 = vmatprep.subr.mxu0 0.0
        %1579 = vmatpush1.xpose.msra.mxu0 0.0
        %1580 = vmatprep.subr.mxu0 0.0
        %1581 = vmatpush1.xpose.msra.mxu0 0.0
        %1582 = vmatprep.subr.mxu0 0.0
        %1583 = vmatpush1.xpose.msra.mxu0 0.0
        %1584 = vmatprep.subr.mxu0 0.0
        %1585 = vmatpush1.xpose.msra.mxu0 0.0
        %1586 = vmatprep.subr.mxu0 0.0
        %1587 = vmatpush1.xpose.msra.mxu0 0.0
        %1588 = vmatprep.subr.mxu0 0.0
        %1589 = vmatpush1.xpose.msra.mxu0 0.0
        %1590 = vmatprep.subr.mxu0 0.0
        %1591 = vmatpush1.xpose.msra.mxu0 0.0
        %1592 = vmatprep.subr.mxu0 0.0
        %1593 = vmatpush1.xpose.msra.mxu0 0.0
        %1594 = vmatprep.subr.mxu0 0.0
        %1595 = vmatpush1.xpose.msra.mxu0 0.0
        %1596 = vmatprep.subr.mxu0 0.0
        %1597 = vmatpush1.xpose.msra.mxu0 0.0
        %1598 = vmatprep.subr.mxu0 0.0
        %1599 = vmatpush1.xpose.msra.mxu0 0.0
        %1600 = vmatprep.subr.mxu0 0.0
        %1601 = vmatpush1.xpose.msra.mxu0 0.0
        %1602 = vmatprep.subr.mxu0 0.0
        %1603 = vmatpush1.xpose.msra.mxu0 0.0
        %1604 = vmatprep.subr.mxu0 0.0
        %1605 = vmatpush1.xpose.msra.mxu0 0.0
        %1606 = vmatprep.subr.mxu0 0.0
        %1607 = vmatpush1.xpose.msra.mxu0 0.0
        %1608 = vmatprep.subr.mxu0 0.0
        %1609 = vmatpush1.xpose.msra.mxu0 0.0
        %1610 = vmatprep.subr.mxu0 0.0
        %1611 = vmatpush1.xpose.msra.mxu0 0.0
        %1612 = vmatprep.subr.mxu0 0.0
        %1613 = vmatpush1.xpose.msra.mxu0 0.0
        %1614 = vmatprep.subr.mxu0 0.0
        %1615 = vmatpush1.xpose.msra.mxu0 0.0
        %1616 = vmatprep.subr.mxu0 0.0
        %1617 = vmatpush1.xpose.msra.mxu0 0.0
        %1618 = vmatprep.subr.mxu0 0.0
        %1619 = vmatpush1.xpose.msra.mxu0 0.0
        %1620 = vmatprep.subr.mxu0 0.0
        %1621 = vmatpush1.xpose.msra.mxu0 0.0
        %1622 = vmatprep.subr.mxu0 0.0
        %1623 = vmatpush1.xpose.msra.mxu0 0.0
        %1624 = vmatprep.subr.mxu0 0.0
        %1625 = vmatpush1.xpose.msra.mxu0 0.0
        %1626 = vmatprep.subr.mxu0 0.0
        %1627 = vmatpush1.xpose.msra.mxu0 0.0
        %1628 = vmatprep.subr.mxu0 0.0
        %1629 = vmatpush1.xpose.msra.mxu0 0.0
        %1630 = vmatprep.subr.mxu0 0.0
        %1631 = vmatpush1.xpose.msra.mxu0 0.0
        %1632 = vmatprep.subr.mxu0 0.0
        %1633 = vmatpush1.xpose.msra.mxu0 0.0
        %1634 = vmatprep.subr.mxu0 0.0
        %1635 = vmatpush1.xpose.msra.mxu0 0.0
        %1636 = vmatprep.subr.mxu0 0.0
        %1637 = vmatpush1.xpose.msra.mxu0 0.0
        %1638 = vmatprep.mubr.f32.mxu0 0.0
        %1639 = vmatmul.mubr.f32.gmra.mrb[0].mxu0 %v1569
        %v1640 = vpop.f32.mrb[0].mxu0
        %v1641 = vadd.f32 0.0, %v1640
        %v1642 = vpop.f32.mrb[0].mxu0
        %1643 = vdwg.mxu0
        %v1645 = vsel %vm1491, %v856, 0
        %v1648 = vsel %vm1491, %v1136, 0
        %1650 = vmatprep.subr.mxu0 0.0
        %1651 = vmatpush1.xpose.msra.mxu0 %v1648
        %1652 = vmatprep.subr.mxu0 0.0
        %1653 = vmatpush1.xpose.msra.mxu0 0.0
        %1654 = vmatprep.subr.mxu0 0.0
        %1655 = vmatpush1.xpose.msra.mxu0 0.0
        %1656 = vmatprep.subr.mxu0 0.0
        %1657 = vmatpush1.xpose.msra.mxu0 0.0
        %1658 = vmatprep.subr.mxu0 0.0
        %1659 = vmatpush1.xpose.msra.mxu0 0.0
        %1660 = vmatprep.subr.mxu0 0.0
        %1661 = vmatpush1.xpose.msra.mxu0 0.0
        %1662 = vmatprep.subr.mxu0 0.0
        %1663 = vmatpush1.xpose.msra.mxu0 0.0
        %1664 = vmatprep.subr.mxu0 0.0
        %1665 = vmatpush1.xpose.msra.mxu0 0.0
        %1666 = vmatprep.subr.mxu0 0.0
        %1667 = vmatpush1.xpose.msra.mxu0 0.0
        %1668 = vmatprep.subr.mxu0 0.0
        %1669 = vmatpush1.xpose.msra.mxu0 0.0
        %1670 = vmatprep.subr.mxu0 0.0
        %1671 = vmatpush1.xpose.msra.mxu0 0.0
        %1672 = vmatprep.subr.mxu0 0.0
        %1673 = vmatpush1.xpose.msra.mxu0 0.0
        %1674 = vmatprep.subr.mxu0 0.0
        %1675 = vmatpush1.xpose.msra.mxu0 0.0
        %1676 = vmatprep.subr.mxu0 0.0
        %1677 = vmatpush1.xpose.msra.mxu0 0.0
        %1678 = vmatprep.subr.mxu0 0.0
        %1679 = vmatpush1.xpose.msra.mxu0 0.0
        %1680 = vmatprep.subr.mxu0 0.0
        %1681 = vmatpush1.xpose.msra.mxu0 0.0
        %1682 = vmatprep.subr.mxu0 0.0
        %1683 = vmatpush1.xpose.msra.mxu0 0.0
        %1684 = vmatprep.subr.mxu0 0.0
        %1685 = vmatpush1.xpose.msra.mxu0 0.0
        %1686 = vmatprep.subr.mxu0 0.0
        %1687 = vmatpush1.xpose.msra.mxu0 0.0
        %1688 = vmatprep.subr.mxu0 0.0
        %1689 = vmatpush1.xpose.msra.mxu0 0.0
        %1690 = vmatprep.subr.mxu0 0.0
        %1691 = vmatpush1.xpose.msra.mxu0 0.0
        %1692 = vmatprep.subr.mxu0 0.0
        %1693 = vmatpush1.xpose.msra.mxu0 0.0
        %1694 = vmatprep.subr.mxu0 0.0
        %1695 = vmatpush1.xpose.msra.mxu0 0.0
        %1696 = vmatprep.subr.mxu0 0.0
        %1697 = vmatpush1.xpose.msra.mxu0 0.0
        %1698 = vmatprep.subr.mxu0 0.0
        %1699 = vmatpush1.xpose.msra.mxu0 0.0
        %1700 = vmatprep.subr.mxu0 0.0
        %1701 = vmatpush1.xpose.msra.mxu0 0.0
        %1702 = vmatprep.subr.mxu0 0.0
        %1703 = vmatpush1.xpose.msra.mxu0 0.0
        %1704 = vmatprep.subr.mxu0 0.0
        %1705 = vmatpush1.xpose.msra.mxu0 0.0
        %1706 = vmatprep.subr.mxu0 0.0
        %1707 = vmatpush1.xpose.msra.mxu0 0.0
        %1708 = vmatprep.subr.mxu0 0.0
        %1709 = vmatpush1.xpose.msra.mxu0 0.0
        %1710 = vmatprep.subr.mxu0 0.0
        %1711 = vmatpush1.xpose.msra.mxu0 0.0
        %1712 = vmatprep.subr.mxu0 0.0
        %1713 = vmatpush1.xpose.msra.mxu0 0.0
        %1714 = vmatprep.mubr.f32.mxu0 0.0
        %1715 = vmatmul.mubr.f32.gmra.mrb[0].mxu0 %v1645
        %v1716 = vpop.f32.mrb[0].mxu0
        %v1717 = vadd.f32 0.0, %v1716
        %v1718 = vpop.f32.mrb[0].mxu0
        %1719 = vdwg.mxu0
        %v1721 = vsel %vm1491, %v926, 0
        %v1724 = vsel %vm1491, %v1206, 0
        %1726 = vmatprep.subr.mxu0 0.0
        %1727 = vmatpush1.xpose.msra.mxu0 %v1724
        %1728 = vmatprep.subr.mxu0 0.0
        %1729 = vmatpush1.xpose.msra.mxu0 0.0
        %1730 = vmatprep.subr.mxu0 0.0
        %1731 = vmatpush1.xpose.msra.mxu0 0.0
        %1732 = vmatprep.subr.mxu0 0.0
        %1733 = vmatpush1.xpose.msra.mxu0 0.0
        %1734 = vmatprep.subr.mxu0 0.0
        %1735 = vmatpush1.xpose.msra.mxu0 0.0
        %1736 = vmatprep.subr.mxu0 0.0
        %1737 = vmatpush1.xpose.msra.mxu0 0.0
        %1738 = vmatprep.subr.mxu0 0.0
        %1739 = vmatpush1.xpose.msra.mxu0 0.0
        %1740 = vmatprep.subr.mxu0 0.0
        %1741 = vmatpush1.xpose.msra.mxu0 0.0
        %1742 = vmatprep.subr.mxu0 0.0
        %1743 = vmatpush1.xpose.msra.mxu0 0.0
        %1744 = vmatprep.subr.mxu0 0.0
        %1745 = vmatpush1.xpose.msra.mxu0 0.0
        %1746 = vmatprep.subr.mxu0 0.0
        %1747 = vmatpush1.xpose.msra.mxu0 0.0
        %1748 = vmatprep.subr.mxu0 0.0
        %1749 = vmatpush1.xpose.msra.mxu0 0.0
        %1750 = vmatprep.subr.mxu0 0.0
        %1751 = vmatpush1.xpose.msra.mxu0 0.0
        %1752 = vmatprep.subr.mxu0 0.0
        %1753 = vmatpush1.xpose.msra.mxu0 0.0
        %1754 = vmatprep.subr.mxu0 0.0
        %1755 = vmatpush1.xpose.msra.mxu0 0.0
        %1756 = vmatprep.subr.mxu0 0.0
        %1757 = vmatpush1.xpose.msra.mxu0 0.0
        %1758 = vmatprep.subr.mxu0 0.0
        %1759 = vmatpush1.xpose.msra.mxu0 0.0
        %1760 = vmatprep.subr.mxu0 0.0
        %1761 = vmatpush1.xpose.msra.mxu0 0.0
        %1762 = vmatprep.subr.mxu0 0.0
        %1763 = vmatpush1.xpose.msra.mxu0 0.0
        %1764 = vmatprep.subr.mxu0 0.0
        %1765 = vmatpush1.xpose.msra.mxu0 0.0
        %1766 = vmatprep.subr.mxu0 0.0
        %1767 = vmatpush1.xpose.msra.mxu0 0.0
        %1768 = vmatprep.subr.mxu0 0.0
        %1769 = vmatpush1.xpose.msra.mxu0 0.0
        %1770 = vmatprep.subr.mxu0 0.0
        %1771 = vmatpush1.xpose.msra.mxu0 0.0
        %1772 = vmatprep.subr.mxu0 0.0
        %1773 = vmatpush1.xpose.msra.mxu0 0.0
        %1774 = vmatprep.subr.mxu0 0.0
        %1775 = vmatpush1.xpose.msra.mxu0 0.0
        %1776 = vmatprep.subr.mxu0 0.0
        %1777 = vmatpush1.xpose.msra.mxu0 0.0
        %1778 = vmatprep.subr.mxu0 0.0
        %1779 = vmatpush1.xpose.msra.mxu0 0.0
        %1780 = vmatprep.subr.mxu0 0.0
        %1781 = vmatpush1.xpose.msra.mxu0 0.0
        %1782 = vmatprep.subr.mxu0 0.0
        %1783 = vmatpush1.xpose.msra.mxu0 0.0
        %1784 = vmatprep.subr.mxu0 0.0
        %1785 = vmatpush1.xpose.msra.mxu0 0.0
        %1786 = vmatprep.subr.mxu0 0.0
        %1787 = vmatpush1.xpose.msra.mxu0 0.0
        %1788 = vmatprep.subr.mxu0 0.0
        %1789 = vmatpush1.xpose.msra.mxu0 0.0
        %1790 = vmatprep.mubr.f32.mxu0 0.0
        %1791 = vmatmul.mubr.f32.gmra.mrb[0].mxu0 %v1721
        %v1792 = vpop.f32.mrb[0].mxu0
        %v1793 = vadd.f32 0.0, %v1792
        %v1794 = vpop.f32.mrb[0].mxu0
        %1795 = vdwg.mxu0
        %v1796 = vmul.f32 %v1565, 0.35355338
        %v1797 = vmul.f32 %v1641, 0.35355338
        %v1798 = vmul.f32 %v1717, 0.35355338
        %v1799 = vmul.f32 %v1793, 0.35355338
        %v1801 = vlaneseq
        %v1802 = vshrl.u32 %v1801, 7
        %v1803 = vsub.s32 0, %v1802
        %v1804 = vrot.slane %v1490, %v1803
        %v1806 = vadd.f32 %v1796, %v1804
        %v1807 = vadd.f32 %v1797, %v1804
        %v1808 = vadd.f32 %v1798, %v1804
        %v1809 = vadd.f32 %v1799, %v1804
        %v1810 = vsel %vm1491, %v1806, -inf
        %1811 = vmax.xlane.f32.xlu0 %v1810
        %v1812 = vpop.xlane.xlu0 %1811
        %v1813 = vsel %vm1491, %v1807, -inf
        %1814 = vmax.xlane.f32.xlu0 %v1813
        %v1815 = vpop.xlane.xlu0 %1814
        %v1816 = vsel %vm1491, %v1808, -inf
        %1817 = vmax.xlane.f32.xlu0 %v1816
        %v1818 = vpop.xlane.xlu0 %1817
        %v1819 = vsel %vm1491, %v1809, -inf
        %1820 = vmax.xlane.f32.xlu0 %v1819
        %v1821 = vpop.xlane.xlu0 %1820
        %v1822 = vsub.f32 %v1806, %v1812
        %v1823 = vsub.f32 %v1807, %v1815
        %v1824 = vsub.f32 %v1808, %v1818
        %v1825 = vsub.f32 %v1809, %v1821
        %v1826 = vmul.f32 %v1822, 1.442695
        %v1827 = vpow.pop %v1826
        %v1828 = vmul.f32 %v1823, 1.442695
        %v1829 = vpow.pop %v1828
        %v1830 = vmul.f32 %v1824, 1.442695
        %v1831 = vpow.pop %v1830
        %v1832 = vmul.f32 %v1825, 1.442695
        %v1833 = vpow.pop %v1832
        %v1834 = vsel %vm1491, %v1827, 0.0
        %1835 = vadd.xlane.f32.xlu0 %v1834
        %v1836 = vpop.xlane.xlu0 %1835
        %v1837 = vsel %vm1491, %v1829, 0.0
        %1838 = vadd.xlane.f32.xlu0 %v1837
        %v1839 = vpop.xlane.xlu0 %1838
        %v1840 = vsel %vm1491, %v1831, 0.0
        %1841 = vadd.xlane.f32.xlu0 %v1840
        %v1842 = vpop.xlane.xlu0 %1841
        %v1843 = vsel %vm1491, %v1833, 0.0
        %1844 = vadd.xlane.f32.xlu0 %v1843
        %v1845 = vpop.xlane.xlu0 %1844
        %v1846 = vrcp.pop %v1836
        %v1847 = vmul.f32 1.0, %v1846
        %v1848 = vrcp.pop %v1839
        %v1849 = vmul.f32 1.0, %v1848
        %v1850 = vrcp.pop %v1842
        %v1851 = vmul.f32 1.0, %v1850
        %v1852 = vrcp.pop %v1845
        %v1853 = vmul.f32 1.0, %v1852
        %v1854 = vmul.f32 %v1827, %v1847
        %v1855 = vmul.f32 %v1829, %v1849
        %v1856 = vmul.f32 %v1831, %v1851
        %v1857 = vmul.f32 %v1833, %v1853
        %v1858 = vsel %vm1489, 1, 0
        %v1859 = vlaneseq
        %v1860 = vshrl.u32 %v1859, 7
        %v1861 = vsub.s32 0, %v1860
        %v1862 = vrot.slane %v1858, %v1861
        %vm1863 = vcmp.eq.s32.totalorder %v1862, 1
        %v1864 = vsel %vm1863, %v1854, 0.0
        %v1865 = vsel %vm1863, %v1855, 0.0
        %v1866 = vsel %vm1863, %v1856, 0.0
        %v1867 = vsel %vm1863, %v1857, 0.0
        %v1869 = vsel %vm1491, %v1864, 0
        %1871 = vmatprep.subr.mxu0 0.0
        %1872 = vmatpush1.msra.mxu0 %v1276
        %1873 = vmatprep.subr.mxu0 0.0
        %1874 = vmatpush1.msra.mxu0 0.0
        %1875 = vmatprep.subr.mxu0 0.0
        %1876 = vmatpush1.msra.mxu0 0.0
        %1877 = vmatprep.subr.mxu0 0.0
        %1878 = vmatpush1.msra.mxu0 0.0
        %1879 = vmatprep.subr.mxu0 0.0
        %1880 = vmatpush1.msra.mxu0 0.0
        %1881 = vmatprep.subr.mxu0 0.0
        %1882 = vmatpush1.msra.mxu0 0.0
        %1883 = vmatprep.subr.mxu0 0.0
        %1884 = vmatpush1.msra.mxu0 0.0
        %1885 = vmatprep.subr.mxu0 0.0
        %1886 = vmatpush1.msra.mxu0 0.0
        %1887 = vmatprep.subr.mxu0 0.0
        %1888 = vmatpush1.msra.mxu0 0.0
        %1889 = vmatprep.subr.mxu0 0.0
        %1890 = vmatpush1.msra.mxu0 0.0
        %1891 = vmatprep.subr.mxu0 0.0
        %1892 = vmatpush1.msra.mxu0 0.0
        %1893 = vmatprep.subr.mxu0 0.0
        %1894 = vmatpush1.msra.mxu0 0.0
        %1895 = vmatprep.subr.mxu0 0.0
        %1896 = vmatpush1.msra.mxu0 0.0
        %1897 = vmatprep.subr.mxu0 0.0
        %1898 = vmatpush1.msra.mxu0 0.0
        %1899 = vmatprep.subr.mxu0 0.0
        %1900 = vmatpush1.msra.mxu0 0.0
        %1901 = vmatprep.subr.mxu0 0.0
        %1902 = vmatpush1.msra.mxu0 0.0
        %1903 = vmatprep.subr.mxu0 0.0
        %1904 = vmatpush1.msra.mxu0 0.0
        %1905 = vmatprep.subr.mxu0 0.0
        %1906 = vmatpush1.msra.mxu0 0.0
        %1907 = vmatprep.subr.mxu0 0.0
        %1908 = vmatpush1.msra.mxu0 0.0
        %1909 = vmatprep.subr.mxu0 0.0
        %1910 = vmatpush1.msra.mxu0 0.0
        %1911 = vmatprep.subr.mxu0 0.0
        %1912 = vmatpush1.msra.mxu0 0.0
        %1913 = vmatprep.subr.mxu0 0.0
        %1914 = vmatpush1.msra.mxu0 0.0
        %1915 = vmatprep.subr.mxu0 0.0
        %1916 = vmatpush1.msra.mxu0 0.0
        %1917 = vmatprep.subr.mxu0 0.0
        %1918 = vmatpush1.msra.mxu0 0.0
        %1919 = vmatprep.subr.mxu0 0.0
        %1920 = vmatpush1.msra.mxu0 0.0
        %1921 = vmatprep.subr.mxu0 0.0
        %1922 = vmatpush1.msra.mxu0 0.0
        %1923 = vmatprep.subr.mxu0 0.0
        %1924 = vmatpush1.msra.mxu0 0.0
        %1925 = vmatprep.subr.mxu0 0.0
        %1926 = vmatpush1.msra.mxu0 0.0
        %1927 = vmatprep.subr.mxu0 0.0
        %1928 = vmatpush1.msra.mxu0 0.0
        %1929 = vmatprep.subr.mxu0 0.0
        %1930 = vmatpush1.msra.mxu0 0.0
        %1931 = vmatprep.subr.mxu0 0.0
        %1932 = vmatpush1.msra.mxu0 0.0
        %1933 = vmatprep.subr.mxu0 0.0
        %1934 = vmatpush1.msra.mxu0 0.0
        %1935 = vmatprep.mubr.f32.mxu0 0.0
        %1936 = vmatmul.mubr.f32.gmra.mrb[0].mxu0 %v1869
        %v1937 = vpop.f32.mrb[0].mxu0
        %v1938 = vadd.f32 0.0, %v1937
        %v1939 = vpop.f32.mrb[0].mxu0
        %1940 = vdwg.mxu0
        %v1942 = vsel %vm1491, %v1865, 0
        %1944 = vmatprep.subr.mxu0 0.0
        %1945 = vmatpush1.msra.mxu0 %v1346
        %1946 = vmatprep.subr.mxu0 0.0
        %1947 = vmatpush1.msra.mxu0 0.0
        %1948 = vmatprep.subr.mxu0 0.0
        %1949 = vmatpush1.msra.mxu0 0.0
        %1950 = vmatprep.subr.mxu0 0.0
        %1951 = vmatpush1.msra.mxu0 0.0
        %1952 = vmatprep.subr.mxu0 0.0
        %1953 = vmatpush1.msra.mxu0 0.0
        %1954 = vmatprep.subr.mxu0 0.0
        %1955 = vmatpush1.msra.mxu0 0.0
        %1956 = vmatprep.subr.mxu0 0.0
        %1957 = vmatpush1.msra.mxu0 0.0
        %1958 = vmatprep.subr.mxu0 0.0
        %1959 = vmatpush1.msra.mxu0 0.0
        %1960 = vmatprep.subr.mxu0 0.0
        %1961 = vmatpush1.msra.mxu0 0.0
        %1962 = vmatprep.subr.mxu0 0.0
        %1963 = vmatpush1.msra.mxu0 0.0
        %1964 = vmatprep.subr.mxu0 0.0
        %1965 = vmatpush1.msra.mxu0 0.0
        %1966 = vmatprep.subr.mxu0 0.0
        %1967 = vmatpush1.msra.mxu0 0.0
        %1968 = vmatprep.subr.mxu0 0.0
        %1969 = vmatpush1.msra.mxu0 0.0
        %1970 = vmatprep.subr.mxu0 0.0
        %1971 = vmatpush1.msra.mxu0 0.0
        %1972 = vmatprep.subr.mxu0 0.0
        %1973 = vmatpush1.msra.mxu0 0.0
        %1974 = vmatprep.subr.mxu0 0.0
        %1975 = vmatpush1.msra.mxu0 0.0
        %1976 = vmatprep.subr.mxu0 0.0
        %1977 = vmatpush1.msra.mxu0 0.0
        %1978 = vmatprep.subr.mxu0 0.0
        %1979 = vmatpush1.msra.mxu0 0.0
        %1980 = vmatprep.subr.mxu0 0.0
        %1981 = vmatpush1.msra.mxu0 0.0
        %1982 = vmatprep.subr.mxu0 0.0
        %1983 = vmatpush1.msra.mxu0 0.0
        %1984 = vmatprep.subr.mxu0 0.0
        %1985 = vmatpush1.msra.mxu0 0.0
        %1986 = vmatprep.subr.mxu0 0.0
        %1987 = vmatpush1.msra.mxu0 0.0
        %1988 = vmatprep.subr.mxu0 0.0
        %1989 = vmatpush1.msra.mxu0 0.0
        %1990 = vmatprep.subr.mxu0 0.0
        %1991 = vmatpush1.msra.mxu0 0.0
        %1992 = vmatprep.subr.mxu0 0.0
        %1993 = vmatpush1.msra.mxu0 0.0
        %1994 = vmatprep.subr.mxu0 0.0
        %1995 = vmatpush1.msra.mxu0 0.0
        %1996 = vmatprep.subr.mxu0 0.0
        %1997 = vmatpush1.msra.mxu0 0.0
        %1998 = vmatprep.subr.mxu0 0.0
        %1999 = vmatpush1.msra.mxu0 0.0
        %2000 = vmatprep.subr.mxu0 0.0
        %2001 = vmatpush1.msra.mxu0 0.0
        %2002 = vmatprep.subr.mxu0 0.0
        %2003 = vmatpush1.msra.mxu0 0.0
        %2004 = vmatprep.subr.mxu0 0.0
        %2005 = vmatpush1.msra.mxu0 0.0
        %2006 = vmatprep.subr.mxu0 0.0
        %2007 = vmatpush1.msra.mxu0 0.0
        %2008 = vmatprep.mubr.f32.mxu0 0.0
        %2009 = vmatmul.mubr.f32.gmra.mrb[0].mxu0 %v1942
        %v2010 = vpop.f32.mrb[0].mxu0
        %v2011 = vadd.f32 0.0, %v2010
        %v2012 = vpop.f32.mrb[0].mxu0
        %2013 = vdwg.mxu0
        %v2015 = vsel %vm1491, %v1866, 0
        %2017 = vmatprep.subr.mxu0 0.0
        %2018 = vmatpush1.msra.mxu0 %v1416
        %2019 = vmatprep.subr.mxu0 0.0
        %2020 = vmatpush1.msra.mxu0 0.0
        %2021 = vmatprep.subr.mxu0 0.0
        %2022 = vmatpush1.msra.mxu0 0.0
        %2023 = vmatprep.subr.mxu0 0.0
        %2024 = vmatpush1.msra.mxu0 0.0
        %2025 = vmatprep.subr.mxu0 0.0
        %2026 = vmatpush1.msra.mxu0 0.0
        %2027 = vmatprep.subr.mxu0 0.0
        %2028 = vmatpush1.msra.mxu0 0.0
        %2029 = vmatprep.subr.mxu0 0.0
        %2030 = vmatpush1.msra.mxu0 0.0
        %2031 = vmatprep.subr.mxu0 0.0
        %2032 = vmatpush1.msra.mxu0 0.0
        %2033 = vmatprep.subr.mxu0 0.0
        %2034 = vmatpush1.msra.mxu0 0.0
        %2035 = vmatprep.subr.mxu0 0.0
        %2036 = vmatpush1.msra.mxu0 0.0
        %2037 = vmatprep.subr.mxu0 0.0
        %2038 = vmatpush1.msra.mxu0 0.0
        %2039 = vmatprep.subr.mxu0 0.0
        %2040 = vmatpush1.msra.mxu0 0.0
        %2041 = vmatprep.subr.mxu0 0.0
        %2042 = vmatpush1.msra.mxu0 0.0
        %2043 = vmatprep.subr.mxu0 0.0
        %2044 = vmatpush1.msra.mxu0 0.0
        %2045 = vmatprep.subr.mxu0 0.0
        %2046 = vmatpush1.msra.mxu0 0.0
        %2047 = vmatprep.subr.mxu0 0.0
        %2048 = vmatpush1.msra.mxu0 0.0
        %2049 = vmatprep.subr.mxu0 0.0
        %2050 = vmatpush1.msra.mxu0 0.0
        %2051 = vmatprep.subr.mxu0 0.0
        %2052 = vmatpush1.msra.mxu0 0.0
        %2053 = vmatprep.subr.mxu0 0.0
        %2054 = vmatpush1.msra.mxu0 0.0
        %2055 = vmatprep.subr.mxu0 0.0
        %2056 = vmatpush1.msra.mxu0 0.0
        %2057 = vmatprep.subr.mxu0 0.0
        %2058 = vmatpush1.msra.mxu0 0.0
        %2059 = vmatprep.subr.mxu0 0.0
        %2060 = vmatpush1.msra.mxu0 0.0
        %2061 = vmatprep.subr.mxu0 0.0
        %2062 = vmatpush1.msra.mxu0 0.0
        %2063 = vmatprep.subr.mxu0 0.0
        %2064 = vmatpush1.msra.mxu0 0.0
        %2065 = vmatprep.subr.mxu0 0.0
        %2066 = vmatpush1.msra.mxu0 0.0
        %2067 = vmatprep.subr.mxu0 0.0
        %2068 = vmatpush1.msra.mxu0 0.0
        %2069 = vmatprep.subr.mxu0 0.0
        %2070 = vmatpush1.msra.mxu0 0.0
        %2071 = vmatprep.subr.mxu0 0.0
        %2072 = vmatpush1.msra.mxu0 0.0
        %2073 = vmatprep.subr.mxu0 0.0
        %2074 = vmatpush1.msra.mxu0 0.0
        %2075 = vmatprep.subr.mxu0 0.0
        %2076 = vmatpush1.msra.mxu0 0.0
        %2077 = vmatprep.subr.mxu0 0.0
        %2078 = vmatpush1.msra.mxu0 0.0
        %2079 = vmatprep.subr.mxu0 0.0
        %2080 = vmatpush1.msra.mxu0 0.0
        %2081 = vmatprep.mubr.f32.mxu0 0.0
        %2082 = vmatmul.mubr.f32.gmra.mrb[0].mxu0 %v2015
        %v2083 = vpop.f32.mrb[0].mxu0
        %v2084 = vadd.f32 0.0, %v2083
        %v2085 = vpop.f32.mrb[0].mxu0
        %2086 = vdwg.mxu0
        %v2088 = vsel %vm1491, %v1867, 0
        %2090 = vmatprep.subr.mxu0 0.0
        %2091 = vmatpush1.msra.mxu0 %v1486
        %2092 = vmatprep.subr.mxu0 0.0
        %2093 = vmatpush1.msra.mxu0 0.0
        %2094 = vmatprep.subr.mxu0 0.0
        %2095 = vmatpush1.msra.mxu0 0.0
        %2096 = vmatprep.subr.mxu0 0.0
        %2097 = vmatpush1.msra.mxu0 0.0
        %2098 = vmatprep.subr.mxu0 0.0
        %2099 = vmatpush1.msra.mxu0 0.0
        %2100 = vmatprep.subr.mxu0 0.0
        %2101 = vmatpush1.msra.mxu0 0.0
        %2102 = vmatprep.subr.mxu0 0.0
        %2103 = vmatpush1.msra.mxu0 0.0
        %2104 = vmatprep.subr.mxu0 0.0
        %2105 = vmatpush1.msra.mxu0 0.0
        %2106 = vmatprep.subr.mxu0 0.0
        %2107 = vmatpush1.msra.mxu0 0.0
        %2108 = vmatprep.subr.mxu0 0.0
        %2109 = vmatpush1.msra.mxu0 0.0
        %2110 = vmatprep.subr.mxu0 0.0
        %2111 = vmatpush1.msra.mxu0 0.0
        %2112 = vmatprep.subr.mxu0 0.0
        %2113 = vmatpush1.msra.mxu0 0.0
        %2114 = vmatprep.subr.mxu0 0.0
        %2115 = vmatpush1.msra.mxu0 0.0
        %2116 = vmatprep.subr.mxu0 0.0
        %2117 = vmatpush1.msra.mxu0 0.0
        %2118 = vmatprep.subr.mxu0 0.0
        %2119 = vmatpush1.msra.mxu0 0.0
        %2120 = vmatprep.subr.mxu0 0.0
        %2121 = vmatpush1.msra.mxu0 0.0
        %2122 = vmatprep.subr.mxu0 0.0
        %2123 = vmatpush1.msra.mxu0 0.0
        %2124 = vmatprep.subr.mxu0 0.0
        %2125 = vmatpush1.msra.mxu0 0.0
        %2126 = vmatprep.subr.mxu0 0.0
        %2127 = vmatpush1.msra.mxu0 0.0
        %2128 = vmatprep.subr.mxu0 0.0
        %2129 = vmatpush1.msra.mxu0 0.0
        %2130 = vmatprep.subr.mxu0 0.0
        %2131 = vmatpush1.msra.mxu0 0.0
        %2132 = vmatprep.subr.mxu0 0.0
        %2133 = vmatpush1.msra.mxu0 0.0
        %2134 = vmatprep.subr.mxu0 0.0
        %2135 = vmatpush1.msra.mxu0 0.0
        %2136 = vmatprep.subr.mxu0 0.0
        %2137 = vmatpush1.msra.mxu0 0.0
        %2138 = vmatprep.subr.mxu0 0.0
        %2139 = vmatpush1.msra.mxu0 0.0
        %2140 = vmatprep.subr.mxu0 0.0
        %2141 = vmatpush1.msra.mxu0 0.0
        %2142 = vmatprep.subr.mxu0 0.0
        %2143 = vmatpush1.msra.mxu0 0.0
        %2144 = vmatprep.subr.mxu0 0.0
        %2145 = vmatpush1.msra.mxu0 0.0
        %2146 = vmatprep.subr.mxu0 0.0
        %2147 = vmatpush1.msra.mxu0 0.0
        %2148 = vmatprep.subr.mxu0 0.0
        %2149 = vmatpush1.msra.mxu0 0.0
        %2150 = vmatprep.subr.mxu0 0.0
        %2151 = vmatpush1.msra.mxu0 0.0
        %2152 = vmatprep.subr.mxu0 0.0
        %2153 = vmatpush1.msra.mxu0 0.0
        %2154 = vmatprep.mubr.f32.mxu0 0.0
        %2155 = vmatmul.mubr.f32.gmra.mrb[0].mxu0 %v2088
        %v2156 = vpop.f32.mrb[0].mxu0
        %v2157 = vadd.f32 0.0, %v2156
        %v2158 = vpop.f32.mrb[0].mxu0
        %2159 = vdwg.mxu0
        %v2160 = vld [vmem:[%s6] sm:$0xff]
        %v2161 = vld [vmem:[%s6 + $0x8] sm:$0xff]
        %v2162 = vld [vmem:[%s6 + $0x10] sm:$0xff]
        %v2163 = vld [vmem:[%s6 + $0x18] sm:$0xff]
        %v2165 = vsel %vm1491, %v1938, 0
        %2167 = vmatprep.subr.mxu0 0.0
        %2168 = vmatpush1.msra.mxu0 %v2160
        %2169 = vmatprep.subr.mxu0 0.0
        %2170 = vmatpush1.msra.mxu0 0.0
        %2171 = vmatprep.subr.mxu0 0.0
        %2172 = vmatpush1.msra.mxu0 0.0
        %2173 = vmatprep.subr.mxu0 0.0
        %2174 = vmatpush1.msra.mxu0 0.0
        %2175 = vmatprep.subr.mxu0 0.0
        %2176 = vmatpush1.msra.mxu0 0.0
        %2177 = vmatprep.subr.mxu0 0.0
        %2178 = vmatpush1.msra.mxu0 0.0
        %2179 = vmatprep.subr.mxu0 0.0
        %2180 = vmatpush1.msra.mxu0 0.0
        %2181 = vmatprep.subr.mxu0 0.0
        %2182 = vmatpush1.msra.mxu0 0.0
        %2183 = vmatprep.subr.mxu0 0.0
        %2184 = vmatpush1.msra.mxu0 0.0
        %2185 = vmatprep.subr.mxu0 0.0
        %2186 = vmatpush1.msra.mxu0 0.0
        %2187 = vmatprep.subr.mxu0 0.0
        %2188 = vmatpush1.msra.mxu0 0.0
        %2189 = vmatprep.subr.mxu0 0.0
        %2190 = vmatpush1.msra.mxu0 0.0
        %2191 = vmatprep.subr.mxu0 0.0
        %2192 = vmatpush1.msra.mxu0 0.0
        %2193 = vmatprep.subr.mxu0 0.0
        %2194 = vmatpush1.msra.mxu0 0.0
        %2195 = vmatprep.subr.mxu0 0.0
        %2196 = vmatpush1.msra.mxu0 0.0
        %2197 = vmatprep.subr.mxu0 0.0
        %2198 = vmatpush1.msra.mxu0 0.0
        %2199 = vmatprep.subr.mxu0 0.0
        %2200 = vmatpush1.msra.mxu0 0.0
        %2201 = vmatprep.subr.mxu0 0.0
        %2202 = vmatpush1.msra.mxu0 0.0
        %2203 = vmatprep.subr.mxu0 0.0
        %2204 = vmatpush1.msra.mxu0 0.0
        %2205 = vmatprep.subr.mxu0 0.0
        %2206 = vmatpush1.msra.mxu0 0.0
        %2207 = vmatprep.subr.mxu0 0.0
        %2208 = vmatpush1.msra.mxu0 0.0
        %2209 = vmatprep.subr.mxu0 0.0
        %2210 = vmatpush1.msra.mxu0 0.0
        %2211 = vmatprep.subr.mxu0 0.0
        %2212 = vmatpush1.msra.mxu0 0.0
        %2213 = vmatprep.subr.mxu0 0.0
        %2214 = vmatpush1.msra.mxu0 0.0
        %2215 = vmatprep.subr.mxu0 0.0
        %2216 = vmatpush1.msra.mxu0 0.0
        %2217 = vmatprep.subr.mxu0 0.0
        %2218 = vmatpush1.msra.mxu0 0.0
        %2219 = vmatprep.subr.mxu0 0.0
        %2220 = vmatpush1.msra.mxu0 0.0
        %2221 = vmatprep.subr.mxu0 0.0
        %2222 = vmatpush1.msra.mxu0 0.0
        %2223 = vmatprep.subr.mxu0 0.0
        %2224 = vmatpush1.msra.mxu0 0.0
        %2225 = vmatprep.subr.mxu0 0.0
        %2226 = vmatpush1.msra.mxu0 0.0
        %2227 = vmatprep.subr.mxu0 0.0
        %2228 = vmatpush1.msra.mxu0 0.0
        %2229 = vmatprep.subr.mxu0 0.0
        %2230 = vmatpush1.msra.mxu0 0.0
        %2231 = vmatprep.mubr.f32.mxu0 0.0
        %2232 = vmatmul.mubr.f32.gmra.mrb[0].mxu0 %v2165
        %v2233 = vpop.f32.mrb[0].mxu0
        %v2234 = vadd.f32 0.0, %v2233
        %v2235 = vpop.f32.mrb[0].mxu0
        %2236 = vdwg.mxu0
        %v2238 = vsel %vm1491, %v2011, 0
        %2240 = vmatprep.subr.mxu0 0.0
        %2241 = vmatpush1.msra.mxu0 %v2161
        %2242 = vmatprep.subr.mxu0 0.0
        %2243 = vmatpush1.msra.mxu0 0.0
        %2244 = vmatprep.subr.mxu0 0.0
        %2245 = vmatpush1.msra.mxu0 0.0
        %2246 = vmatprep.subr.mxu0 0.0
        %2247 = vmatpush1.msra.mxu0 0.0
        %2248 = vmatprep.subr.mxu0 0.0
        %2249 = vmatpush1.msra.mxu0 0.0
        %2250 = vmatprep.subr.mxu0 0.0
        %2251 = vmatpush1.msra.mxu0 0.0
        %2252 = vmatprep.subr.mxu0 0.0
        %2253 = vmatpush1.msra.mxu0 0.0
        %2254 = vmatprep.subr.mxu0 0.0
        %2255 = vmatpush1.msra.mxu0 0.0
        %2256 = vmatprep.subr.mxu0 0.0
        %2257 = vmatpush1.msra.mxu0 0.0
        %2258 = vmatprep.subr.mxu0 0.0
        %2259 = vmatpush1.msra.mxu0 0.0
        %2260 = vmatprep.subr.mxu0 0.0
        %2261 = vmatpush1.msra.mxu0 0.0
        %2262 = vmatprep.subr.mxu0 0.0
        %2263 = vmatpush1.msra.mxu0 0.0
        %2264 = vmatprep.subr.mxu0 0.0
        %2265 = vmatpush1.msra.mxu0 0.0
        %2266 = vmatprep.subr.mxu0 0.0
        %2267 = vmatpush1.msra.mxu0 0.0
        %2268 = vmatprep.subr.mxu0 0.0
        %2269 = vmatpush1.msra.mxu0 0.0
        %2270 = vmatprep.subr.mxu0 0.0
        %2271 = vmatpush1.msra.mxu0 0.0
        %2272 = vmatprep.subr.mxu0 0.0
        %2273 = vmatpush1.msra.mxu0 0.0
        %2274 = vmatprep.subr.mxu0 0.0
        %2275 = vmatpush1.msra.mxu0 0.0
        %2276 = vmatprep.subr.mxu0 0.0
        %2277 = vmatpush1.msra.mxu0 0.0
        %2278 = vmatprep.subr.mxu0 0.0
        %2279 = vmatpush1.msra.mxu0 0.0
        %2280 = vmatprep.subr.mxu0 0.0
        %2281 = vmatpush1.msra.mxu0 0.0
        %2282 = vmatprep.subr.mxu0 0.0
        %2283 = vmatpush1.msra.mxu0 0.0
        %2284 = vmatprep.subr.mxu0 0.0
        %2285 = vmatpush1.msra.mxu0 0.0
        %2286 = vmatprep.subr.mxu0 0.0
        %2287 = vmatpush1.msra.mxu0 0.0
        %2288 = vmatprep.subr.mxu0 0.0
        %2289 = vmatpush1.msra.mxu0 0.0
        %2290 = vmatprep.subr.mxu0 0.0
        %2291 = vmatpush1.msra.mxu0 0.0
        %2292 = vmatprep.subr.mxu0 0.0
        %2293 = vmatpush1.msra.mxu0 0.0
        %2294 = vmatprep.subr.mxu0 0.0
        %2295 = vmatpush1.msra.mxu0 0.0
        %2296 = vmatprep.subr.mxu0 0.0
        %2297 = vmatpush1.msra.mxu0 0.0
        %2298 = vmatprep.subr.mxu0 0.0
        %2299 = vmatpush1.msra.mxu0 0.0
        %2300 = vmatprep.subr.mxu0 0.0
        %2301 = vmatpush1.msra.mxu0 0.0
        %2302 = vmatprep.subr.mxu0 0.0
        %2303 = vmatpush1.msra.mxu0 0.0
        %2304 = vmatprep.mubr.f32.mxu0 0.0
        %2305 = vmatmul.mubr.f32.gmra.mrb[0].mxu0 %v2238
        %v2306 = vpop.f32.mrb[0].mxu0
        %v2307 = vadd.f32 0.0, %v2306
        %v2308 = vpop.f32.mrb[0].mxu0
        %2309 = vdwg.mxu0
        %v2311 = vsel %vm1491, %v2084, 0
        %2313 = vmatprep.subr.mxu0 0.0
        %2314 = vmatpush1.msra.mxu0 %v2162
        %2315 = vmatprep.subr.mxu0 0.0
        %2316 = vmatpush1.msra.mxu0 0.0
        %2317 = vmatprep.subr.mxu0 0.0
        %2318 = vmatpush1.msra.mxu0 0.0
        %2319 = vmatprep.subr.mxu0 0.0
        %2320 = vmatpush1.msra.mxu0 0.0
        %2321 = vmatprep.subr.mxu0 0.0
        %2322 = vmatpush1.msra.mxu0 0.0
        %2323 = vmatprep.subr.mxu0 0.0
        %2324 = vmatpush1.msra.mxu0 0.0
        %2325 = vmatprep.subr.mxu0 0.0
        %2326 = vmatpush1.msra.mxu0 0.0
        %2327 = vmatprep.subr.mxu0 0.0
        %2328 = vmatpush1.msra.mxu0 0.0
        %2329 = vmatprep.subr.mxu0 0.0
        %2330 = vmatpush1.msra.mxu0 0.0
        %2331 = vmatprep.subr.mxu0 0.0
        %2332 = vmatpush1.msra.mxu0 0.0
        %2333 = vmatprep.subr.mxu0 0.0
        %2334 = vmatpush1.msra.mxu0 0.0
        %2335 = vmatprep.subr.mxu0 0.0
        %2336 = vmatpush1.msra.mxu0 0.0
        %2337 = vmatprep.subr.mxu0 0.0
        %2338 = vmatpush1.msra.mxu0 0.0
        %2339 = vmatprep.subr.mxu0 0.0
        %2340 = vmatpush1.msra.mxu0 0.0
        %2341 = vmatprep.subr.mxu0 0.0
        %2342 = vmatpush1.msra.mxu0 0.0
        %2343 = vmatprep.subr.mxu0 0.0
        %2344 = vmatpush1.msra.mxu0 0.0
        %2345 = vmatprep.subr.mxu0 0.0
        %2346 = vmatpush1.msra.mxu0 0.0
        %2347 = vmatprep.subr.mxu0 0.0
        %2348 = vmatpush1.msra.mxu0 0.0
        %2349 = vmatprep.subr.mxu0 0.0
        %2350 = vmatpush1.msra.mxu0 0.0
        %2351 = vmatprep.subr.mxu0 0.0
        %2352 = vmatpush1.msra.mxu0 0.0
        %2353 = vmatprep.subr.mxu0 0.0
        %2354 = vmatpush1.msra.mxu0 0.0
        %2355 = vmatprep.subr.mxu0 0.0
        %2356 = vmatpush1.msra.mxu0 0.0
        %2357 = vmatprep.subr.mxu0 0.0
        %2358 = vmatpush1.msra.mxu0 0.0
        %2359 = vmatprep.subr.mxu0 0.0
        %2360 = vmatpush1.msra.mxu0 0.0
        %2361 = vmatprep.subr.mxu0 0.0
        %2362 = vmatpush1.msra.mxu0 0.0
        %2363 = vmatprep.subr.mxu0 0.0
        %2364 = vmatpush1.msra.mxu0 0.0
        %2365 = vmatprep.subr.mxu0 0.0
        %2366 = vmatpush1.msra.mxu0 0.0
        %2367 = vmatprep.subr.mxu0 0.0
        %2368 = vmatpush1.msra.mxu0 0.0
        %2369 = vmatprep.subr.mxu0 0.0
        %2370 = vmatpush1.msra.mxu0 0.0
        %2371 = vmatprep.subr.mxu0 0.0
        %2372 = vmatpush1.msra.mxu0 0.0
        %2373 = vmatprep.subr.mxu0 0.0
        %2374 = vmatpush1.msra.mxu0 0.0
        %2375 = vmatprep.subr.mxu0 0.0
        %2376 = vmatpush1.msra.mxu0 0.0
        %2377 = vmatprep.mubr.f32.mxu0 0.0
        %2378 = vmatmul.mubr.f32.gmra.mrb[0].mxu0 %v2311
        %v2379 = vpop.f32.mrb[0].mxu0
        %v2380 = vadd.f32 0.0, %v2379
        %v2381 = vpop.f32.mrb[0].mxu0
        %2382 = vdwg.mxu0
        %v2384 = vsel %vm1491, %v2157, 0
        %2386 = vmatprep.subr.mxu0 0.0
        %2387 = vmatpush1.msra.mxu0 %v2163
        %2388 = vmatprep.subr.mxu0 0.0
        %2389 = vmatpush1.msra.mxu0 0.0
        %2390 = vmatprep.subr.mxu0 0.0
        %2391 = vmatpush1.msra.mxu0 0.0
        %2392 = vmatprep.subr.mxu0 0.0
        %2393 = vmatpush1.msra.mxu0 0.0
        %2394 = vmatprep.subr.mxu0 0.0
        %2395 = vmatpush1.msra.mxu0 0.0
        %2396 = vmatprep.subr.mxu0 0.0
        %2397 = vmatpush1.msra.mxu0 0.0
        %2398 = vmatprep.subr.mxu0 0.0
        %2399 = vmatpush1.msra.mxu0 0.0
        %2400 = vmatprep.subr.mxu0 0.0
        %2401 = vmatpush1.msra.mxu0 0.0
        %2402 = vmatprep.subr.mxu0 0.0
        %2403 = vmatpush1.msra.mxu0 0.0
        %2404 = vmatprep.subr.mxu0 0.0
        %2405 = vmatpush1.msra.mxu0 0.0
        %2406 = vmatprep.subr.mxu0 0.0
        %2407 = vmatpush1.msra.mxu0 0.0
        %2408 = vmatprep.subr.mxu0 0.0
        %2409 = vmatpush1.msra.mxu0 0.0
        %2410 = vmatprep.subr.mxu0 0.0
        %2411 = vmatpush1.msra.mxu0 0.0
        %2412 = vmatprep.subr.mxu0 0.0
        %2413 = vmatpush1.msra.mxu0 0.0
        %2414 = vmatprep.subr.mxu0 0.0
        %2415 = vmatpush1.msra.mxu0 0.0
        %2416 = vmatprep.subr.mxu0 0.0
        %2417 = vmatpush1.msra.mxu0 0.0
        %2418 = vmatprep.subr.mxu0 0.0
        %2419 = vmatpush1.msra.mxu0 0.0
        %2420 = vmatprep.subr.mxu0 0.0
        %2421 = vmatpush1.msra.mxu0 0.0
        %2422 = vmatprep.subr.mxu0 0.0
        %2423 = vmatpush1.msra.mxu0 0.0
        %2424 = vmatprep.subr.mxu0 0.0
        %2425 = vmatpush1.msra.mxu0 0.0
        %2426 = vmatprep.subr.mxu0 0.0
        %2427 = vmatpush1.msra.mxu0 0.0
        %2428 = vmatprep.subr.mxu0 0.0
        %2429 = vmatpush1.msra.mxu0 0.0
        %2430 = vmatprep.subr.mxu0 0.0
        %2431 = vmatpush1.msra.mxu0 0.0
        %2432 = vmatprep.subr.mxu0 0.0
        %2433 = vmatpush1.msra.mxu0 0.0
        %2434 = vmatprep.subr.mxu0 0.0
        %2435 = vmatpush1.msra.mxu0 0.0
        %2436 = vmatprep.subr.mxu0 0.0
        %2437 = vmatpush1.msra.mxu0 0.0
        %2438 = vmatprep.subr.mxu0 0.0
        %2439 = vmatpush1.msra.mxu0 0.0
        %2440 = vmatprep.subr.mxu0 0.0
        %2441 = vmatpush1.msra.mxu0 0.0
        %2442 = vmatprep.subr.mxu0 0.0
        %2443 = vmatpush1.msra.mxu0 0.0
        %2444 = vmatprep.subr.mxu0 0.0
        %2445 = vmatpush1.msra.mxu0 0.0
        %2446 = vmatprep.subr.mxu0 0.0
        %2447 = vmatpush1.msra.mxu0 0.0
        %2448 = vmatprep.subr.mxu0 0.0
        %2449 = vmatpush1.msra.mxu0 0.0
        %2450 = vmatprep.mubr.f32.mxu0 0.0
        %2451 = vmatmul.mubr.f32.gmra.mrb[0].mxu0 %v2384
        %v2452 = vpop.f32.mrb[0].mxu0
        %v2453 = vadd.f32 0.0, %v2452
        %v2454 = vpop.f32.mrb[0].mxu0
        %2455 = vdwg.mxu0
        %v2456 = vsel %vm292, %v2234, 0.0
        %v2457 = vsel %vm292, %v2307, 0.0
        %v2458 = vadd.f32 %v2456, %v2457
        %v2459 = vsel %vm292, %v2380, 0.0
        %v2460 = vadd.f32 %v2458, %v2459
        %v2461 = vsel %vm292, %v2453, 0.0
        %v2462 = vadd.f32 %v2460, %v2461
        %v2463 = vld [vmem:[%s3 + $0x6] sm:$0x1]
        %v2464 = vlaneseq
        %v2465 = vshrl.u32 %v2464, 7
        %v2466 = vsub.s32 0, %v2465
        %v2467 = vrot.slane %v2463, %v2466
        %v2468 = vadd.f32 %v2462, %v2467
        %v2469 = vld [vmem:[%s3 + $0x7] sm:$0x1]
        %v2470 = vld [vmem:[%s3 + $0x8] sm:$0x1]
        %v2471 = vlaneseq
        %v2472 = vshrl.u32 %v2471, 7
        %v2473 = vsub.s32 0, %v2472
        %v2474 = vrot.slane %v2469, %v2473
        %v2475 = vmul.f32 %v503, %v2474
        %v2476 = vlaneseq
        %v2477 = vshrl.u32 %v2476, 7
        %v2478 = vsub.s32 0, %v2477
        %v2479 = vrot.slane %v2470, %v2478
        %v2480 = vadd.f32 %v2475, %v2479
        %v2481 = vld [vmem:[%s2 + $0x60] sm:$0xff]
        %v2482 = vld [vmem:[%s2 + $0x68] sm:$0xff]
        %v2483 = vld [vmem:[%s2 + $0x70] sm:$0xff]
        %v2484 = vld [vmem:[%s2 + $0x78] sm:$0xff]
        %v2485 = vld [vmem:[%s3 + $0x9] sm:$0x1]
        %v2486 = vlaneseq
        %v2487 = vshrl.u32 %v2486, 7
        %v2488 = vsub.s32 0, %v2487
        %v2489 = vrot.slane %v2485, %v2488
        %v2491 = vsel %vm292, %v2480, 0
        %2493 = vmatprep.subr.mxu0 0.0
        %2494 = vmatpush1.msra.mxu0 %v2481
        %2495 = vmatprep.subr.mxu0 0.0
        %2496 = vmatpush1.msra.mxu0 %v2482
        %2497 = vmatprep.subr.mxu0 0.0
        %2498 = vmatpush1.msra.mxu0 %v2483
        %2499 = vmatprep.subr.mxu0 0.0
        %2500 = vmatpush1.msra.mxu0 %v2484
        %2501 = vmatprep.subr.mxu0 0.0
        %2502 = vmatpush1.msra.mxu0 0.0
        %2503 = vmatprep.subr.mxu0 0.0
        %2504 = vmatpush1.msra.mxu0 0.0
        %2505 = vmatprep.subr.mxu0 0.0
        %2506 = vmatpush1.msra.mxu0 0.0
        %2507 = vmatprep.subr.mxu0 0.0
        %2508 = vmatpush1.msra.mxu0 0.0
        %2509 = vmatprep.subr.mxu0 0.0
        %2510 = vmatpush1.msra.mxu0 0.0
        %2511 = vmatprep.subr.mxu0 0.0
        %2512 = vmatpush1.msra.mxu0 0.0
        %2513 = vmatprep.subr.mxu0 0.0
        %2514 = vmatpush1.msra.mxu0 0.0
        %2515 = vmatprep.subr.mxu0 0.0
        %2516 = vmatpush1.msra.mxu0 0.0
        %2517 = vmatprep.subr.mxu0 0.0
        %2518 = vmatpush1.msra.mxu0 0.0
        %2519 = vmatprep.subr.mxu0 0.0
        %2520 = vmatpush1.msra.mxu0 0.0
        %2521 = vmatprep.subr.mxu0 0.0
        %2522 = vmatpush1.msra.mxu0 0.0
        %2523 = vmatprep.subr.mxu0 0.0
        %2524 = vmatpush1.msra.mxu0 0.0
        %2525 = vmatprep.subr.mxu0 0.0
        %2526 = vmatpush1.msra.mxu0 0.0
        %2527 = vmatprep.subr.mxu0 0.0
        %2528 = vmatpush1.msra.mxu0 0.0
        %2529 = vmatprep.subr.mxu0 0.0
        %2530 = vmatpush1.msra.mxu0 0.0
        %2531 = vmatprep.subr.mxu0 0.0
        %2532 = vmatpush1.msra.mxu0 0.0
        %2533 = vmatprep.subr.mxu0 0.0
        %2534 = vmatpush1.msra.mxu0 0.0
        %2535 = vmatprep.subr.mxu0 0.0
        %2536 = vmatpush1.msra.mxu0 0.0
        %2537 = vmatprep.subr.mxu0 0.0
        %2538 = vmatpush1.msra.mxu0 0.0
        %2539 = vmatprep.subr.mxu0 0.0
        %2540 = vmatpush1.msra.mxu0 0.0
        %2541 = vmatprep.subr.mxu0 0.0
        %2542 = vmatpush1.msra.mxu0 0.0
        %2543 = vmatprep.subr.mxu0 0.0
        %2544 = vmatpush1.msra.mxu0 0.0
        %2545 = vmatprep.subr.mxu0 0.0
        %2546 = vmatpush1.msra.mxu0 0.0
        %2547 = vmatprep.subr.mxu0 0.0
        %2548 = vmatpush1.msra.mxu0 0.0
        %2549 = vmatprep.subr.mxu0 0.0
        %2550 = vmatpush1.msra.mxu0 0.0
        %2551 = vmatprep.subr.mxu0 0.0
        %2552 = vmatpush1.msra.mxu0 0.0
        %2553 = vmatprep.subr.mxu0 0.0
        %2554 = vmatpush1.msra.mxu0 0.0
        %2555 = vmatprep.subr.mxu0 0.0
        %2556 = vmatpush1.msra.mxu0 0.0
        %2557 = vmatprep.mubr.f32.mxu0 0.0
        %2558 = vmatmul.mubr.f32.gmra.mrb[0].mxu0 %v2491
        %v2559 = vpop.f32.mrb[0].mxu0
        %v2560 = vadd.f32 %v2489, %v2559
        %v2561 = vpop.f32.mrb[0].mxu0
        %2562 = vdwg.mxu0
        %v2563 = vmul.f32 %v2560, %v2560
        %v2564 = vmul.f32 %v2560, %v2563
        %v2565 = vmul.f32 %v2564, 0.044715
        %v2566 = vadd.f32 %v2560, %v2565
        %v2567 = vmul.f32 %v2566, 0.7978846
        %v2568 = vtanh.pop %v2567
        %v2569 = vadd.f32 %v2568, 1.0
        %v2570 = vmul.f32 %v2569, 0.5
        %v2571 = vmul.f32 %v2560, %v2570
        %v2572 = vld [vmem:[%s2 + $0x80] sm:$0xff]
        %v2573 = vld [vmem:[%s2 + $0x88] sm:$0xff]
        %v2574 = vld [vmem:[%s2 + $0x90] sm:$0xff]
        %v2575 = vld [vmem:[%s2 + $0x98] sm:$0xff]
        %v2576 = vld [vmem:[%s3 + $0xa] sm:$0x1]
        %v2577 = vlaneseq
        %v2578 = vshrl.u32 %v2577, 7
        %v2579 = vsub.s32 0, %v2578
        %v2580 = vrot.slane %v2576, %v2579
        %2581 = vmatprep.subr.mxu0 0.0
        %2582 = vmatpush1.msra.mxu0 %v2572
        %2583 = vmatprep.subr.mxu0 0.0
        %2584 = vmatpush1.msra.mxu0 %v2573
        %2585 = vmatprep.subr.mxu0 0.0
        %2586 = vmatpush1.msra.mxu0 %v2574
        %2587 = vmatprep.subr.mxu0 0.0
        %2588 = vmatpush1.msra.mxu0 %v2575
        %2589 = vmatprep.subr.mxu0 0.0
        %2590 = vmatpush1.msra.mxu0 0.0
        %2591 = vmatprep.subr.mxu0 0.0
        %2592 = vmatpush1.msra.mxu0 0.0
        %2593 = vmatprep.subr.mxu0 0.0
        %2594 = vmatpush1.msra.mxu0 0.0
        %2595 = vmatprep.subr.mxu0 0.0
        %2596 = vmatpush1.msra.mxu0 0.0
        %2597 = vmatprep.subr.mxu0 0.0
        %2598 = vmatpush1.msra.mxu0 0.0
        %2599 = vmatprep.subr.mxu0 0.0
        %2600 = vmatpush1.msra.mxu0 0.0
        %2601 = vmatprep.subr.mxu0 0.0
        %2602 = vmatpush1.msra.mxu0 0.0
        %2603 = vmatprep.subr.mxu0 0.0
        %2604 = vmatpush1.msra.mxu0 0.0
        %2605 = vmatprep.subr.mxu0 0.0
        %2606 = vmatpush1.msra.mxu0 0.0
        %2607 = vmatprep.subr.mxu0 0.0
        %2608 = vmatpush1.msra.mxu0 0.0
        %2609 = vmatprep.subr.mxu0 0.0
        %2610 = vmatpush1.msra.mxu0 0.0
        %2611 = vmatprep.subr.mxu0 0.0
        %2612 = vmatpush1.msra.mxu0 0.0
        %2613 = vmatprep.subr.mxu0 0.0
        %2614 = vmatpush1.msra.mxu0 0.0
        %2615 = vmatprep.subr.mxu0 0.0
        %2616 = vmatpush1.msra.mxu0 0.0
        %2617 = vmatprep.subr.mxu0 0.0
        %2618 = vmatpush1.msra.mxu0 0.0
        %2619 = vmatprep.subr.mxu0 0.0
        %2620 = vmatpush1.msra.mxu0 0.0
        %2621 = vmatprep.subr.mxu0 0.0
        %2622 = vmatpush1.msra.mxu0 0.0
        %2623 = vmatprep.subr.mxu0 0.0
        %2624 = vmatpush1.msra.mxu0 0.0
        %2625 = vmatprep.subr.mxu0 0.0
        %2626 = vmatpush1.msra.mxu0 0.0
        %2627 = vmatprep.subr.mxu0 0.0
        %2628 = vmatpush1.msra.mxu0 0.0
        %2629 = vmatprep.subr.mxu0 0.0
        %2630 = vmatpush1.msra.mxu0 0.0
        %2631 = vmatprep.subr.mxu0 0.0
        %2632 = vmatpush1.msra.mxu0 0.0
        %2633 = vmatprep.subr.mxu0 0.0
        %2634 = vmatpush1.msra.mxu0 0.0
        %2635 = vmatprep.subr.mxu0 0.0
        %2636 = vmatpush1.msra.mxu0 0.0
        %2637 = vmatprep.subr.mxu0 0.0
        %2638 = vmatpush1.msra.mxu0 0.0
        %2639 = vmatprep.subr.mxu0 0.0
        %2640 = vmatpush1.msra.mxu0 0.0
        %2641 = vmatprep.subr.mxu0 0.0
        %2642 = vmatpush1.msra.mxu0 0.0
        %2643 = vmatprep.subr.mxu0 0.0
        %2644 = vmatpush1.msra.mxu0 0.0
        %2645 = vmatprep.mubr.f32.mxu0 0.0
        %2646 = vmatmul.mubr.f32.gmra.mrb[0].mxu0 %v2491
        %v2647 = vpop.f32.mrb[0].mxu0
        %v2648 = vadd.f32 %v2580, %v2647
        %v2649 = vpop.f32.mrb[0].mxu0
        %2650 = vdwg.mxu0
        %v2651 = vmul.f32 %v2648, %v2648
        %v2652 = vmul.f32 %v2648, %v2651
        %v2653 = vmul.f32 %v2652, 0.044715
        %v2654 = vadd.f32 %v2648, %v2653
        %v2655 = vmul.f32 %v2654, 0.7978846
        %v2656 = vtanh.pop %v2655
        %v2657 = vadd.f32 %v2656, 1.0
        %v2658 = vmul.f32 %v2657, 0.5
        %v2659 = vmul.f32 %v2648, %v2658
        %v2660 = vld [vmem:[%s3 + $0xb] sm:$0x1]
        %v2661 = vld [vmem:[%s3 + $0xc] sm:$0x1]
        %v2662 = vsel %vm292, %v2659, 0.0
        %2663 = vadd.xlane.f32.xlu0 %v2662
        %v2664 = vpop.xlane.xlu0 %2663
        %v2665 = vmul.f32 %v2664, %v296
        %v2666 = vsub.f32 %v2659, %v2665
        %v2667 = vmul.f32 %v2666, %v2666
        %v2668 = vsel %vm292, %v2667, 0.0
        %2669 = vadd.xlane.f32.xlu0 %v2668
        %v2670 = vpop.xlane.xlu0 %2669
        %v2671 = vmul.f32 %v2670, %v296
        %v2672 = vadd.f32 %v2671, 1e-12
        %v2673 = vrsqrt.pop %v2672
        %v2674 = vmul.f32 %v2666, %v2673
        %v2675 = vlaneseq
        %v2676 = vshrl.u32 %v2675, 7
        %v2677 = vsub.s32 0, %v2676
        %v2678 = vrot.slane %v2660, %v2677
        %v2679 = vmul.f32 %v2674, %v2678
        %v2680 = vlaneseq
        %v2681 = vshrl.u32 %v2680, 7
        %v2682 = vsub.s32 0, %v2681
        %v2683 = vrot.slane %v2661, %v2682
        %v2684 = vadd.f32 %v2679, %v2683
        %v2685 = vld [vmem:[%s2 + $0xa0] sm:$0x7]
        %v2686 = vld [vmem:[%s3 + $0xd] sm:$0x1]
        %v2687 = vlaneseq
        %v2688 = vshrl.u32 %v2687, 7
        %vm2689 = vcmp.gt.s32.totalorder %v2688, 0
        %v2690 = vrot.slane %v2684, 7
        %v2691 = vsel %vm2689, %v2690, 0.0
        %vm2692 = vcmp.lt.s32.totalorder %v2688, 7
        %v2693 = vrot.slane %v2684, 1
        %v2694 = vsel %vm2692, %v2693, 0.0
        %v2695 = vlaneseq
        %v2696 = vshrl.u32 %v2695, 7
        %v2697 = vsub.s32 0, %v2696
        %v2698 = vrot.slane %v2685, %v2697
        %v2699 = vmul.f32 %v2691, %v2698
        %v2700 = vlaneseq
        %v2701 = vshrl.u32 %v2700, 7
        %v2702 = vsub.s32 1, %v2701
        %v2703 = vrot.slane %v2685, %v2702
        %v2704 = vmul.f32 %v2684, %v2703
        %v2705 = vadd.f32 %v2699, %v2704
        %v2706 = vlaneseq
        %v2707 = vshrl.u32 %v2706, 7
        %v2708 = vsub.s32 2, %v2707
        %v2709 = vrot.slane %v2685, %v2708
        %v2710 = vmul.f32 %v2694, %v2709
        %v2711 = vadd.f32 %v2705, %v2710
        %v2712 = vlaneseq
        %v2713 = vshrl.u32 %v2712, 7
        %v2714 = vsub.s32 0, %v2713
        %v2715 = vrot.slane %v2686, %v2714
        %v2716 = vadd.f32 %v2711, %v2715
        %v2717 = vmul.f32 %v2571, %v2716
        %v2718 = vld [vmem:[%s2 + $0xa8] sm:$0xff]
        %v2719 = vld [vmem:[%s2 + $0xb0] sm:$0xff]
        %v2720 = vld [vmem:[%s2 + $0xb8] sm:$0xff]
        %v2721 = vld [vmem:[%s2 + $0xc0] sm:$0xff]
        %v2722 = vld [vmem:[%s3 + $0xe] sm:$0x1]
        %v2723 = vlaneseq
        %v2724 = vshrl.u32 %v2723, 7
        %v2725 = vsub.s32 0, %v2724
        %v2726 = vrot.slane %v2722, %v2725
        %v2728 = vsel %vm292, %v2717, 0
        %2730 = vmatprep.subr.mxu0 0.0
        %2731 = vmatpush1.msra.mxu0 %v2718
        %2732 = vmatprep.subr.mxu0 0.0
        %2733 = vmatpush1.msra.mxu0 %v2719
        %2734 = vmatprep.subr.mxu0 0.0
        %2735 = vmatpush1.msra.mxu0 %v2720
        %2736 = vmatprep.subr.mxu0 0.0
        %2737 = vmatpush1.msra.mxu0 %v2721
        %2738 = vmatprep.subr.mxu0 0.0
        %2739 = vmatpush1.msra.mxu0 0.0
        %2740 = vmatprep.subr.mxu0 0.0
        %2741 = vmatpush1.msra.mxu0 0.0
        %2742 = vmatprep.subr.mxu0 0.0
        %2743 = vmatpush1.msra.mxu0 0.0
        %2744 = vmatprep.subr.mxu0 0.0
        %2745 = vmatpush1.msra.mxu0 0.0
        %2746 = vmatprep.subr.mxu0 0.0
        %2747 = vmatpush1.msra.mxu0 0.0
        %2748 = vmatprep.subr.mxu0 0.0
        %2749 = vmatpush1.msra.mxu0 0.0
        %2750 = vmatprep.subr.mxu0 0.0
        %2751 = vmatpush1.msra.mxu0 0.0
        %2752 = vmatprep.subr.mxu0 0.0
        %2753 = vmatpush1.msra.mxu0 0.0
        %2754 = vmatprep.subr.mxu0 0.0
        %2755 = vmatpush1.msra.mxu0 0.0
        %2756 = vmatprep.subr.mxu0 0.0
        %2757 = vmatpush1.msra.mxu0 0.0
        %2758 = vmatprep.subr.mxu0 0.0
        %2759 = vmatpush1.msra.mxu0 0.0
        %2760 = vmatprep.subr.mxu0 0.0
        %2761 = vmatpush1.msra.mxu0 0.0
        %2762 = vmatprep.subr.mxu0 0.0
        %2763 = vmatpush1.msra.mxu0 0.0
        %2764 = vmatprep.subr.mxu0 0.0
        %2765 = vmatpush1.msra.mxu0 0.0
        %2766 = vmatprep.subr.mxu0 0.0
        %2767 = vmatpush1.msra.mxu0 0.0
        %2768 = vmatprep.subr.mxu0 0.0
        %2769 = vmatpush1.msra.mxu0 0.0
        %2770 = vmatprep.subr.mxu0 0.0
        %2771 = vmatpush1.msra.mxu0 0.0
        %2772 = vmatprep.subr.mxu0 0.0
        %2773 = vmatpush1.msra.mxu0 0.0
        %2774 = vmatprep.subr.mxu0 0.0
        %2775 = vmatpush1.msra.mxu0 0.0
        %2776 = vmatprep.subr.mxu0 0.0
        %2777 = vmatpush1.msra.mxu0 0.0
        %2778 = vmatprep.subr.mxu0 0.0
        %2779 = vmatpush1.msra.mxu0 0.0
        %2780 = vmatprep.subr.mxu0 0.0
        %2781 = vmatpush1.msra.mxu0 0.0
        %2782 = vmatprep.subr.mxu0 0.0
        %2783 = vmatpush1.msra.mxu0 0.0
        %2784 = vmatprep.subr.mxu0 0.0
        %2785 = vmatpush1.msra.mxu0 0.0
        %2786 = vmatprep.subr.mxu0 0.0
        %2787 = vmatpush1.msra.mxu0 0.0
        %2788 = vmatprep.subr.mxu0 0.0
        %2789 = vmatpush1.msra.mxu0 0.0
        %2790 = vmatprep.subr.mxu0 0.0
        %2791 = vmatpush1.msra.mxu0 0.0
        %2792 = vmatprep.subr.mxu0 0.0
        %2793 = vmatpush1.msra.mxu0 0.0
        %2794 = vmatprep.mubr.f32.mxu0 0.0
        %2795 = vmatmul.mubr.f32.gmra.mrb[0].mxu0 %v2728
        %v2796 = vpop.f32.mrb[0].mxu0
        %v2797 = vadd.f32 %v2726, %v2796
        %v2798 = vpop.f32.mrb[0].mxu0
        %2799 = vdwg.mxu0
        %v2800 = vld [vmem:[%s2 + $0xc8] sm:$0x7]
        %v2801 = vld [vmem:[%s3 + $0xf] sm:$0x1]
        %v2802 = vrot.slane %v2468, 7
        %v2803 = vsel %vm2689, %v2802, 0.0
        %v2804 = vrot.slane %v2468, 1
        %v2805 = vsel %vm2692, %v2804, 0.0
        %v2806 = vlaneseq
        %v2807 = vshrl.u32 %v2806, 7
        %v2808 = vsub.s32 0, %v2807
        %v2809 = vrot.slane %v2800, %v2808
        %v2810 = vmul.f32 %v2803, %v2809
        %v2811 = vlaneseq
        %v2812 = vshrl.u32 %v2811, 7
        %v2813 = vsub.s32 1, %v2812
        %v2814 = vrot.slane %v2800, %v2813
        %v2815 = vmul.f32 %v2468, %v2814
        %v2816 = vadd.f32 %v2810, %v2815
        %v2817 = vlaneseq
        %v2818 = vshrl.u32 %v2817, 7
        %v2819 = vsub.s32 2, %v2818
        %v2820 = vrot.slane %v2800, %v2819
        %v2821 = vmul.f32 %v2805, %v2820
        %v2822 = vadd.f32 %v2816, %v2821
        %v2823 = vlaneseq
        %v2824 = vshrl.u32 %v2823, 7
        %v2825 = vsub.s32 0, %v2824
        %v2826 = vrot.slane %v2801, %v2825
        %v2827 = vadd.f32 %v2822, %v2826
        %v2828 = vadd.f32 %v2468, %v2827
        %v2829 = vld [vmem:[%s2 + $0xd0] sm:$0x7]
        %v2830 = vld [vmem:[%s3 + $0x10] sm:$0x1]
        %v2831 = vrot.slane %v2797, 7
        %v2832 = vsel %vm2689, %v2831, 0.0
        %v2833 = vrot.slane %v2797, 1
        %v2834 = vsel %vm2692, %v2833, 0.0
        %v2835 = vlaneseq
        %v2836 = vshrl.u32 %v2835, 7
        %v2837 = vsub.s32 0, %v2836
        %v2838 = vrot.slane %v2829, %v2837
        %v2839 = vmul.f32 %v2832, %v2838
        %v2840 = vlaneseq
        %v2841 = vshrl.u32 %v2840, 7
        %v2842 = vsub.s32 1, %v2841
        %v2843 = vrot.slane %v2829, %v2842
        %v2844 = vmul.f32 %v2797, %v2843
        %v2845 = vadd.f32 %v2839, %v2844
        %v2846 = vlaneseq
        %v2847 = vshrl.u32 %v2846, 7
        %v2848 = vsub.s32 2, %v2847
        %v2849 = vrot.slane %v2829, %v2848
        %v2850 = vmul.f32 %v2834, %v2849
        %v2851 = vadd.f32 %v2845, %v2850
        %v2852 = vlaneseq
        %v2853 = vshrl.u32 %v2852, 7
        %v2854 = vsub.s32 0, %v2853
        %v2855 = vrot.slane %v2830, %v2854
        %v2856 = vadd.f32 %v2851, %v2855
        %v2857 = vadd.f32 %v2797, %v2856
        %v2858 = vld [vmem:[%s2 + $0xd8] sm:$0xff]
        %v2859 = vld [vmem:[%s2 + $0xe0] sm:$0xff]
        %v2860 = vld [vmem:[%s2 + $0xe8] sm:$0xff]
        %v2861 = vld [vmem:[%s2 + $0xf0] sm:$0xff]
        %v2862 = vld [vmem:[%s2 + $0xf8] sm:$0xff]
        %v2863 = vld [vmem:[%s2 + $0x100] sm:$0xff]
        %v2864 = vld [vmem:[%s2 + $0x108] sm:$0xff]
        %v2865 = vld [vmem:[%s2 + $0x110] sm:$0xff]
        %v2867 = vsel %vm292, %v2857, 0
        %2869 = vmatprep.subr.mxu0 0.0
        %2870 = vmatpush1.msra.mxu0 %v2862
        %2871 = vmatprep.subr.mxu0 0.0
        %2872 = vmatpush1.msra.mxu0 %v2863
        %2873 = vmatprep.subr.mxu0 0.0
        %2874 = vmatpush1.msra.mxu0 %v2864
        %2875 = vmatprep.subr.mxu0 0.0
        %2876 = vmatpush1.msra.mxu0 %v2865
        %2877 = vmatprep.subr.mxu0 0.0
        %2878 = vmatpush1.msra.mxu0 0.0
        %2879 = vmatprep.subr.mxu0 0.0
        %2880 = vmatpush1.msra.mxu0 0.0
        %2881 = vmatprep.subr.mxu0 0.0
        %2882 = vmatpush1.msra.mxu0 0.0
        %2883 = vmatprep.subr.mxu0 0.0
        %2884 = vmatpush1.msra.mxu0 0.0
        %2885 = vmatprep.subr.mxu0 0.0
        %2886 = vmatpush1.msra.mxu0 0.0
        %2887 = vmatprep.subr.mxu0 0.0
        %2888 = vmatpush1.msra.mxu0 0.0
        %2889 = vmatprep.subr.mxu0 0.0
        %2890 = vmatpush1.msra.mxu0 0.0
        %2891 = vmatprep.subr.mxu0 0.0
        %2892 = vmatpush1.msra.mxu0 0.0
        %2893 = vmatprep.subr.mxu0 0.0
        %2894 = vmatpush1.msra.mxu0 0.0
        %2895 = vmatprep.subr.mxu0 0.0
        %2896 = vmatpush1.msra.mxu0 0.0
        %2897 = vmatprep.subr.mxu0 0.0
        %2898 = vmatpush1.msra.mxu0 0.0
        %2899 = vmatprep.subr.mxu0 0.0
        %2900 = vmatpush1.msra.mxu0 0.0
        %2901 = vmatprep.subr.mxu0 0.0
        %2902 = vmatpush1.msra.mxu0 0.0
        %2903 = vmatprep.subr.mxu0 0.0
        %2904 = vmatpush1.msra.mxu0 0.0
        %2905 = vmatprep.subr.mxu0 0.0
        %2906 = vmatpush1.msra.mxu0 0.0
        %2907 = vmatprep.subr.mxu0 0.0
        %2908 = vmatpush1.msra.mxu0 0.0
        %2909 = vmatprep.subr.mxu0 0.0
        %2910 = vmatpush1.msra.mxu0 0.0
        %2911 = vmatprep.subr.mxu0 0.0
        %2912 = vmatpush1.msra.mxu0 0.0
        %2913 = vmatprep.subr.mxu0 0.0
        %2914 = vmatpush1.msra.mxu0 0.0
        %2915 = vmatprep.subr.mxu0 0.0
        %2916 = vmatpush1.msra.mxu0 0.0
        %2917 = vmatprep.subr.mxu0 0.0
        %2918 = vmatpush1.msra.mxu0 0.0
        %2919 = vmatprep.subr.mxu0 0.0
        %2920 = vmatpush1.msra.mxu0 0.0
        %2921 = vmatprep.subr.mxu0 0.0
        %2922 = vmatpush1.msra.mxu0 0.0
        %2923 = vmatprep.subr.mxu0 0.0
        %2924 = vmatpush1.msra.mxu0 0.0
        %2925 = vmatprep.subr.mxu0 0.0
        %2926 = vmatpush1.msra.mxu0 0.0
        %2927 = vmatprep.subr.mxu0 0.0
        %2928 = vmatpush1.msra.mxu0 0.0
        %2929 = vmatprep.subr.mxu0 0.0
        %2930 = vmatpush1.msra.mxu0 0.0
        %2931 = vmatprep.subr.mxu0 0.0
        %2932 = vmatpush1.msra.mxu0 0.0
        %2933 = vmatprep.mubr.f32.mxu0 0.0
        %2934 = vmatmul.mubr.f32.gmra.mrb[0].mxu0 %v2867
        %v2935 = vpop.f32.mrb[0].mxu0
        %v2936 = vadd.f32 0.0, %v2935
        %v2937 = vpop.f32.mrb[0].mxu0
        %2938 = vdwg.mxu0
        %v2940 = vsel %vm292, %v2828, 0
        %2942 = vmatprep.subr.mxu0 0.0
        %2943 = vmatpush1.msra.mxu0 %v2858
        %2944 = vmatprep.subr.mxu0 0.0
        %2945 = vmatpush1.msra.mxu0 %v2859
        %2946 = vmatprep.subr.mxu0 0.0
        %2947 = vmatpush1.msra.mxu0 %v2860
        %2948 = vmatprep.subr.mxu0 0.0
        %2949 = vmatpush1.msra.mxu0 %v2861
        %2950 = vmatprep.subr.mxu0 0.0
        %2951 = vmatpush1.msra.mxu0 0.0
        %2952 = vmatprep.subr.mxu0 0.0
        %2953 = vmatpush1.msra.mxu0 0.0
        %2954 = vmatprep.subr.mxu0 0.0
        %2955 = vmatpush1.msra.mxu0 0.0
        %2956 = vmatprep.subr.mxu0 0.0
        %2957 = vmatpush1.msra.mxu0 0.0
        %2958 = vmatprep.subr.mxu0 0.0
        %2959 = vmatpush1.msra.mxu0 0.0
        %2960 = vmatprep.subr.mxu0 0.0
        %2961 = vmatpush1.msra.mxu0 0.0
        %2962 = vmatprep.subr.mxu0 0.0
        %2963 = vmatpush1.msra.mxu0 0.0
        %2964 = vmatprep.subr.mxu0 0.0
        %2965 = vmatpush1.msra.mxu0 0.0
        %2966 = vmatprep.subr.mxu0 0.0
        %2967 = vmatpush1.msra.mxu0 0.0
        %2968 = vmatprep.subr.mxu0 0.0
        %2969 = vmatpush1.msra.mxu0 0.0
        %2970 = vmatprep.subr.mxu0 0.0
        %2971 = vmatpush1.msra.mxu0 0.0
        %2972 = vmatprep.subr.mxu0 0.0
        %2973 = vmatpush1.msra.mxu0 0.0
        %2974 = vmatprep.subr.mxu0 0.0
        %2975 = vmatpush1.msra.mxu0 0.0
        %2976 = vmatprep.subr.mxu0 0.0
        %2977 = vmatpush1.msra.mxu0 0.0
        %2978 = vmatprep.subr.mxu0 0.0
        %2979 = vmatpush1.msra.mxu0 0.0
        %2980 = vmatprep.subr.mxu0 0.0
        %2981 = vmatpush1.msra.mxu0 0.0
        %2982 = vmatprep.subr.mxu0 0.0
        %2983 = vmatpush1.msra.mxu0 0.0
        %2984 = vmatprep.subr.mxu0 0.0
        %2985 = vmatpush1.msra.mxu0 0.0
        %2986 = vmatprep.subr.mxu0 0.0
        %2987 = vmatpush1.msra.mxu0 0.0
        %2988 = vmatprep.subr.mxu0 0.0
        %2989 = vmatpush1.msra.mxu0 0.0
        %2990 = vmatprep.subr.mxu0 0.0
        %2991 = vmatpush1.msra.mxu0 0.0
        %2992 = vmatprep.subr.mxu0 0.0
        %2993 = vmatpush1.msra.mxu0 0.0
        %2994 = vmatprep.subr.mxu0 0.0
        %2995 = vmatpush1.msra.mxu0 0.0
        %2996 = vmatprep.subr.mxu0 0.0
        %2997 = vmatpush1.msra.mxu0 0.0
        %2998 = vmatprep.subr.mxu0 0.0
        %2999 = vmatpush1.msra.mxu0 0.0
        %3000 = vmatprep.subr.mxu0 0.0
        %3001 = vmatpush1.msra.mxu0 0.0
        %3002 = vmatprep.subr.mxu0 0.0
        %3003 = vmatpush1.msra.mxu0 0.0
        %3004 = vmatprep.subr.mxu0 0.0
        %3005 = vmatpush1.msra.mxu0 0.0
        %3006 = vmatprep.mubr.f32.mxu0 0.0
        %3007 = vmatmul.mubr.f32.gmra.mrb[0].mxu0 %v2940
        %v3008 = vpop.f32.mrb[0].mxu0
        %v3009 = vadd.f32 %v2936, %v3008
        %v3010 = vpop.f32.mrb[0].mxu0
        %3011 = vdwg.mxu0
        %v3012 = vld [vmem:[%s3 + $0x11] sm:$0x1]
        %v3013 = vlaneseq
        %v3014 = vshrl.u32 %v3013, 7
        %v3015 = vsub.s32 0, %v3014
        %v3016 = vrot.slane %v3012, %v3015
        %v3017 = vadd.f32 %v3009, %v3016
        %v3018 = vadd.f32 %v488, %v3017
        %v3019 = vld [vmem:[%s3 + $0x14] sm:$0x1]
        %v3020 = vld [vmem:[%s3 + $0x15] sm:$0x1]
        %v3021 = vsel %vm292, %v3018, 0.0
        %3022 = vadd.xlane.f32.xlu0 %v3021
        %v3023 = vpop.xlane.xlu0 %3022
        %v3024 = vmul.f32 %v3023, %v296
        %v3025 = vsub.f32 %v3018, %v3024
        %v3026 = vmul.f32 %v3025, %v3025
        %v3027 = vsel %vm292, %v3026, 0.0
        %3028 = vadd.xlane.f32.xlu0 %v3027
        %v3029 = vpop.xlane.xlu0 %3028
        %v3030 = vmul.f32 %v3029, %v296
        %v3031 = vadd.f32 %v3030, 1e-12
        %v3032 = vrsqrt.pop %v3031
        %v3033 = vmul.f32 %v3025, %v3032
        %v3034 = vlaneseq
        %v3035 = vshrl.u32 %v3034, 7
        %v3036 = vsub.s32 0, %v3035
        %v3037 = vrot.slane %v3019, %v3036
        %v3038 = vmul.f32 %v3033, %v3037
        %v3039 = vlaneseq
        %v3040 = vshrl.u32 %v3039, 7
        %v3041 = vsub.s32 0, %v3040
        %v3042 = vrot.slane %v3020, %v3041
        %v3043 = vadd.f32 %v3038, %v3042
        %v3044 = vld [vmem:[%s2 + $0x118] sm:$0xff]
        %v3045 = vld [vmem:[%s2 + $0x120] sm:$0xff]
        %v3046 = vld [vmem:[%s2 + $0x128] sm:$0xff]
        %v3047 = vld [vmem:[%s2 + $0x130] sm:$0xff]
        %v3048 = vld [vmem:[%s3 + $0x12] sm:$0x1]
        %v3049 = vlaneseq
        %v3050 = vshrl.u32 %v3049, 7
        %v3051 = vsub.s32 0, %v3050
        %v3052 = vrot.slane %v3048, %v3051
        %v3054 = vsel %vm292, %v3043, 0
        %3056 = vmatprep.subr.mxu0 0.0
        %3057 = vmatpush1.msra.mxu0 %v3044
        %3058 = vmatprep.subr.mxu0 0.0
        %3059 = vmatpush1.msra.mxu0 %v3045
        %3060 = vmatprep.subr.mxu0 0.0
        %3061 = vmatpush1.msra.mxu0 %v3046
        %3062 = vmatprep.subr.mxu0 0.0
        %3063 = vmatpush1.msra.mxu0 %v3047
        %3064 = vmatprep.subr.mxu0 0.0
        %3065 = vmatpush1.msra.mxu0 0.0
        %3066 = vmatprep.subr.mxu0 0.0
        %3067 = vmatpush1.msra.mxu0 0.0
        %3068 = vmatprep.subr.mxu0 0.0
        %3069 = vmatpush1.msra.mxu0 0.0
        %3070 = vmatprep.subr.mxu0 0.0
        %3071 = vmatpush1.msra.mxu0 0.0
        %3072 = vmatprep.subr.mxu0 0.0
        %3073 = vmatpush1.msra.mxu0 0.0
        %3074 = vmatprep.subr.mxu0 0.0
        %3075 = vmatpush1.msra.mxu0 0.0
        %3076 = vmatprep.subr.mxu0 0.0
        %3077 = vmatpush1.msra.mxu0 0.0
        %3078 = vmatprep.subr.mxu0 0.0
        %3079 = vmatpush1.msra.mxu0 0.0
        %3080 = vmatprep.subr.mxu0 0.0
        %3081 = vmatpush1.msra.mxu0 0.0
        %3082 = vmatprep.subr.mxu0 0.0
        %3083 = vmatpush1.msra.mxu0 0.0
        %3084 = vmatprep.subr.mxu0 0.0
        %3085 = vmatpush1.msra.mxu0 0.0
        %3086 = vmatprep.subr.mxu0 0.0
        %3087 = vmatpush1.msra.mxu0 0.0
        %3088 = vmatprep.subr.mxu0 0.0
        %3089 = vmatpush1.msra.mxu0 0.0
        %3090 = vmatprep.subr.mxu0 0.0
        %3091 = vmatpush1.msra.mxu0 0.0
        %3092 = vmatprep.subr.mxu0 0.0
        %3093 = vmatpush1.msra.mxu0 0.0
        %3094 = vmatprep.subr.mxu0 0.0
        %3095 = vmatpush1.msra.mxu0 0.0
        %3096 = vmatprep.subr.mxu0 0.0
        %3097 = vmatpush1.msra.mxu0 0.0
        %3098 = vmatprep.subr.mxu0 0.0
        %3099 = vmatpush1.msra.mxu0 0.0
        %3100 = vmatprep.subr.mxu0 0.0
        %3101 = vmatpush1.msra.mxu0 0.0
        %3102 = vmatprep.subr.mxu0 0.0
        %3103 = vmatpush1.msra.mxu0 0.0
        %3104 = vmatprep.subr.mxu0 0.0
        %3105 = vmatpush1.msra.mxu0 0.0
        %3106 = vmatprep.subr.mxu0 0.0
        %3107 = vmatpush1.msra.mxu0 0.0
        %3108 = vmatprep.subr.mxu0 0.0
        %3109 = vmatpush1.msra.mxu0 0.0
        %3110 = vmatprep.subr.mxu0 0.0
        %3111 = vmatpush1.msra.mxu0 0.0
        %3112 = vmatprep.subr.mxu0 0.0
        %3113 = vmatpush1.msra.mxu0 0.0
        %3114 = vmatprep.subr.mxu0 0.0
        %3115 = vmatpush1.msra.mxu0 0.0
        %3116 = vmatprep.subr.mxu0 0.0
        %3117 = vmatpush1.msra.mxu0 0.0
        %3118 = vmatprep.subr.mxu0 0.0
        %3119 = vmatpush1.msra.mxu0 0.0
        %3120 = vmatprep.mubr.f32.mxu0 0.0
        %3121 = vmatmul.mubr.f32.gmra.mrb[0].mxu0 %v3054
        %v3122 = vpop.f32.mrb[0].mxu0
        %v3123 = vadd.f32 %v3052, %v3122
        %v3124 = vpop.f32.mrb[0].mxu0
        %3125 = vdwg.mxu0
        %v3126 = vmax.f32 %v3123, 0.0
        %v3127 = vld [vmem:[%s2 + $0x138] sm:$0xff]
        %v3128 = vld [vmem:[%s2 + $0x140] sm:$0xff]
        %v3129 = vld [vmem:[%s2 + $0x148] sm:$0xff]
        %v3130 = vld [vmem:[%s2 + $0x150] sm:$0xff]
        %v3131 = vld [vmem:[%s2 + $0x158] sm:$0xff]
        %v3132 = vld [vmem:[%s2 + $0x160] sm:$0xff]
        %v3133 = vld [vmem:[%s2 + $0x168] sm:$0xff]
        %v3134 = vld [vmem:[%s2 + $0x170] sm:$0xff]
        %v3135 = vld [vmem:[%s3 + $0x13] sm:$0x1]
        %v3136 = vlaneseq
        %v3137 = vshrl.u32 %v3136, 7
        %v3138 = vsub.s32 0, %v3137
        %v3139 = vrot.slane %v3135, %v3138
        %v3141 = vsel %vm413, %v3126, 0
        %3143 = vmatprep.subr.mxu0 0.0
        %3144 = vmatpush1.msra.mxu0 %v3127
        %3145 = vmatprep.subr.mxu0 0.0
        %3146 = vmatpush1.msra.mxu0 %v3128
        %3147 = vmatprep.subr.mxu0 0.0
        %3148 = vmatpush1.msra.mxu0 %v3129
        %3149 = vmatprep.subr.mxu0 0.0
        %3150 = vmatpush1.msra.mxu0 %v3130
        %3151 = vmatprep.subr.mxu0 0.0
        %3152 = vmatpush1.msra.mxu0 %v3131
        %3153 = vmatprep.subr.mxu0 0.0
        %3154 = vmatpush1.msra.mxu0 %v3132
        %3155 = vmatprep.subr.mxu0 0.0
        %3156 = vmatpush1.msra.mxu0 %v3133
        %3157 = vmatprep.subr.mxu0 0.0
        %3158 = vmatpush1.msra.mxu0 %v3134
        %3159 = vmatprep.subr.mxu0 0.0
        %3160 = vmatpush1.msra.mxu0 0.0
        %3161 = vmatprep.subr.mxu0 0.0
        %3162 = vmatpush1.msra.mxu0 0.0
        %3163 = vmatprep.subr.mxu0 0.0
        %3164 = vmatpush1.msra.mxu0 0.0
        %3165 = vmatprep.subr.mxu0 0.0
        %3166 = vmatpush1.msra.mxu0 0.0
        %3167 = vmatprep.subr.mxu0 0.0
        %3168 = vmatpush1.msra.mxu0 0.0
        %3169 = vmatprep.subr.mxu0 0.0
        %3170 = vmatpush1.msra.mxu0 0.0
        %3171 = vmatprep.subr.mxu0 0.0
        %3172 = vmatpush1.msra.mxu0 0.0
        %3173 = vmatprep.subr.mxu0 0.0
        %3174 = vmatpush1.msra.mxu0 0.0
        %3175 = vmatprep.subr.mxu0 0.0
        %3176 = vmatpush1.msra.mxu0 0.0
        %3177 = vmatprep.subr.mxu0 0.0
        %3178 = vmatpush1.msra.mxu0 0.0
        %3179 = vmatprep.subr.mxu0 0.0
        %3180 = vmatpush1.msra.mxu0 0.0
        %3181 = vmatprep.subr.mxu0 0.0
        %3182 = vmatpush1.msra.mxu0 0.0
        %3183 = vmatprep.subr.mxu0 0.0
        %3184 = vmatpush1.msra.mxu0 0.0
        %3185 = vmatprep.subr.mxu0 0.0
        %3186 = vmatpush1.msra.mxu0 0.0
        %3187 = vmatprep.subr.mxu0 0.0
        %3188 = vmatpush1.msra.mxu0 0.0
        %3189 = vmatprep.subr.mxu0 0.0
        %3190 = vmatpush1.msra.mxu0 0.0
        %3191 = vmatprep.subr.mxu0 0.0
        %3192 = vmatpush1.msra.mxu0 0.0
        %3193 = vmatprep.subr.mxu0 0.0
        %3194 = vmatpush1.msra.mxu0 0.0
        %3195 = vmatprep.subr.mxu0 0.0
        %3196 = vmatpush1.msra.mxu0 0.0
        %3197 = vmatprep.subr.mxu0 0.0
        %3198 = vmatpush1.msra.mxu0 0.0
        %3199 = vmatprep.subr.mxu0 0.0
        %3200 = vmatpush1.msra.mxu0 0.0
        %3201 = vmatprep.subr.mxu0 0.0
        %3202 = vmatpush1.msra.mxu0 0.0
        %3203 = vmatprep.subr.mxu0 0.0
        %3204 = vmatpush1.msra.mxu0 0.0
        %3205 = vmatprep.subr.mxu0 0.0
        %3206 = vmatpush1.msra.mxu0 0.0
        %3207 = vmatprep.mubr.f32.mxu0 0.0
        %3208 = vmatmul.mubr.f32.gmra.mrb[0].mxu0 %v3141
        %v3209 = vpop.f32.mrb[0].mxu0
        %v3210 = vadd.f32 %v3139, %v3209
        %v3211 = vpop.f32.mrb[0].mxu0
        %3212 = vdwg.mxu0
        %v3213 = vmul.f32 %v3210, 0.5
        %v3214 = vadd.f32 %v3018, %v3213
        %v3215 = vld [vmem:[%s3 + $0x16] sm:$0x1]
        %v3216 = vld [vmem:[%s3 + $0x17] sm:$0x1]
        %v3217 = vsel %vm292, %v3214, 0.0
        %3218 = vadd.xlane.f32.xlu0 %v3217
        %v3219 = vpop.xlane.xlu0 %3218
        %v3220 = vmul.f32 %v3219, %v296
        %v3221 = vsub.f32 %v3214, %v3220
        %v3222 = vmul.f32 %v3221, %v3221
        %v3223 = vsel %vm292, %v3222, 0.0
        %3224 = vadd.xlane.f32.xlu0 %v3223
        %v3225 = vpop.xlane.xlu0 %3224
        %v3226 = vmul.f32 %v3225, %v296
        %v3227 = vadd.f32 %v3226, 1e-12
        %v3228 = vrsqrt.pop %v3227
        %v3229 = vmul.f32 %v3221, %v3228
        %v3230 = vlaneseq
        %v3231 = vshrl.u32 %v3230, 7
        %v3232 = vsub.s32 0, %v3231
        %v3233 = vrot.slane %v3215, %v3232
        %v3234 = vmul.f32 %v3229, %v3233
        %v3235 = vlaneseq
        %v3236 = vshrl.u32 %v3235, 7
        %v3237 = vsub.s32 0, %v3236
        %v3238 = vrot.slane %v3216, %v3237
        %v3239 = vadd.f32 %v3234, %v3238
        %3240 = vst.msk [vmem:[%s280] sm:$0xff] %vm292, %v3239
        %s3241 = sand.u32 %s186, 1
        %s3242 = scalar_lea.sflag [#allocation3], %s3241
        %s3243 = sand.u32 %s186, 1
        %s3244 = smul.addr %s3243, 8
        %s3245 = scalar_lea.vmem [#allocation2], %s3244
        // Predicated region
        $region49: #{tpu_custom_call.1} parent=47 // pred_check
          %p3246 = pneg %p196
        $region50: #{tpu_custom_call.1} parent=47 // pred_check_branch
          %3248 = sbr.rel (%p3246) target = $region52
        $region51: #{tpu_custom_call.1} parent=47 // pred_region
          %s3250 = ssub.s32 128, 128
          %3251 = vsyncadd %s3242, %s3250
          %s3252 = smul.addr %s21, 128
          %s3253 = scalar_lea.hbm %s7, %s3252
          %s3255 = sshll.u32 %s3245, 4
          %s3256 = int_to_ptr.vmem [resolvable:$true] %s3255
          %3258 = dma.vmem_to_hbm [thread:$0]  %s3256, 128, %s3253, %s3242
        $region52: #{tpu_custom_call.1} parent=47 // pred_fallthru
          _
      $region48: #{tpu_custom_call.1} parent=5 // pred_fallthru
        _
      %p3259 = scmp.le.s32.totalorder 2, %s16
      // Predicated region
      $region53: #{tpu_custom_call.1} parent=5 // pred_check
        %p3260 = pneg %p3259
      $region54: #{tpu_custom_call.1} parent=5 // pred_check_branch
        %3262 = sbr.rel (%p3260) target = $region56
      $region55: #{tpu_custom_call.1} parent=5 // pred_region
        %s3263 = ssub.s32 %s16, 2
        // Predicated region
        $region57: #{tpu_custom_call.1} parent=55 // pred_check
          %p3264 = pneg %p202
        $region58: #{tpu_custom_call.1} parent=55 // pred_check_branch
          %3266 = sbr.rel (%p3264) target = $region60
        $region59: #{tpu_custom_call.1} parent=55 // pred_region
          %s3267 = sand.u32 %s187, 1
          %s3268 = scalar_lea.sflag [#allocation3], %s3267
          %s3269 = sand.u32 %s187, 1
          %s3270 = smul.addr %s3269, 8
          %s3271 = scalar_lea.vmem [#allocation2], %s3270
          %3272 = dma.done %s3268, 128
        $region60: #{tpu_custom_call.1} parent=55 // pred_fallthru
          _
      $region56: #{tpu_custom_call.1} parent=5 // pred_fallthru
        _
    $region6: #{tpu_custom_call.1} parent=1 // loop_footer
      %s20 = sadd.s32 1, %s16
    $region7: #{tpu_custom_call.1} parent=1 // loop_footer_branch
      %15 = sbr.rel target = $region3
    $region8: #{tpu_custom_call.1} parent=1 // loop_exit
      _
    %3273 = vsyncpa [#allocation3], 1
    %s3274 = scalar_lea.sflag [#allocation3], 1
    %3275 = vsyncpa %s3274, 1

</llo_original>
